<compile_context>
chip_gen: v7x
topology: tpu7x:2x2x1
jax: 0.10.0
libtpu: 0.0.40
codegen_flags: <defaults>
</compile_context>

<pallas_src>
import functools

import jax
import jax.numpy as jnp
from jax.experimental import pallas as pl
from jax.experimental.pallas import tpu as pltpu


# Row indices of the packed per-layer vector array (shared by kernel & ref).
_LN1G, _LN1B, _BO, _LN2G, _LN2B, _B2 = range(6)


# ----------------------------- shared math helpers -----------------------------

def _layer_norm(x, g, b, eps=1e-5):
    mu = jnp.mean(x, axis=-1, keepdims=True)
    xc = x - mu
    var = jnp.mean(xc * xc, axis=-1, keepdims=True)
    return xc * jax.lax.rsqrt(var + eps) * g + b


def _gelu_tanh(x):
    # TODO(synk): PyTorch nn.GELU default is the exact erf GELU; the tanh
    # approximation is used (guaranteed Mosaic lowering); diff is O(1e-3).
    c = 0.7978845608028654  # sqrt(2/pi)
    return 0.5 * x * (1.0 + jnp.tanh(c * (x + 0.044715 * x * x * x)))


def _layer_math(x, bt, seq, heads, dim_head, *, ln1_g, ln1_b, wqkv, wo, bo,
                ln2_g, ln2_b, w1, b1, w2, b2, recip):
    """One pre-LN encoder layer on a flattened (bt*seq, D) residual stream.

    Used verbatim by the Pallas kernel and the pure-JAX reference, so the
    formulas and bf16 casts match exactly.
    """
    M, D = x.shape
    inner = heads * dim_head
    scale = dim_head ** -0.5

    # ---- pre-LN multi-head self-attention (fused QKV, per-head Wo accum) ----
    xn = _layer_norm(x, ln1_g, ln1_b)
    qkv = jnp.dot(xn.astype(wqkv.dtype), wqkv,
                  preferred_element_type=jnp.float32)            # (M, 3*inner)
    q = qkv[:, :inner].reshape(bt, seq, inner)
    k = qkv[:, inner:2 * inner].reshape(bt, seq, inner)
    v = qkv[:, 2 * inner:].reshape(bt, seq, inner)

    o_acc = jnp.zeros((M, D), jnp.float32)
    for h in range(heads):                                        # small, unrolled
        sl = slice(h * dim_head, (h + 1) * dim_head)
        q_h, k_h, v_h = q[..., sl], k[..., sl], v[..., sl]
        s = jax.lax.dot_general(q_h, k_h, (((2,), (2,)), ((0,), (0,))),
                                preferred_element_type=jnp.float32) * scale
        s = s - jnp.max(s, axis=-1, keepdims=True)
        p = jnp.exp(s)
        p = p * recip(jnp.sum(p, axis=-1, keepdims=True))
        o_h = jax.lax.dot_general(p, v_h, (((2,), (1,)), ((0,), (0,))),
                                  preferred_element_type=jnp.float32)  # (bt,seq,dh)
        o_acc = o_acc + jnp.dot(o_h.reshape(M, dim_head).astype(wo.dtype),
                                wo[sl, :], preferred_element_type=jnp.float32)
    x = x + o_acc + bo

    # -------------------------------- pre-LN FFN --------------------------------
    xn2 = _layer_norm(x, ln2_g, ln2_b)
    h1 = _gelu_tanh(jnp.dot(xn2.astype(w1.dtype), w1,
                            preferred_element_type=jnp.float32) + b1)
    x = x + jnp.dot(h1.astype(w2.dtype), w2,
                    preferred_element_type=jnp.float32) + b2
    return x


# --------------------------------- the kernel ----------------------------------

def _encoder_kernel(x0_ref, vec_ref, wqkv_ref, wo_ref, w1_ref, b1_ref, w2_ref,
                    fn_ref, o_ref, x_s, *, heads, dim_head, bt, seq):
    """One (batch_tile, layer) grid step of the fused transformer encoder."""
    layer = pl.program_id(1)
    n_layers = pl.num_programs(1)
    M, D = x_s.shape

    # layer 0: initialize the resident residual stream from the XLA-computed
    # token + positional embedding.
    @pl.when(layer == 0)
    def _init():
        x_s[...] = x0_ref[...].reshape(M, D)

    vecs = vec_ref[0]                                            # (6, D) f32
    x = _layer_math(
        x_s[...], bt, seq, heads, dim_head,
        ln1_g=vecs[_LN1G:_LN1G + 1], ln1_b=vecs[_LN1B:_LN1B + 1],
        wqkv=wqkv_ref[0], wo=wo_ref[0], bo=vecs[_BO:_BO + 1],
        ln2_g=vecs[_LN2G:_LN2G + 1], ln2_b=vecs[_LN2B:_LN2B + 1],
        w1=w1_ref[0], b1=b1_ref[0], w2=w2_ref[0], b2=vecs[_B2:_B2 + 1],
        recip=lambda d: pl.reciprocal(d, approx=True))
    x_s[...] = x                                                 # carry to next layer

    # last layer: final LayerNorm + the only HBM write of the hidden states.
    @pl.when(layer == n_layers - 1)
    def _finalize():
        fn = fn_ref[...]                                         # (2, D)
        y = _layer_norm(x, fn[0:1], fn[1:2])
        # TODO(synk): for D < 128 the store is a masked (vst.msk) partial store;
        # a lane-dense flattened output slab would be faster but D is the full
        # last dim here so correctness is unaffected.
        o_ref[...] = y.reshape(bt, seq, D).astype(o_ref.dtype)


# ------------------------------- host-side wrapper ------------------------------

def transformer_encode(tokens, params, *, heads, dim_head, batch_tile=None):
    """tokens: (B, S) int32 -> embeddings (B, S, D) float32."""
    B, S = tokens.shape
    V, D = params["tok_emb"].shape
    L = params["wqkv"].shape[0]
    inner = heads * dim_head
    dff = params["w1"].shape[-1]
    assert S <= params["pos_emb"].shape[0], "sequence longer than max_seq_len"

    # Token + positional embedding stays in XLA (a cheap gather); the (V, D)
    # table never enters the kernel / VMEM.
    x0 = params["tok_emb"][tokens.astype(jnp.int32)] + params["pos_emb"][:S][None]

    # Batch tile: each grid step processes bt sequences -> M = bt*S matmul rows,
    # and the layer weights are streamed once per tile instead of per sequence.
    if batch_tile is None:
        batch_tile = max(1, min(B, max(1, 256 // S)))
    bt = batch_tile
    G = pl.cdiv(B, bt)
    B_pad = G * bt
    if B_pad != B:
        x0 = jnp.pad(x0, ((0, B_pad - B), (0, 0), (0, 0)))

    per_layer3 = lambda g, l: (l, 0, 0)            # stream layer-l weights
    per_tile3 = lambda g, l: (g, 0, 0)             # per batch tile, layer-resident

    in_specs = [
        pl.BlockSpec((bt, S, D), per_tile3),           # x0 (fetched once per tile)
        pl.BlockSpec((1, 6, D), per_layer3),           # packed per-layer vectors
        pl.BlockSpec((1, D, 3 * inner), per_layer3),   # Wqkv (bf16)
        pl.BlockSpec((1, inner, D), per_layer3),       # Wo   (bf16)
        pl.BlockSpec((1, D, dff), per_layer3),         # W1   (bf16)
        pl.BlockSpec((1, 1, dff), per_layer3),         # b1
        pl.BlockSpec((1, dff, D), per_layer3),         # W2   (bf16)
        pl.BlockSpec((2, D), lambda g, l: (0, 0)),     # final-norm gamma/beta
    ]

    kernel = functools.partial(_encoder_kernel, heads=heads, dim_head=dim_head,
                               bt=bt, seq=S)

    out = pl.pallas_call(
        kernel,
        out_shape=jax.ShapeDtypeStruct((B_pad, S, D), jnp.float32),
        grid=(G, L),
        in_specs=in_specs,
        out_specs=pl.BlockSpec((bt, S, D), per_tile3),
        scratch_shapes=[pltpu.VMEM((bt * S, D), jnp.float32)],   # residual stream
        compiler_params=pltpu.CompilerParams(
            # Batch tiles across cores (v7x megacore); layer axis is sequential
            # (residual carried in scratch). On v7x the two cores re-stream the
            # weights independently — keep bt large enough to amortize.
            dimension_semantics=("parallel", "arbitrary"),
            # Explicit scoped-VMEM budget: v5e default is only 16 MiB; 48 MiB
            # leaves headroom and fits v7x's 64 MiB physical VMEM.
            vmem_limit_bytes=48 * 1024 * 1024),
    )(x0, params["vecs"], params["wqkv"], params["wo"], params["w1"],
      params["b1"], params["w2"], params["fn"])
    return out[:B]


# ------------------------------------ module ------------------------------------

class TransformerEmbedderPallas:
    """Pallas/TPU port of TransformerEmbedder (token + abs-pos embedding, pre-LN
    self-attention encoder of depth n_layer, final LayerNorm, return_embeddings)."""

    def __init__(self, n_embed, n_layer, vocab_size, max_seq_len=77,
                 heads=8, dim_head=64, key=jax.random.PRNGKey(0)):
        assert n_layer >= 1
        D, L = n_embed, n_layer
        inner, dff = heads * dim_head, 4 * n_embed
        self.heads, self.dim_head = heads, dim_head
        ks = jax.random.split(key, 14)
        nrm = jax.random.normal
        f32, bf16 = jnp.float32, jnp.bfloat16

        # Packed per-layer vectors: [ln1_g, ln1_b, bo, ln2_g, ln2_b, b2] -> (L,6,D)
        vecs = jnp.stack([
            1.0 + 0.1 * nrm(ks[2], (L, D), f32),    # ln1 gamma
            0.1 * nrm(ks[3], (L, D), f32),          # ln1 beta
            0.02 * nrm(ks[4], (L, D), f32),         # attention out bias
            1.0 + 0.1 * nrm(ks[5], (L, D), f32),    # ln2 gamma
            0.1 * nrm(ks[6], (L, D), f32),          # ln2 beta
            0.02 * nrm(ks[7], (L, D), f32),         # ffn out bias
        ], axis=1)
        fn = jnp.stack([1.0 + 0.1 * nrm(ks[8], (D,), f32),
                        0.1 * nrm(ks[9], (D,), f32)])            # (2, D)

        # Random deterministic init (same role as PyTorch default inits).
        # TODO(synk): loading pretrained PyTorch weights is out of scope here.
        self.params = dict(
            tok_emb=0.02 * nrm(ks[0], (vocab_size, D), f32),
            pos_emb=0.02 * nrm(ks[1], (max_seq_len, D), f32),
            vecs=vecs,
            fn=fn,
            wqkv=(nrm(ks[10], (L, D, 3 * inner), f32) / D ** 0.5).astype(bf16),
            wo=(nrm(ks[11], (L, inner, D), f32) / inner ** 0.5).astype(bf16),
            w1=(nrm(ks[12], (L, D, dff), f32) / D ** 0.5).astype(bf16),
            b1=0.02 * nrm(ks[13], (L, 1, dff), f32),
            w2=(nrm(ks[13], (L, dff, D), f32) / dff ** 0.5).astype(bf16),
        )
        # TODO(synk): emb_dropout is a no-op at inference and is omitted.

    def __call__(self, tokens):
        return transformer_encode(tokens, self.params,
                                  heads=self.heads, dim_head=self.dim_head)

    def encode(self, tokens):
        return self(tokens)


# ----------------------------- pure-JAX reference -------------------------------

def transformer_reference(tokens, params, *, heads, dim_head):
    B, S = tokens.shape
    D = params["tok_emb"].shape[1]
    L = params["wqkv"].shape[0]
    x = (params["tok_emb"][tokens] + params["pos_emb"][:S][None]).reshape(B * S, D)
    for l in range(L):
        vecs = params["vecs"][l]
        x = _layer_math(
            x, B, S, heads, dim_head,
            ln1_g=vecs[_LN1G:_LN1G + 1], ln1_b=vecs[_LN1B:_LN1B + 1],
            wqkv=params["wqkv"][l], wo=params["wo"][l], bo=vecs[_BO:_BO + 1],
            ln2_g=vecs[_LN2G:_LN2G + 1], ln2_b=vecs[_LN2B:_LN2B + 1],
            w1=params["w1"][l], b1=params["b1"][l], w2=params["w2"][l],
            b2=vecs[_B2:_B2 + 1],
            recip=lambda d: 1.0 / d)
    y = _layer_norm(x, params["fn"][0:1], params["fn"][1:2])
    return y.reshape(B, S, D)


# -------------------------------------- test ------------------------------------

if __name__ == "__main__":
    key = jax.random.PRNGKey(0)
    k_tok, k_par = jax.random.split(key)

    B, S = 2, 8
    n_embed, n_layer, vocab_size = 32, 2, 128
    heads, dim_head = 8, 64      # x-transformers Encoder defaults

    mod = TransformerEmbedderPallas(n_embed=n_embed, n_layer=n_layer,
                                    vocab_size=vocab_size, max_seq_len=77,
                                    heads=heads, dim_head=dim_head, key=k_par)
    tokens = jax.random.randint(k_tok, (B, S), 0, vocab_size, dtype=jnp.int32)

    z = mod(tokens)
    z = jax.block_until_ready(z)
    assert z.shape == (B, S, n_embed), z.shape
    assert bool(jnp.all(jnp.isfinite(z)))

    z_ref = transformer_reference(tokens, mod.params, heads=heads, dim_head=dim_head)
    max_err = float(jnp.max(jnp.abs(z - z_ref)))
    # Headroom for MXU accumulation order + approx-reciprocal softmax; the
    # kernel and reference share the same formulas and bf16 casts, so the
    # observed error is far smaller.
    assert max_err < 2e-2, f"max abs error {max_err}"
    print("KERNEL_OK")
</pallas_src>

<mosaic_0001>
module attributes {stable_mosaic.version = 11 : i64} {
  func.func @_encoder_kernel(%arg0: i32, %arg1: i32, %arg2: memref<2x8x32xf32, #tpu.memory_space<vmem>>, %arg3: memref<1x6x32xf32, #tpu.memory_space<vmem>>, %arg4: memref<1x32x1536xbf16, #tpu.memory_space<vmem>>, %arg5: memref<1x512x32xbf16, #tpu.memory_space<vmem>>, %arg6: memref<1x32x128xbf16, #tpu.memory_space<vmem>>, %arg7: memref<1x1x128xf32, #tpu.memory_space<vmem>>, %arg8: memref<1x128x32xbf16, #tpu.memory_space<vmem>>, %arg9: memref<2x32xf32, #tpu.memory_space<vmem>>, %arg10: memref<2x8x32xf32, #tpu.memory_space<vmem>>, %arg11: memref<16x32xf32, #tpu.memory_space<vmem>>) attributes {dimension_semantics = [#tpu.dimension_semantics<parallel>, #tpu.dimension_semantics<arbitrary>], iteration_bounds = array<i64: 1, 2>, scalar_prefetch = 0 : i64, scratch_operands = 1 : i64, tpu.core_type = #tpu.core_type<tc>, window_params = [{transform_indices = @transform_0, window_bounds = array<i64: 2, 8, 32>}, {transform_indices = @transform_1, window_bounds = array<i64: 1, 6, 32>}, {transform_indices = @transform_2, window_bounds = array<i64: 1, 32, 1536>}, {transform_indices = @transform_3, window_bounds = array<i64: 1, 512, 32>}, {transform_indices = @transform_4, window_bounds = array<i64: 1, 32, 128>}, {transform_indices = @transform_5, window_bounds = array<i64: 1, 1, 128>}, {transform_indices = @transform_6, window_bounds = array<i64: 1, 128, 32>}, {pipeline_mode = #tpu.pipeline_mode<synchronous>, transform_indices = @transform_7, window_bounds = array<i64: 2, 32>}, {transform_indices = @transform_8, window_bounds = array<i64: 2, 8, 32>}]} {
    %c0_i32 = arith.constant 0 : i32
    %0 = arith.cmpi eq, %arg1, %c0_i32 : i32
    %1 = arith.extui %0 : i1 to i32
    %c0_i32_0 = arith.constant 0 : i32
    %2 = arith.cmpi ne, %1, %c0_i32_0 : i32
    scf.if %2 {
      %c0_88 = arith.constant 0 : index
      %c0_89 = arith.constant 0 : index
      %c0_90 = arith.constant 0 : index
      %276 = vector.load %arg2[%c0_88, %c0_89, %c0_90] : memref<2x8x32xf32, #tpu.memory_space<vmem>>, vector<2x8x32xf32>
      %277 = vector.shape_cast %276 : vector<2x8x32xf32> to vector<16x32xf32>
      %c0_91 = arith.constant 0 : index
      %c0_92 = arith.constant 0 : index
      %278 = vector.load %arg11[%c0_91, %c0_92] : memref<16x32xf32, #tpu.memory_space<vmem>>, vector<16x32xf32>
      tpu.vector_store %arg11[%c0_91, %c0_92], %277 {strides = array<i32>} : memref<16x32xf32, #tpu.memory_space<vmem>>, vector<16x32xf32>,
    } else {
    }
    %c0 = arith.constant 0 : index
    %c0_1 = arith.constant 0 : index
    %c0_2 = arith.constant 0 : index
    %3 = vector.load %arg3[%c0, %c0_1, %c0_2] : memref<1x6x32xf32, #tpu.memory_space<vmem>>, vector<1x6x32xf32>
    %4 = vector.shape_cast %3 : vector<1x6x32xf32> to vector<6x32xf32>
    %c0_3 = arith.constant 0 : index
    %c0_4 = arith.constant 0 : index
    %5 = vector.load %arg11[%c0_3, %c0_4] : memref<16x32xf32, #tpu.memory_space<vmem>>, vector<16x32xf32>
    %6 = vector.extract_strided_slice %4 {offsets = [0, 0], sizes = [1, 32], strides = [1, 1]} : vector<6x32xf32> to vector<1x32xf32>
    %7 = vector.extract_strided_slice %4 {offsets = [1, 0], sizes = [1, 32], strides = [1, 1]} : vector<6x32xf32> to vector<1x32xf32>
    %c0_5 = arith.constant 0 : index
    %c0_6 = arith.constant 0 : index
    %c0_7 = arith.constant 0 : index
    %8 = vector.load %arg4[%c0_5, %c0_6, %c0_7] : memref<1x32x1536xbf16, #tpu.memory_space<vmem>>, vector<1x32x1536xbf16>
    %9 = vector.shape_cast %8 : vector<1x32x1536xbf16> to vector<32x1536xbf16>
    %c0_8 = arith.constant 0 : index
    %c0_9 = arith.constant 0 : index
    %c0_10 = arith.constant 0 : index
    %10 = vector.load %arg5[%c0_8, %c0_9, %c0_10] : memref<1x512x32xbf16, #tpu.memory_space<vmem>>, vector<1x512x32xbf16>
    %11 = vector.shape_cast %10 : vector<1x512x32xbf16> to vector<512x32xbf16>
    %12 = vector.extract_strided_slice %4 {offsets = [2, 0], sizes = [1, 32], strides = [1, 1]} : vector<6x32xf32> to vector<1x32xf32>
    %13 = vector.extract_strided_slice %4 {offsets = [3, 0], sizes = [1, 32], strides = [1, 1]} : vector<6x32xf32> to vector<1x32xf32>
    %14 = vector.extract_strided_slice %4 {offsets = [4, 0], sizes = [1, 32], strides = [1, 1]} : vector<6x32xf32> to vector<1x32xf32>
    %c0_11 = arith.constant 0 : index
    %c0_12 = arith.constant 0 : index
    %c0_13 = arith.constant 0 : index
    %15 = vector.load %arg6[%c0_11, %c0_12, %c0_13] : memref<1x32x128xbf16, #tpu.memory_space<vmem>>, vector<1x32x128xbf16>
    %16 = vector.shape_cast %15 : vector<1x32x128xbf16> to vector<32x128xbf16>
    %c0_14 = arith.constant 0 : index
    %c0_15 = arith.constant 0 : index
    %c0_16 = arith.constant 0 : index
    %17 = vector.load %arg7[%c0_14, %c0_15, %c0_16] : memref<1x1x128xf32, #tpu.memory_space<vmem>>, vector<1x1x128xf32>
    %18 = vector.shape_cast %17 : vector<1x1x128xf32> to vector<1x128xf32>
    %c0_17 = arith.constant 0 : index
    %c0_18 = arith.constant 0 : index
    %c0_19 = arith.constant 0 : index
    %19 = vector.load %arg8[%c0_17, %c0_18, %c0_19] : memref<1x128x32xbf16, #tpu.memory_space<vmem>>, vector<1x128x32xbf16>
    %20 = vector.shape_cast %19 : vector<1x128x32xbf16> to vector<128x32xbf16>
    %21 = vector.extract_strided_slice %4 {offsets = [5, 0], sizes = [1, 32], strides = [1, 1]} : vector<6x32xf32> to vector<1x32xf32>
    %cst = arith.constant dense<0.000000e+00> : vector<16xf32>
    %22 = vector.multi_reduction <add>, %5, %cst [1] : vector<16x32xf32> to vector<16xf32>
    %23 = vector.shape_cast %22 : vector<16xf32> to vector<16x1xf32>
    %cst_20 = arith.constant 3.200000e+01 : f32
    %24 = vector.broadcast %cst_20 : f32 to vector<16x1xf32>
    %25 = arith.divf %23, %24 : vector<16x1xf32>
    %26 = vector.broadcast %25 : vector<16x1xf32> to vector<16x32xf32>
    %27 = arith.subf %5, %26 : vector<16x32xf32>
    %28 = arith.mulf %27, %27 : vector<16x32xf32>
    %cst_21 = arith.constant dense<0.000000e+00> : vector<16xf32>
    %29 = vector.multi_reduction <add>, %28, %cst_21 [1] : vector<16x32xf32> to vector<16xf32>
    %30 = vector.shape_cast %29 : vector<16xf32> to vector<16x1xf32>
    %cst_22 = arith.constant 3.200000e+01 : f32
    %31 = vector.broadcast %cst_22 : f32 to vector<16x1xf32>
    %32 = arith.divf %30, %31 : vector<16x1xf32>
    %cst_23 = arith.constant 9.99999974E-6 : f32
    %33 = vector.broadcast %cst_23 : f32 to vector<16x1xf32>
    %34 = arith.addf %32, %33 : vector<16x1xf32>
    %35 = math.rsqrt %34 : vector<16x1xf32>
    %36 = vector.broadcast %35 : vector<16x1xf32> to vector<16x32xf32>
    %37 = arith.mulf %27, %36 : vector<16x32xf32>
    %38 = vector.broadcast %6 : vector<1x32xf32> to vector<16x32xf32>
    %39 = arith.mulf %37, %38 : vector<16x32xf32>
    %40 = vector.broadcast %7 : vector<1x32xf32> to vector<16x32xf32>
    %41 = arith.addf %39, %40 : vector<16x32xf32>
    %42 = arith.truncf %41 : vector<16x32xf32> to vector<16x32xbf16>
    %cst_24 = arith.constant dense<0.000000e+00> : vector<16x1536xf32>
    %43 = tpu.matmul %42, %9, %cst_24 {dimension_numbers = #tpu.dot_dimension_numbers<[1], [0], [0], [1], [0, 0, 1, 1], [], []>} : vector<16x32xbf16>, vector<32x1536xbf16>, vector<16x1536xf32> -> vector<16x1536xf32>
    %44 = vector.extract_strided_slice %43 {offsets = [0, 0], sizes = [16, 512], strides = [1, 1]} : vector<16x1536xf32> to vector<16x512xf32>
    %45 = vector.shape_cast %44 : vector<16x512xf32> to vector<2x8x512xf32>
    %46 = vector.extract_strided_slice %43 {offsets = [0, 512], sizes = [16, 512], strides = [1, 1]} : vector<16x1536xf32> to vector<16x512xf32>
    %47 = vector.shape_cast %46 : vector<16x512xf32> to vector<2x8x512xf32>
    %48 = vector.extract_strided_slice %43 {offsets = [0, 1024], sizes = [16, 512], strides = [1, 1]} : vector<16x1536xf32> to vector<16x512xf32>
    %49 = vector.shape_cast %48 : vector<16x512xf32> to vector<2x8x512xf32>
    %cst_25 = arith.constant 0.000000e+00 : f32
    %50 = vector.broadcast %cst_25 : f32 to vector<16x32xf32>
    %51 = vector.extract_strided_slice %45 {offsets = [0, 0, 0], sizes = [2, 8, 64], strides = [1, 1, 1]} : vector<2x8x512xf32> to vector<2x8x64xf32>
    %52 = vector.extract_strided_slice %47 {offsets = [0, 0, 0], sizes = [2, 8, 64], strides = [1, 1, 1]} : vector<2x8x512xf32> to vector<2x8x64xf32>
    %53 = vector.extract_strided_slice %49 {offsets = [0, 0, 0], sizes = [2, 8, 64], strides = [1, 1, 1]} : vector<2x8x512xf32> to vector<2x8x64xf32>
    %cst_26 = arith.constant dense<0.000000e+00> : vector<2x8x8xf32>
    %54 = tpu.matmul %51, %52, %cst_26 {dimension_numbers = #tpu.dot_dimension_numbers<[2], [2], [1], [1], [0, 0, 0, 1, 1, 1], [0], [0]>} : vector<2x8x64xf32>, vector<2x8x64xf32>, vector<2x8x8xf32> -> vector<2x8x8xf32>
    %cst_27 = arith.constant 1.250000e-01 : f32
    %55 = vector.broadcast %cst_27 : f32 to vector<2x8x8xf32>
    %56 = arith.mulf %54, %55 : vector<2x8x8xf32>
    %cst_28 = arith.constant dense<0xFF800000> : vector<2x8xf32>
    %57 = vector.multi_reduction <maximumf>, %56, %cst_28 [2] : vector<2x8x8xf32> to vector<2x8xf32>
    %58 = vector.shape_cast %57 : vector<2x8xf32> to vector<2x8x1xf32>
    %59 = vector.broadcast %58 : vector<2x8x1xf32> to vector<2x8x8xf32>
    %60 = arith.subf %56, %59 : vector<2x8x8xf32>
    %61 = math.exp %60 : vector<2x8x8xf32>
    %cst_29 = arith.constant dense<0.000000e+00> : vector<2x8xf32>
    %62 = vector.multi_reduction <add>, %61, %cst_29 [2] : vector<2x8x8xf32> to vector<2x8xf32>
    %63 = vector.shape_cast %62 : vector<2x8xf32> to vector<2x8x1xf32>
    %64 = tpu.reciprocal %63 {approx = true} : vector<2x8x1xf32> -> vector<2x8x1xf32>
    %65 = vector.broadcast %64 : vector<2x8x1xf32> to vector<2x8x8xf32>
    %66 = arith.mulf %61, %65 : vector<2x8x8xf32>
    %cst_30 = arith.constant dense<0.000000e+00> : vector<2x8x64xf32>
    %67 = tpu.matmul %66, %53, %cst_30 {dimension_numbers = #tpu.dot_dimension_numbers<[2], [1], [1], [2], [0, 0, 0, 1, 1, 2], [0], [0]>} : vector<2x8x8xf32>, vector<2x8x64xf32>, vector<2x8x64xf32> -> vector<2x8x64xf32>
    %68 = vector.shape_cast %67 : vector<2x8x64xf32> to vector<16x64xf32>
    %69 = arith.truncf %68 : vector<16x64xf32> to vector<16x64xbf16>
    %70 = vector.extract_strided_slice %11 {offsets = [0, 0], sizes = [64, 32], strides = [1, 1]} : vector<512x32xbf16> to vector<64x32xbf16>
    %cst_31 = arith.constant dense<0.000000e+00> : vector<16x32xf32>
    %71 = tpu.matmul %69, %70, %cst_31 {dimension_numbers = #tpu.dot_dimension_numbers<[1], [0], [0], [1], [0, 0, 1, 1], [], []>} : vector<16x64xbf16>, vector<64x32xbf16>, vector<16x32xf32> -> vector<16x32xf32>
    %72 = arith.addf %50, %71 : vector<16x32xf32>
    %73 = vector.extract_strided_slice %45 {offsets = [0, 0, 64], sizes = [2, 8, 64], strides = [1, 1, 1]} : vector<2x8x512xf32> to vector<2x8x64xf32>
    %74 = vector.extract_strided_slice %47 {offsets = [0, 0, 64], sizes = [2, 8, 64], strides = [1, 1, 1]} : vector<2x8x512xf32> to vector<2x8x64xf32>
    %75 = vector.extract_strided_slice %49 {offsets = [0, 0, 64], sizes = [2, 8, 64], strides = [1, 1, 1]} : vector<2x8x512xf32> to vector<2x8x64xf32>
    %cst_32 = arith.constant dense<0.000000e+00> : vector<2x8x8xf32>
    %76 = tpu.matmul %73, %74, %cst_32 {dimension_numbers = #tpu.dot_dimension_numbers<[2], [2], [1], [1], [0, 0, 0, 1, 1, 1], [0], [0]>} : vector<2x8x64xf32>, vector<2x8x64xf32>, vector<2x8x8xf32> -> vector<2x8x8xf32>
    %cst_33 = arith.constant 1.250000e-01 : f32
    %77 = vector.broadcast %cst_33 : f32 to vector<2x8x8xf32>
    %78 = arith.mulf %76, %77 : vector<2x8x8xf32>
    %cst_34 = arith.constant dense<0xFF800000> : vector<2x8xf32>
    %79 = vector.multi_reduction <maximumf>, %78, %cst_34 [2] : vector<2x8x8xf32> to vector<2x8xf32>
    %80 = vector.shape_cast %79 : vector<2x8xf32> to vector<2x8x1xf32>
    %81 = vector.broadcast %80 : vector<2x8x1xf32> to vector<2x8x8xf32>
    %82 = arith.subf %78, %81 : vector<2x8x8xf32>
    %83 = math.exp %82 : vector<2x8x8xf32>
    %cst_35 = arith.constant dense<0.000000e+00> : vector<2x8xf32>
    %84 = vector.multi_reduction <add>, %83, %cst_35 [2] : vector<2x8x8xf32> to vector<2x8xf32>
    %85 = vector.shape_cast %84 : vector<2x8xf32> to vector<2x8x1xf32>
    %86 = tpu.reciprocal %85 {approx = true} : vector<2x8x1xf32> -> vector<2x8x1xf32>
    %87 = vector.broadcast %86 : vector<2x8x1xf32> to vector<2x8x8xf32>
    %88 = arith.mulf %83, %87 : vector<2x8x8xf32>
    %cst_36 = arith.constant dense<0.000000e+00> : vector<2x8x64xf32>
    %89 = tpu.matmul %88, %75, %cst_36 {dimension_numbers = #tpu.dot_dimension_numbers<[2], [1], [1], [2], [0, 0, 0, 1, 1, 2], [0], [0]>} : vector<2x8x8xf32>, vector<2x8x64xf32>, vector<2x8x64xf32> -> vector<2x8x64xf32>
    %90 = vector.shape_cast %89 : vector<2x8x64xf32> to vector<16x64xf32>
    %91 = arith.truncf %90 : vector<16x64xf32> to vector<16x64xbf16>
    %92 = vector.extract_strided_slice %11 {offsets = [64, 0], sizes = [64, 32], strides = [1, 1]} : vector<512x32xbf16> to vector<64x32xbf16>
    %cst_37 = arith.constant dense<0.000000e+00> : vector<16x32xf32>
    %93 = tpu.matmul %91, %92, %cst_37 {dimension_numbers = #tpu.dot_dimension_numbers<[1], [0], [0], [1], [0, 0, 1, 1], [], []>} : vector<16x64xbf16>, vector<64x32xbf16>, vector<16x32xf32> -> vector<16x32xf32>
    %94 = arith.addf %72, %93 : vector<16x32xf32>
    %95 = vector.extract_strided_slice %45 {offsets = [0, 0, 128], sizes = [2, 8, 64], strides = [1, 1, 1]} : vector<2x8x512xf32> to vector<2x8x64xf32>
    %96 = vector.extract_strided_slice %47 {offsets = [0, 0, 128], sizes = [2, 8, 64], strides = [1, 1, 1]} : vector<2x8x512xf32> to vector<2x8x64xf32>
    %97 = vector.extract_strided_slice %49 {offsets = [0, 0, 128], sizes = [2, 8, 64], strides = [1, 1, 1]} : vector<2x8x512xf32> to vector<2x8x64xf32>
    %cst_38 = arith.constant dense<0.000000e+00> : vector<2x8x8xf32>
    %98 = tpu.matmul %95, %96, %cst_38 {dimension_numbers = #tpu.dot_dimension_numbers<[2], [2], [1], [1], [0, 0, 0, 1, 1, 1], [0], [0]>} : vector<2x8x64xf32>, vector<2x8x64xf32>, vector<2x8x8xf32> -> vector<2x8x8xf32>
    %cst_39 = arith.constant 1.250000e-01 : f32
    %99 = vector.broadcast %cst_39 : f32 to vector<2x8x8xf32>
    %100 = arith.mulf %98, %99 : vector<2x8x8xf32>
    %cst_40 = arith.constant dense<0xFF800000> : vector<2x8xf32>
    %101 = vector.multi_reduction <maximumf>, %100, %cst_40 [2] : vector<2x8x8xf32> to vector<2x8xf32>
    %102 = vector.shape_cast %101 : vector<2x8xf32> to vector<2x8x1xf32>
    %103 = vector.broadcast %102 : vector<2x8x1xf32> to vector<2x8x8xf32>
    %104 = arith.subf %100, %103 : vector<2x8x8xf32>
    %105 = math.exp %104 : vector<2x8x8xf32>
    %cst_41 = arith.constant dense<0.000000e+00> : vector<2x8xf32>
    %106 = vector.multi_reduction <add>, %105, %cst_41 [2] : vector<2x8x8xf32> to vector<2x8xf32>
    %107 = vector.shape_cast %106 : vector<2x8xf32> to vector<2x8x1xf32>
    %108 = tpu.reciprocal %107 {approx = true} : vector<2x8x1xf32> -> vector<2x8x1xf32>
    %109 = vector.broadcast %108 : vector<2x8x1xf32> to vector<2x8x8xf32>
    %110 = arith.mulf %105, %109 : vector<2x8x8xf32>
    %cst_42 = arith.constant dense<0.000000e+00> : vector<2x8x64xf32>
    %111 = tpu.matmul %110, %97, %cst_42 {dimension_numbers = #tpu.dot_dimension_numbers<[2], [1], [1], [2], [0, 0, 0, 1, 1, 2], [0], [0]>} : vector<2x8x8xf32>, vector<2x8x64xf32>, vector<2x8x64xf32> -> vector<2x8x64xf32>
    %112 = vector.shape_cast %111 : vector<2x8x64xf32> to vector<16x64xf32>
    %113 = arith.truncf %112 : vector<16x64xf32> to vector<16x64xbf16>
    %114 = vector.extract_strided_slice %11 {offsets = [128, 0], sizes = [64, 32], strides = [1, 1]} : vector<512x32xbf16> to vector<64x32xbf16>
    %cst_43 = arith.constant dense<0.000000e+00> : vector<16x32xf32>
    %115 = tpu.matmul %113, %114, %cst_43 {dimension_numbers = #tpu.dot_dimension_numbers<[1], [0], [0], [1], [0, 0, 1, 1], [], []>} : vector<16x64xbf16>, vector<64x32xbf16>, vector<16x32xf32> -> vector<16x32xf32>
    %116 = arith.addf %94, %115 : vector<16x32xf32>
    %117 = vector.extract_strided_slice %45 {offsets = [0, 0, 192], sizes = [2, 8, 64], strides = [1, 1, 1]} : vector<2x8x512xf32> to vector<2x8x64xf32>
    %118 = vector.extract_strided_slice %47 {offsets = [0, 0, 192], sizes = [2, 8, 64], strides = [1, 1, 1]} : vector<2x8x512xf32> to vector<2x8x64xf32>
    %119 = vector.extract_strided_slice %49 {offsets = [0, 0, 192], sizes = [2, 8, 64], strides = [1, 1, 1]} : vector<2x8x512xf32> to vector<2x8x64xf32>
    %cst_44 = arith.constant dense<0.000000e+00> : vector<2x8x8xf32>
    %120 = tpu.matmul %117, %118, %cst_44 {dimension_numbers = #tpu.dot_dimension_numbers<[2], [2], [1], [1], [0, 0, 0, 1, 1, 1], [0], [0]>} : vector<2x8x64xf32>, vector<2x8x64xf32>, vector<2x8x8xf32> -> vector<2x8x8xf32>
    %cst_45 = arith.constant 1.250000e-01 : f32
    %121 = vector.broadcast %cst_45 : f32 to vector<2x8x8xf32>
    %122 = arith.mulf %120, %121 : vector<2x8x8xf32>
    %cst_46 = arith.constant dense<0xFF800000> : vector<2x8xf32>
    %123 = vector.multi_reduction <maximumf>, %122, %cst_46 [2] : vector<2x8x8xf32> to vector<2x8xf32>
    %124 = vector.shape_cast %123 : vector<2x8xf32> to vector<2x8x1xf32>
    %125 = vector.broadcast %124 : vector<2x8x1xf32> to vector<2x8x8xf32>
    %126 = arith.subf %122, %125 : vector<2x8x8xf32>
    %127 = math.exp %126 : vector<2x8x8xf32>
    %cst_47 = arith.constant dense<0.000000e+00> : vector<2x8xf32>
    %128 = vector.multi_reduction <add>, %127, %cst_47 [2] : vector<2x8x8xf32> to vector<2x8xf32>
    %129 = vector.shape_cast %128 : vector<2x8xf32> to vector<2x8x1xf32>
    %130 = tpu.reciprocal %129 {approx = true} : vector<2x8x1xf32> -> vector<2x8x1xf32>
    %131 = vector.broadcast %130 : vector<2x8x1xf32> to vector<2x8x8xf32>
    %132 = arith.mulf %127, %131 : vector<2x8x8xf32>
    %cst_48 = arith.constant dense<0.000000e+00> : vector<2x8x64xf32>
    %133 = tpu.matmul %132, %119, %cst_48 {dimension_numbers = #tpu.dot_dimension_numbers<[2], [1], [1], [2], [0, 0, 0, 1, 1, 2], [0], [0]>} : vector<2x8x8xf32>, vector<2x8x64xf32>, vector<2x8x64xf32> -> vector<2x8x64xf32>
    %134 = vector.shape_cast %133 : vector<2x8x64xf32> to vector<16x64xf32>
    %135 = arith.truncf %134 : vector<16x64xf32> to vector<16x64xbf16>
    %136 = vector.extract_strided_slice %11 {offsets = [192, 0], sizes = [64, 32], strides = [1, 1]} : vector<512x32xbf16> to vector<64x32xbf16>
    %cst_49 = arith.constant dense<0.000000e+00> : vector<16x32xf32>
    %137 = tpu.matmul %135, %136, %cst_49 {dimension_numbers = #tpu.dot_dimension_numbers<[1], [0], [0], [1], [0, 0, 1, 1], [], []>} : vector<16x64xbf16>, vector<64x32xbf16>, vector<16x32xf32> -> vector<16x32xf32>
    %138 = arith.addf %116, %137 : vector<16x32xf32>
    %139 = vector.extract_strided_slice %45 {offsets = [0, 0, 256], sizes = [2, 8, 64], strides = [1, 1, 1]} : vector<2x8x512xf32> to vector<2x8x64xf32>
    %140 = vector.extract_strided_slice %47 {offsets = [0, 0, 256], sizes = [2, 8, 64], strides = [1, 1, 1]} : vector<2x8x512xf32> to vector<2x8x64xf32>
    %141 = vector.extract_strided_slice %49 {offsets = [0, 0, 256], sizes = [2, 8, 64], strides = [1, 1, 1]} : vector<2x8x512xf32> to vector<2x8x64xf32>
    %cst_50 = arith.constant dense<0.000000e+00> : vector<2x8x8xf32>
    %142 = tpu.matmul %139, %140, %cst_50 {dimension_numbers = #tpu.dot_dimension_numbers<[2], [2], [1], [1], [0, 0, 0, 1, 1, 1], [0], [0]>} : vector<2x8x64xf32>, vector<2x8x64xf32>, vector<2x8x8xf32> -> vector<2x8x8xf32>
    %cst_51 = arith.constant 1.250000e-01 : f32
    %143 = vector.broadcast %cst_51 : f32 to vector<2x8x8xf32>
    %144 = arith.mulf %142, %143 : vector<2x8x8xf32>
    %cst_52 = arith.constant dense<0xFF800000> : vector<2x8xf32>
    %145 = vector.multi_reduction <maximumf>, %144, %cst_52 [2] : vector<2x8x8xf32> to vector<2x8xf32>
    %146 = vector.shape_cast %145 : vector<2x8xf32> to vector<2x8x1xf32>
    %147 = vector.broadcast %146 : vector<2x8x1xf32> to vector<2x8x8xf32>
    %148 = arith.subf %144, %147 : vector<2x8x8xf32>
    %149 = math.exp %148 : vector<2x8x8xf32>
    %cst_53 = arith.constant dense<0.000000e+00> : vector<2x8xf32>
    %150 = vector.multi_reduction <add>, %149, %cst_53 [2] : vector<2x8x8xf32> to vector<2x8xf32>
    %151 = vector.shape_cast %150 : vector<2x8xf32> to vector<2x8x1xf32>
    %152 = tpu.reciprocal %151 {approx = true} : vector<2x8x1xf32> -> vector<2x8x1xf32>
    %153 = vector.broadcast %152 : vector<2x8x1xf32> to vector<2x8x8xf32>
    %154 = arith.mulf %149, %153 : vector<2x8x8xf32>
    %cst_54 = arith.constant dense<0.000000e+00> : vector<2x8x64xf32>
    %155 = tpu.matmul %154, %141, %cst_54 {dimension_numbers = #tpu.dot_dimension_numbers<[2], [1], [1], [2], [0, 0, 0, 1, 1, 2], [0], [0]>} : vector<2x8x8xf32>, vector<2x8x64xf32>, vector<2x8x64xf32> -> vector<2x8x64xf32>
    %156 = vector.shape_cast %155 : vector<2x8x64xf32> to vector<16x64xf32>
    %157 = arith.truncf %156 : vector<16x64xf32> to vector<16x64xbf16>
    %158 = vector.extract_strided_slice %11 {offsets = [256, 0], sizes = [64, 32], strides = [1, 1]} : vector<512x32xbf16> to vector<64x32xbf16>
    %cst_55 = arith.constant dense<0.000000e+00> : vector<16x32xf32>
    %159 = tpu.matmul %157, %158, %cst_55 {dimension_numbers = #tpu.dot_dimension_numbers<[1], [0], [0], [1], [0, 0, 1, 1], [], []>} : vector<16x64xbf16>, vector<64x32xbf16>, vector<16x32xf32> -> vector<16x32xf32>
    %160 = arith.addf %138, %159 : vector<16x32xf32>
    %161 = vector.extract_strided_slice %45 {offsets = [0, 0, 320], sizes = [2, 8, 64], strides = [1, 1, 1]} : vector<2x8x512xf32> to vector<2x8x64xf32>
    %162 = vector.extract_strided_slice %47 {offsets = [0, 0, 320], sizes = [2, 8, 64], strides = [1, 1, 1]} : vector<2x8x512xf32> to vector<2x8x64xf32>
    %163 = vector.extract_strided_slice %49 {offsets = [0, 0, 320], sizes = [2, 8, 64], strides = [1, 1, 1]} : vector<2x8x512xf32> to vector<2x8x64xf32>
    %cst_56 = arith.constant dense<0.000000e+00> : vector<2x8x8xf32>
    %164 = tpu.matmul %161, %162, %cst_56 {dimension_numbers = #tpu.dot_dimension_numbers<[2], [2], [1], [1], [0, 0, 0, 1, 1, 1], [0], [0]>} : vector<2x8x64xf32>, vector<2x8x64xf32>, vector<2x8x8xf32> -> vector<2x8x8xf32>
    %cst_57 = arith.constant 1.250000e-01 : f32
    %165 = vector.broadcast %cst_57 : f32 to vector<2x8x8xf32>
    %166 = arith.mulf %164, %165 : vector<2x8x8xf32>
    %cst_58 = arith.constant dense<0xFF800000> : vector<2x8xf32>
    %167 = vector.multi_reduction <maximumf>, %166, %cst_58 [2] : vector<2x8x8xf32> to vector<2x8xf32>
    %168 = vector.shape_cast %167 : vector<2x8xf32> to vector<2x8x1xf32>
    %169 = vector.broadcast %168 : vector<2x8x1xf32> to vector<2x8x8xf32>
    %170 = arith.subf %166, %169 : vector<2x8x8xf32>
    %171 = math.exp %170 : vector<2x8x8xf32>
    %cst_59 = arith.constant dense<0.000000e+00> : vector<2x8xf32>
    %172 = vector.multi_reduction <add>, %171, %cst_59 [2] : vector<2x8x8xf32> to vector<2x8xf32>
    %173 = vector.shape_cast %172 : vector<2x8xf32> to vector<2x8x1xf32>
    %174 = tpu.reciprocal %173 {approx = true} : vector<2x8x1xf32> -> vector<2x8x1xf32>
    %175 = vector.broadcast %174 : vector<2x8x1xf32> to vector<2x8x8xf32>
    %176 = arith.mulf %171, %175 : vector<2x8x8xf32>
    %cst_60 = arith.constant dense<0.000000e+00> : vector<2x8x64xf32>
    %177 = tpu.matmul %176, %163, %cst_60 {dimension_numbers = #tpu.dot_dimension_numbers<[2], [1], [1], [2], [0, 0, 0, 1, 1, 2], [0], [0]>} : vector<2x8x8xf32>, vector<2x8x64xf32>, vector<2x8x64xf32> -> vector<2x8x64xf32>
    %178 = vector.shape_cast %177 : vector<2x8x64xf32> to vector<16x64xf32>
    %179 = arith.truncf %178 : vector<16x64xf32> to vector<16x64xbf16>
    %180 = vector.extract_strided_slice %11 {offsets = [320, 0], sizes = [64, 32], strides = [1, 1]} : vector<512x32xbf16> to vector<64x32xbf16>
    %cst_61 = arith.constant dense<0.000000e+00> : vector<16x32xf32>
    %181 = tpu.matmul %179, %180, %cst_61 {dimension_numbers = #tpu.dot_dimension_numbers<[1], [0], [0], [1], [0, 0, 1, 1], [], []>} : vector<16x64xbf16>, vector<64x32xbf16>, vector<16x32xf32> -> vector<16x32xf32>
    %182 = arith.addf %160, %181 : vector<16x32xf32>
    %183 = vector.extract_strided_slice %45 {offsets = [0, 0, 384], sizes = [2, 8, 64], strides = [1, 1, 1]} : vector<2x8x512xf32> to vector<2x8x64xf32>
    %184 = vector.extract_strided_slice %47 {offsets = [0, 0, 384], sizes = [2, 8, 64], strides = [1, 1, 1]} : vector<2x8x512xf32> to vector<2x8x64xf32>
    %185 = vector.extract_strided_slice %49 {offsets = [0, 0, 384], sizes = [2, 8, 64], strides = [1, 1, 1]} : vector<2x8x512xf32> to vector<2x8x64xf32>
    %cst_62 = arith.constant dense<0.000000e+00> : vector<2x8x8xf32>
    %186 = tpu.matmul %183, %184, %cst_62 {dimension_numbers = #tpu.dot_dimension_numbers<[2], [2], [1], [1], [0, 0, 0, 1, 1, 1], [0], [0]>} : vector<2x8x64xf32>, vector<2x8x64xf32>, vector<2x8x8xf32> -> vector<2x8x8xf32>
    %cst_63 = arith.constant 1.250000e-01 : f32
    %187 = vector.broadcast %cst_63 : f32 to vector<2x8x8xf32>
    %188 = arith.mulf %186, %187 : vector<2x8x8xf32>
    %cst_64 = arith.constant dense<0xFF800000> : vector<2x8xf32>
    %189 = vector.multi_reduction <maximumf>, %188, %cst_64 [2] : vector<2x8x8xf32> to vector<2x8xf32>
    %190 = vector.shape_cast %189 : vector<2x8xf32> to vector<2x8x1xf32>
    %191 = vector.broadcast %190 : vector<2x8x1xf32> to vector<2x8x8xf32>
    %192 = arith.subf %188, %191 : vector<2x8x8xf32>
    %193 = math.exp %192 : vector<2x8x8xf32>
    %cst_65 = arith.constant dense<0.000000e+00> : vector<2x8xf32>
    %194 = vector.multi_reduction <add>, %193, %cst_65 [2] : vector<2x8x8xf32> to vector<2x8xf32>
    %195 = vector.shape_cast %194 : vector<2x8xf32> to vector<2x8x1xf32>
    %196 = tpu.reciprocal %195 {approx = true} : vector<2x8x1xf32> -> vector<2x8x1xf32>
    %197 = vector.broadcast %196 : vector<2x8x1xf32> to vector<2x8x8xf32>
    %198 = arith.mulf %193, %197 : vector<2x8x8xf32>
    %cst_66 = arith.constant dense<0.000000e+00> : vector<2x8x64xf32>
    %199 = tpu.matmul %198, %185, %cst_66 {dimension_numbers = #tpu.dot_dimension_numbers<[2], [1], [1], [2], [0, 0, 0, 1, 1, 2], [0], [0]>} : vector<2x8x8xf32>, vector<2x8x64xf32>, vector<2x8x64xf32> -> vector<2x8x64xf32>
    %200 = vector.shape_cast %199 : vector<2x8x64xf32> to vector<16x64xf32>
    %201 = arith.truncf %200 : vector<16x64xf32> to vector<16x64xbf16>
    %202 = vector.extract_strided_slice %11 {offsets = [384, 0], sizes = [64, 32], strides = [1, 1]} : vector<512x32xbf16> to vector<64x32xbf16>
    %cst_67 = arith.constant dense<0.000000e+00> : vector<16x32xf32>
    %203 = tpu.matmul %201, %202, %cst_67 {dimension_numbers = #tpu.dot_dimension_numbers<[1], [0], [0], [1], [0, 0, 1, 1], [], []>} : vector<16x64xbf16>, vector<64x32xbf16>, vector<16x32xf32> -> vector<16x32xf32>
    %204 = arith.addf %182, %203 : vector<16x32xf32>
    %205 = vector.extract_strided_slice %45 {offsets = [0, 0, 448], sizes = [2, 8, 64], strides = [1, 1, 1]} : vector<2x8x512xf32> to vector<2x8x64xf32>
    %206 = vector.extract_strided_slice %47 {offsets = [0, 0, 448], sizes = [2, 8, 64], strides = [1, 1, 1]} : vector<2x8x512xf32> to vector<2x8x64xf32>
    %207 = vector.extract_strided_slice %49 {offsets = [0, 0, 448], sizes = [2, 8, 64], strides = [1, 1, 1]} : vector<2x8x512xf32> to vector<2x8x64xf32>
    %cst_68 = arith.constant dense<0.000000e+00> : vector<2x8x8xf32>
    %208 = tpu.matmul %205, %206, %cst_68 {dimension_numbers = #tpu.dot_dimension_numbers<[2], [2], [1], [1], [0, 0, 0, 1, 1, 1], [0], [0]>} : vector<2x8x64xf32>, vector<2x8x64xf32>, vector<2x8x8xf32> -> vector<2x8x8xf32>
    %cst_69 = arith.constant 1.250000e-01 : f32
    %209 = vector.broadcast %cst_69 : f32 to vector<2x8x8xf32>
    %210 = arith.mulf %208, %209 : vector<2x8x8xf32>
    %cst_70 = arith.constant dense<0xFF800000> : vector<2x8xf32>
    %211 = vector.multi_reduction <maximumf>, %210, %cst_70 [2] : vector<2x8x8xf32> to vector<2x8xf32>
    %212 = vector.shape_cast %211 : vector<2x8xf32> to vector<2x8x1xf32>
    %213 = vector.broadcast %212 : vector<2x8x1xf32> to vector<2x8x8xf32>
    %214 = arith.subf %210, %213 : vector<2x8x8xf32>
    %215 = math.exp %214 : vector<2x8x8xf32>
    %cst_71 = arith.constant dense<0.000000e+00> : vector<2x8xf32>
    %216 = vector.multi_reduction <add>, %215, %cst_71 [2] : vector<2x8x8xf32> to vector<2x8xf32>
    %217 = vector.shape_cast %216 : vector<2x8xf32> to vector<2x8x1xf32>
    %218 = tpu.reciprocal %217 {approx = true} : vector<2x8x1xf32> -> vector<2x8x1xf32>
    %219 = vector.broadcast %218 : vector<2x8x1xf32> to vector<2x8x8xf32>
    %220 = arith.mulf %215, %219 : vector<2x8x8xf32>
    %cst_72 = arith.constant dense<0.000000e+00> : vector<2x8x64xf32>
    %221 = tpu.matmul %220, %207, %cst_72 {dimension_numbers = #tpu.dot_dimension_numbers<[2], [1], [1], [2], [0, 0, 0, 1, 1, 2], [0], [0]>} : vector<2x8x8xf32>, vector<2x8x64xf32>, vector<2x8x64xf32> -> vector<2x8x64xf32>
    %222 = vector.shape_cast %221 : vector<2x8x64xf32> to vector<16x64xf32>
    %223 = arith.truncf %222 : vector<16x64xf32> to vector<16x64xbf16>
    %224 = vector.extract_strided_slice %11 {offsets = [448, 0], sizes = [64, 32], strides = [1, 1]} : vector<512x32xbf16> to vector<64x32xbf16>
    %cst_73 = arith.constant dense<0.000000e+00> : vector<16x32xf32>
    %225 = tpu.matmul %223, %224, %cst_73 {dimension_numbers = #tpu.dot_dimension_numbers<[1], [0], [0], [1], [0, 0, 1, 1], [], []>} : vector<16x64xbf16>, vector<64x32xbf16>, vector<16x32xf32> -> vector<16x32xf32>
    %226 = arith.addf %204, %225 : vector<16x32xf32>
    %227 = arith.addf %5, %226 : vector<16x32xf32>
    %228 = vector.broadcast %12 : vector<1x32xf32> to vector<16x32xf32>
    %229 = arith.addf %227, %228 : vector<16x32xf32>
    %cst_74 = arith.constant dense<0.000000e+00> : vector<16xf32>
    %230 = vector.multi_reduction <add>, %229, %cst_74 [1] : vector<16x32xf32> to vector<16xf32>
    %231 = vector.shape_cast %230 : vector<16xf32> to vector<16x1xf32>
    %cst_75 = arith.constant 3.200000e+01 : f32
    %232 = vector.broadcast %cst_75 : f32 to vector<16x1xf32>
    %233 = arith.divf %231, %232 : vector<16x1xf32>
    %234 = vector.broadcast %233 : vector<16x1xf32> to vector<16x32xf32>
    %235 = arith.subf %229, %234 : vector<16x32xf32>
    %236 = arith.mulf %235, %235 : vector<16x32xf32>
    %cst_76 = arith.constant dense<0.000000e+00> : vector<16xf32>
    %237 = vector.multi_reduction <add>, %236, %cst_76 [1] : vector<16x32xf32> to vector<16xf32>
    %238 = vector.shape_cast %237 : vector<16xf32> to vector<16x1xf32>
    %cst_77 = arith.constant 3.200000e+01 : f32
    %239 = vector.broadcast %cst_77 : f32 to vector<16x1xf32>
    %240 = arith.divf %238, %239 : vector<16x1xf32>
    %cst_78 = arith.constant 9.99999974E-6 : f32
    %241 = vector.broadcast %cst_78 : f32 to vector<16x1xf32>
    %242 = arith.addf %240, %241 : vector<16x1xf32>
    %243 = math.rsqrt %242 : vector<16x1xf32>
    %244 = vector.broadcast %243 : vector<16x1xf32> to vector<16x32xf32>
    %245 = arith.mulf %235, %244 : vector<16x32xf32>
    %246 = vector.broadcast %13 : vector<1x32xf32> to vector<16x32xf32>
    %247 = arith.mulf %245, %246 : vector<16x32xf32>
    %248 = vector.broadcast %14 : vector<1x32xf32> to vector<16x32xf32>
    %249 = arith.addf %247, %248 : vector<16x32xf32>
    %250 = arith.truncf %249 : vector<16x32xf32> to vector<16x32xbf16>
    %cst_79 = arith.constant dense<0.000000e+00> : vector<16x128xf32>
    %251 = tpu.matmul %250, %16, %cst_79 {dimension_numbers = #tpu.dot_dimension_numbers<[1], [0], [0], [1], [0, 0, 1, 1], [], []>} : vector<16x32xbf16>, vector<32x128xbf16>, vector<16x128xf32> -> vector<16x128xf32>
    %252 = vector.broadcast %18 : vector<1x128xf32> to vector<16x128xf32>
    %253 = arith.addf %251, %252 : vector<16x128xf32>
    %cst_80 = arith.constant 5.000000e-01 : f32
    %254 = vector.broadcast %cst_80 : f32 to vector<16x128xf32>
    %255 = arith.mulf %254, %253 : vector<16x128xf32>
    %cst_81 = arith.constant 4.471500e-02 : f32
    %256 = vector.broadcast %cst_81 : f32 to vector<16x128xf32>
    %257 = arith.mulf %256, %253 : vector<16x128xf32>
    %258 = arith.mulf %257, %253 : vector<16x128xf32>
    %259 = arith.mulf %258, %253 : vector<16x128xf32>
    %260 = arith.addf %253, %259 : vector<16x128xf32>
    %cst_82 = arith.constant 0.797884583 : f32
    %261 = vector.broadcast %cst_82 : f32 to vector<16x128xf32>
    %262 = arith.mulf %261, %260 : vector<16x128xf32>
    %263 = math.tanh %262 : vector<16x128xf32>
    %cst_83 = arith.constant 1.000000e+00 : f32
    %264 = vector.broadcast %cst_83 : f32 to vector<16x128xf32>
    %265 = arith.addf %264, %263 : vector<16x128xf32>
    %266 = arith.mulf %255, %265 : vector<16x128xf32>
    %267 = arith.truncf %266 : vector<16x128xf32> to vector<16x128xbf16>
    %cst_84 = arith.constant dense<0.000000e+00> : vector<16x32xf32>
    %268 = tpu.matmul %267, %20, %cst_84 {dimension_numbers = #tpu.dot_dimension_numbers<[1], [0], [0], [1], [0, 0, 1, 1], [], []>} : vector<16x128xbf16>, vector<128x32xbf16>, vector<16x32xf32> -> vector<16x32xf32>
    %269 = arith.addf %229, %268 : vector<16x32xf32>
    %270 = vector.broadcast %21 : vector<1x32xf32> to vector<16x32xf32>
    %271 = arith.addf %269, %270 : vector<16x32xf32>
    %c0_85 = arith.constant 0 : index
    %c0_86 = arith.constant 0 : index
    %272 = vector.load %arg11[%c0_85, %c0_86] : memref<16x32xf32, #tpu.memory_space<vmem>>, vector<16x32xf32>
    tpu.vector_store %arg11[%c0_85, %c0_86], %271 {strides = array<i32>} : memref<16x32xf32, #tpu.memory_space<vmem>>, vector<16x32xf32>,
    %c1_i32 = arith.constant 1 : i32
    %273 = arith.cmpi eq, %arg1, %c1_i32 : i32
    %274 = arith.extui %273 : i1 to i32
    %c0_i32_87 = arith.constant 0 : i32
    %275 = arith.cmpi ne, %274, %c0_i32_87 : i32
    scf.if %275 {
      %c0_88 = arith.constant 0 : index
      %c0_89 = arith.constant 0 : index
      %276 = vector.load %arg9[%c0_88, %c0_89] : memref<2x32xf32, #tpu.memory_space<vmem>>, vector<2x32xf32>
      %277 = vector.extract_strided_slice %276 {offsets = [0, 0], sizes = [1, 32], strides = [1, 1]} : vector<2x32xf32> to vector<1x32xf32>
      %278 = vector.extract_strided_slice %276 {offsets = [1, 0], sizes = [1, 32], strides = [1, 1]} : vector<2x32xf32> to vector<1x32xf32>
      %cst_90 = arith.constant dense<0.000000e+00> : vector<16xf32>
      %279 = vector.multi_reduction <add>, %271, %cst_90 [1] : vector<16x32xf32> to vector<16xf32>
      %280 = vector.shape_cast %279 : vector<16xf32> to vector<16x1xf32>
      %cst_91 = arith.constant 3.200000e+01 : f32
      %281 = vector.broadcast %cst_91 : f32 to vector<16x1xf32>
      %282 = arith.divf %280, %281 : vector<16x1xf32>
      %283 = vector.broadcast %282 : vector<16x1xf32> to vector<16x32xf32>
      %284 = arith.subf %271, %283 : vector<16x32xf32>
      %285 = arith.mulf %284, %284 : vector<16x32xf32>
      %cst_92 = arith.constant dense<0.000000e+00> : vector<16xf32>
      %286 = vector.multi_reduction <add>, %285, %cst_92 [1] : vector<16x32xf32> to vector<16xf32>
      %287 = vector.shape_cast %286 : vector<16xf32> to vector<16x1xf32>
      %cst_93 = arith.constant 3.200000e+01 : f32
      %288 = vector.broadcast %cst_93 : f32 to vector<16x1xf32>
      %289 = arith.divf %287, %288 : vector<16x1xf32>
      %cst_94 = arith.constant 9.99999974E-6 : f32
      %290 = vector.broadcast %cst_94 : f32 to vector<16x1xf32>
      %291 = arith.addf %289, %290 : vector<16x1xf32>
      %292 = math.rsqrt %291 : vector<16x1xf32>
      %293 = vector.broadcast %292 : vector<16x1xf32> to vector<16x32xf32>
      %294 = arith.mulf %284, %293 : vector<16x32xf32>
      %295 = vector.broadcast %277 : vector<1x32xf32> to vector<16x32xf32>
      %296 = arith.mulf %294, %295 : vector<16x32xf32>
      %297 = vector.broadcast %278 : vector<1x32xf32> to vector<16x32xf32>
      %298 = arith.addf %296, %297 : vector<16x32xf32>
      %299 = vector.shape_cast %298 : vector<16x32xf32> to vector<2x8x32xf32>
      %c0_95 = arith.constant 0 : index
      %c0_96 = arith.constant 0 : index
      %c0_97 = arith.constant 0 : index
      %300 = vector.load %arg10[%c0_95, %c0_96, %c0_97] : memref<2x8x32xf32, #tpu.memory_space<vmem>>, vector<2x8x32xf32>
      tpu.vector_store %arg10[%c0_95, %c0_96, %c0_97], %299 {strides = array<i32>} : memref<2x8x32xf32, #tpu.memory_space<vmem>>, vector<2x8x32xf32>,
    } else {
    }
    return
  }
  func.func @transform_0(%arg0: i32, %arg1: i32) -> (i32, i32, i32) {
    %c0_i32 = arith.constant 0 : i32
    %c0_i32_0 = arith.constant 0 : i32
    %c0_i32_1 = arith.constant 0 : i32
    return %arg0, %c0_i32, %c0_i32_0 : i32, i32, i32
  }
  func.func @transform_1(%arg0: i32, %arg1: i32) -> (i32, i32, i32) {
    %c0_i32 = arith.constant 0 : i32
    %c0_i32_0 = arith.constant 0 : i32
    %c0_i32_1 = arith.constant 0 : i32
    return %arg1, %c0_i32, %c0_i32_0 : i32, i32, i32
  }
  func.func @transform_2(%arg0: i32, %arg1: i32) -> (i32, i32, i32) {
    %c0_i32 = arith.constant 0 : i32
    %c0_i32_0 = arith.constant 0 : i32
    %c0_i32_1 = arith.constant 0 : i32
    return %arg1, %c0_i32, %c0_i32_0 : i32, i32, i32
  }
  func.func @transform_3(%arg0: i32, %arg1: i32) -> (i32, i32, i32) {
    %c0_i32 = arith.constant 0 : i32
    %c0_i32_0 = arith.constant 0 : i32
    %c0_i32_1 = arith.constant 0 : i32
    return %arg1, %c0_i32, %c0_i32_0 : i32, i32, i32
  }
  func.func @transform_4(%arg0: i32, %arg1: i32) -> (i32, i32, i32) {
    %c0_i32 = arith.constant 0 : i32
    %c0_i32_0 = arith.constant 0 : i32
    %c0_i32_1 = arith.constant 0 : i32
    return %arg1, %c0_i32, %c0_i32_0 : i32, i32, i32
  }
  func.func @transform_5(%arg0: i32, %arg1: i32) -> (i32, i32, i32) {
    %c0_i32 = arith.constant 0 : i32
    %c0_i32_0 = arith.constant 0 : i32
    %c0_i32_1 = arith.constant 0 : i32
    return %arg1, %c0_i32, %c0_i32_0 : i32, i32, i32
  }
  func.func @transform_6(%arg0: i32, %arg1: i32) -> (i32, i32, i32) {
    %c0_i32 = arith.constant 0 : i32
    %c0_i32_0 = arith.constant 0 : i32
    %c0_i32_1 = arith.constant 0 : i32
    return %arg1, %c0_i32, %c0_i32_0 : i32, i32, i32
  }
  func.func @transform_7(%arg0: i32, %arg1: i32) -> (i32, i32) {
    %c0_i32 = arith.constant 0 : i32
    %c0_i32_0 = arith.constant 0 : i32
    %c0_i32_1 = arith.constant 0 : i32
    return %c0_i32, %c0_i32_0 : i32, i32
  }
  func.func @transform_8(%arg0: i32, %arg1: i32) -> (i32, i32, i32) {
    %c0_i32 = arith.constant 0 : i32
    %c0_i32_0 = arith.constant 0 : i32
    %c0_i32_1 = arith.constant 0 : i32
    return %arg0, %c0_i32, %c0_i32_0 : i32, i32, i32
  }
}

</mosaic_0001>

<llo_original>
// kernel: tpu_custom_call.1
$region0: #{tpu_custom_call.1}
  #allocation0 [shape = 'u32[]', space=smem, size = 0x4, offset = 0x4, fixed_abs, tag = 'smem constant byte address 0x4 - core index']
  #allocation1 [shape = 'u32[144,128]{1,0:T(1,128)}', space=vmem, size = 0x12000, scoped, tag = 'internal scratch']
  #allocation2 [shape = 'f32[16,32]{1,0:T(8,128)}', space=vmem, size = 0x2000, scoped, tag = 'scratch operand']
  %s0 = inlined_call_operand.vmem [shape: f32[2,8,32], index: 0, kind: input, shape index: {}]
  %s1 = inlined_call_operand.vmem [shape: f32[2,6,32], index: 1, kind: input, shape index: {}]
  %s2 = inlined_call_operand.vmem [shape: bf16[2,32,1536], index: 2, kind: input, shape index: {}]
  %s3 = inlined_call_operand.vmem [shape: bf16[2,512,32], index: 3, kind: input, shape index: {}]
  %s4 = inlined_call_operand.vmem [shape: bf16[2,32,128], index: 4, kind: input, shape index: {}]
  %s5 = inlined_call_operand.vmem [shape: f32[2,1,128], index: 5, kind: input, shape index: {}]
  %s6 = inlined_call_operand.vmem [shape: bf16[2,128,32], index: 6, kind: input, shape index: {}]
  %s7 = inlined_call_operand.vmem [shape: f32[2,32], index: 7, kind: input, shape index: {}]
  %s8 = inlined_call_operand.hbm [shape: f32[2,8,32], index: 8, kind: output, shape index: {}]
  %s9 = sld [smem:[#allocation0]]
  $region73: #{tpu_custom_call.1} parent=0
    _
  %s11 = ssub.s32 1, %s9
  %s12 = scalar_select 0, %s11, %s9
  $region1: #{tpu_custom_call.1} parent=0
    #allocation3 [shape = 'u8[8192]{0}', space=vmem, size = 0x2000, scoped, tag = 'output window, operand 0, single buffered']
    #allocation4 [shape = 's32[2]{0}', space=sflag, size = 0x8, scoped, tag = 'scoped memory for tpu_custom_call.1']
    %13 = vsyncpa [#allocation4], 0
    loop: start=0, step=1, limit=4
    $region2: #{tpu_custom_call.1} parent=1 // loop_pre_header
      _
    $region3: #{tpu_custom_call.1} parent=1 // loop_header
      %s15 = sphi 0, %s19
      %p16 = scmp.ge.s32.totalorder %s15, 4
      %s22 = sphi 0, %s34
      %s23 = sphi 0, %s30
      %s24 = sphi 0, %s22
      %s25 = sphi 0, %s23
      %s26 = sphi 0, %s24
      %s27 = sphi 0, %s25
      %s37 = sphi 0, %s39
      %s40 = sphi 0, %s37
      %s41 = sphi 0, %s40
      %s57 = sphi 0, %s41
      %s63 = sphi 0, %s65
      %s66 = sphi 0, %s63
      %s67 = sphi 0, %s66
      %s83 = sphi 0, %s67
      %s89 = sphi 0, %s91
      %s92 = sphi 0, %s89
      %s93 = sphi 0, %s92
      %s109 = sphi 0, %s93
      %s115 = sphi 0, %s117
      %s118 = sphi 0, %s115
      %s119 = sphi 0, %s118
      %s135 = sphi 0, %s119
      %s141 = sphi 0, %s143
      %s144 = sphi 0, %s141
      %s145 = sphi 0, %s144
      %s161 = sphi 0, %s145
      %s167 = sphi 0, %s169
      %s170 = sphi 0, %s167
      %s171 = sphi 0, %s170
      %s187 = sphi 0, %s171
      %s193 = sphi 0, %s195
      %s196 = sphi 0, %s193
      %s197 = sphi 0, %s196
      %s213 = sphi 0, %s197
      %s217 = sphi 0, %s217
      %s219 = sphi 0, %s217
      %s220 = sphi 0, %s219
      %s234 = sphi 0, %s220
      %s240 = sphi 0, %s242
      %s243 = sphi 0, %s240
      %s244 = sphi 0, %s243
      %s260 = sphi 0, %s244
    $region4: #{tpu_custom_call.1} parent=1 // loop_header_branch
      %18 = sbr.rel (%p16) target = $region8
    $region5: #{tpu_custom_call.1} parent=1 // loop_body
      %s20 = ssub.s32 %s15, 1
      %s21 = ssub.s32 %s15, 2
      %s28 = sadd.s32 1, %s23
      %p29 = scmp.ge.s32.totalorder %s28, 2
      %s30 = scalar_select %p29, 0, %s28
      %s31 = sadd.s32 1, %s22
      %s32 = scalar_select %p29, %s31, %s22
      %p33 = scmp.ge.s32.totalorder %s32, 1
      %s34 = scalar_select %p33, 0, %s32
      %s35 = ssub.s32 %s22, %s34
      %p36 = scmp.eq.s32.totalorder %s35, 0
      %s38 = sadd.s32 %s37, 1
      %s39 = scalar_select %p36, %s37, %s38
      %p42 = pneg %p36
      %p43 = scmp.eq.s32.totalorder %s15, 1
      %p44 = por %p42, %p43
      %p45 = scmp.ne.s32.totalorder %s37, %s40
      %p46 = scmp.eq.s32.totalorder %s15, 0
      %p47 = por %p45, %p46
      %p48 = scmp.ne.s32.totalorder %s37, %s40
      %p49 = scmp.eq.s32.totalorder %s20, 1
      %p50 = por %p48, %p49
      %p51 = scmp.ne.s32.totalorder %s40, %s41
      %p52 = scmp.eq.s32.totalorder %s20, 0
      %p53 = por %p51, %p52
      %p54 = scmp.ne.s32.totalorder %s40, %s41
      %p55 = scmp.eq.s32.totalorder %s21, 1
      %p56 = por %p54, %p55
      %p58 = scmp.ne.s32.totalorder %s41, %s57
      %p59 = scmp.eq.s32.totalorder %s21, 0
      %p60 = por %p58, %p59
      %s61 = ssub.s32 %s23, %s30
      %p62 = scmp.eq.s32.totalorder %s61, 0
      %s64 = sadd.s32 %s63, 1
      %s65 = scalar_select %p62, %s63, %s64
      %p68 = pneg %p62
      %p69 = scmp.eq.s32.totalorder %s15, 1
      %p70 = por %p68, %p69
      %p71 = scmp.ne.s32.totalorder %s63, %s66
      %p72 = scmp.eq.s32.totalorder %s15, 0
      %p73 = por %p71, %p72
      %p74 = scmp.ne.s32.totalorder %s63, %s66
      %p75 = scmp.eq.s32.totalorder %s20, 1
      %p76 = por %p74, %p75
      %p77 = scmp.ne.s32.totalorder %s66, %s67
      %p78 = scmp.eq.s32.totalorder %s20, 0
      %p79 = por %p77, %p78
      %p80 = scmp.ne.s32.totalorder %s66, %s67
      %p81 = scmp.eq.s32.totalorder %s21, 1
      %p82 = por %p80, %p81
      %p84 = scmp.ne.s32.totalorder %s67, %s83
      %p85 = scmp.eq.s32.totalorder %s21, 0
      %p86 = por %p84, %p85
      %s87 = ssub.s32 %s23, %s30
      %p88 = scmp.eq.s32.totalorder %s87, 0
      %s90 = sadd.s32 %s89, 1
      %s91 = scalar_select %p88, %s89, %s90
      %p94 = pneg %p88
      %p95 = scmp.eq.s32.totalorder %s15, 1
      %p96 = por %p94, %p95
      %p97 = scmp.ne.s32.totalorder %s89, %s92
      %p98 = scmp.eq.s32.totalorder %s15, 0
      %p99 = por %p97, %p98
      %p100 = scmp.ne.s32.totalorder %s89, %s92
      %p101 = scmp.eq.s32.totalorder %s20, 1
      %p102 = por %p100, %p101
      %p103 = scmp.ne.s32.totalorder %s92, %s93
      %p104 = scmp.eq.s32.totalorder %s20, 0
      %p105 = por %p103, %p104
      %p106 = scmp.ne.s32.totalorder %s92, %s93
      %p107 = scmp.eq.s32.totalorder %s21, 1
      %p108 = por %p106, %p107
      %p110 = scmp.ne.s32.totalorder %s93, %s109
      %p111 = scmp.eq.s32.totalorder %s21, 0
      %p112 = por %p110, %p111
      %s113 = ssub.s32 %s23, %s30
      %p114 = scmp.eq.s32.totalorder %s113, 0
      %s116 = sadd.s32 %s115, 1
      %s117 = scalar_select %p114, %s115, %s116
      %p120 = pneg %p114
      %p121 = scmp.eq.s32.totalorder %s15, 1
      %p122 = por %p120, %p121
      %p123 = scmp.ne.s32.totalorder %s115, %s118
      %p124 = scmp.eq.s32.totalorder %s15, 0
      %p125 = por %p123, %p124
      %p126 = scmp.ne.s32.totalorder %s115, %s118
      %p127 = scmp.eq.s32.totalorder %s20, 1
      %p128 = por %p126, %p127
      %p129 = scmp.ne.s32.totalorder %s118, %s119
      %p130 = scmp.eq.s32.totalorder %s20, 0
      %p131 = por %p129, %p130
      %p132 = scmp.ne.s32.totalorder %s118, %s119
      %p133 = scmp.eq.s32.totalorder %s21, 1
      %p134 = por %p132, %p133
      %p136 = scmp.ne.s32.totalorder %s119, %s135
      %p137 = scmp.eq.s32.totalorder %s21, 0
      %p138 = por %p136, %p137
      %s139 = ssub.s32 %s23, %s30
      %p140 = scmp.eq.s32.totalorder %s139, 0
      %s142 = sadd.s32 %s141, 1
      %s143 = scalar_select %p140, %s141, %s142
      %p146 = pneg %p140
      %p147 = scmp.eq.s32.totalorder %s15, 1
      %p148 = por %p146, %p147
      %p149 = scmp.ne.s32.totalorder %s141, %s144
      %p150 = scmp.eq.s32.totalorder %s15, 0
      %p151 = por %p149, %p150
      %p152 = scmp.ne.s32.totalorder %s141, %s144
      %p153 = scmp.eq.s32.totalorder %s20, 1
      %p154 = por %p152, %p153
      %p155 = scmp.ne.s32.totalorder %s144, %s145
      %p156 = scmp.eq.s32.totalorder %s20, 0
      %p157 = por %p155, %p156
      %p158 = scmp.ne.s32.totalorder %s144, %s145
      %p159 = scmp.eq.s32.totalorder %s21, 1
      %p160 = por %p158, %p159
      %p162 = scmp.ne.s32.totalorder %s145, %s161
      %p163 = scmp.eq.s32.totalorder %s21, 0
      %p164 = por %p162, %p163
      %s165 = ssub.s32 %s23, %s30
      %p166 = scmp.eq.s32.totalorder %s165, 0
      %s168 = sadd.s32 %s167, 1
      %s169 = scalar_select %p166, %s167, %s168
      %p172 = pneg %p166
      %p173 = scmp.eq.s32.totalorder %s15, 1
      %p174 = por %p172, %p173
      %p175 = scmp.ne.s32.totalorder %s167, %s170
      %p176 = scmp.eq.s32.totalorder %s15, 0
      %p177 = por %p175, %p176
      %p178 = scmp.ne.s32.totalorder %s167, %s170
      %p179 = scmp.eq.s32.totalorder %s20, 1
      %p180 = por %p178, %p179
      %p181 = scmp.ne.s32.totalorder %s170, %s171
      %p182 = scmp.eq.s32.totalorder %s20, 0
      %p183 = por %p181, %p182
      %p184 = scmp.ne.s32.totalorder %s170, %s171
      %p185 = scmp.eq.s32.totalorder %s21, 1
      %p186 = por %p184, %p185
      %p188 = scmp.ne.s32.totalorder %s171, %s187
      %p189 = scmp.eq.s32.totalorder %s21, 0
      %p190 = por %p188, %p189
      %s191 = ssub.s32 %s23, %s30
      %p192 = scmp.eq.s32.totalorder %s191, 0
      %s194 = sadd.s32 %s193, 1
      %s195 = scalar_select %p192, %s193, %s194
      %p198 = pneg %p192
      %p199 = scmp.eq.s32.totalorder %s15, 1
      %p200 = por %p198, %p199
      %p201 = scmp.ne.s32.totalorder %s193, %s196
      %p202 = scmp.eq.s32.totalorder %s15, 0
      %p203 = por %p201, %p202
      %p204 = scmp.ne.s32.totalorder %s193, %s196
      %p205 = scmp.eq.s32.totalorder %s20, 1
      %p206 = por %p204, %p205
      %p207 = scmp.ne.s32.totalorder %s196, %s197
      %p208 = scmp.eq.s32.totalorder %s20, 0
      %p209 = por %p207, %p208
      %p210 = scmp.ne.s32.totalorder %s196, %s197
      %p211 = scmp.eq.s32.totalorder %s21, 1
      %p212 = por %p210, %p211
      %p214 = scmp.ne.s32.totalorder %s197, %s213
      %p215 = scmp.eq.s32.totalorder %s21, 0
      %p216 = por %p214, %p215
      %s218 = sadd.s32 %s217, 1
      %p221 = scmp.eq.s32.totalorder %s15, 1
      %p222 = scmp.ne.s32.totalorder %s217, %s219
      %p223 = scmp.eq.s32.totalorder %s15, 0
      %p224 = por %p222, %p223
      %p225 = scmp.ne.s32.totalorder %s217, %s219
      %p226 = scmp.eq.s32.totalorder %s20, 1
      %p227 = por %p225, %p226
      %p228 = scmp.ne.s32.totalorder %s219, %s220
      %p229 = scmp.eq.s32.totalorder %s20, 0
      %p230 = por %p228, %p229
      %p231 = scmp.ne.s32.totalorder %s219, %s220
      %p232 = scmp.eq.s32.totalorder %s21, 1
      %p233 = por %p231, %p232
      %p235 = scmp.ne.s32.totalorder %s220, %s234
      %p236 = scmp.eq.s32.totalorder %s21, 0
      %p237 = por %p235, %p236
      %s238 = ssub.s32 %s22, %s34
      %p239 = scmp.eq.s32.totalorder %s238, 0
      %s241 = sadd.s32 %s240, 1
      %s242 = scalar_select %p239, %s240, %s241
      %p245 = pneg %p239
      %p246 = scmp.eq.s32.totalorder %s15, 1
      %p247 = por %p245, %p246
      %p248 = scmp.ne.s32.totalorder %s240, %s243
      %p249 = scmp.eq.s32.totalorder %s15, 0
      %p250 = por %p248, %p249
      %p251 = scmp.ne.s32.totalorder %s240, %s243
      %p252 = scmp.eq.s32.totalorder %s20, 1
      %p253 = por %p251, %p252
      %p254 = scmp.ne.s32.totalorder %s243, %s244
      %p255 = scmp.eq.s32.totalorder %s20, 0
      %p256 = por %p254, %p255
      %p257 = scmp.ne.s32.totalorder %s243, %s244
      %p258 = scmp.eq.s32.totalorder %s21, 1
      %p259 = por %p257, %p258
      %p261 = scmp.ne.s32.totalorder %s244, %s260
      %p262 = scmp.eq.s32.totalorder %s21, 0
      %p263 = por %p261, %p262
      %p264 = scmp.le.s32.totalorder 1, %s15
      %p265 = scmp.lt.s32.totalorder %s15, 3
      %p266 = pnand %p264, %p265
      %p267 = pneg %p266
      // Predicated region
      $region9: #{tpu_custom_call.1} parent=5 // pred_check
        _
      $region10: #{tpu_custom_call.1} parent=5 // pred_check_branch
        %269 = sbr.rel (%p266) target = $region12
      $region11: #{tpu_custom_call.1} parent=5 // pred_region
        %s270 = ssub.s32 %s15, 1
        // Predicated region
        $region13: #{tpu_custom_call.1} parent=11 // pred_check
          %p271 = pneg %p53
        $region14: #{tpu_custom_call.1} parent=11 // pred_check_branch
          %273 = sbr.rel (%p271) target = $region16
        $region15: #{tpu_custom_call.1} parent=11 // pred_region
          %s274 = smul.u32 2, %s24
          %p275 = scmp.lt.s32.totalorder %s274, 1
          %s276 = scalar_select %p275, %s274, 1
          %s277 = smul.addr %s276, 8
          %s278 = scalar_lea.vmem %s0, %s277
          %s279 = smul.u32 2, %s24
        $region16: #{tpu_custom_call.1} parent=11 // pred_fallthru
          _
        // Predicated region
        $region17: #{tpu_custom_call.1} parent=11 // pred_check
          %p280 = pneg %p230
        $region18: #{tpu_custom_call.1} parent=11 // pred_check_branch
          %282 = sbr.rel (%p280) target = $region20
        $region19: #{tpu_custom_call.1} parent=11 // pred_region
          _
        $region20: #{tpu_custom_call.1} parent=11 // pred_fallthru
          _
      $region12: #{tpu_custom_call.1} parent=5 // pred_fallthru
        _
      %p283 = scmp.lt.s32.totalorder %s15, 2
      // Predicated region
      $region21: #{tpu_custom_call.1} parent=5 // pred_check
        %p284 = pneg %p283
      $region22: #{tpu_custom_call.1} parent=5 // pred_check_branch
        %286 = sbr.rel (%p284) target = $region24
      $region23: #{tpu_custom_call.1} parent=5 // pred_region
        // Predicated region
        $region25: #{tpu_custom_call.1} parent=23 // pred_check
          %p287 = pneg %p73
        $region26: #{tpu_custom_call.1} parent=23 // pred_check_branch
          %289 = sbr.rel (%p287) target = $region28
        $region27: #{tpu_custom_call.1} parent=23 // pred_region
          %p290 = scmp.lt.s32.totalorder %s23, 1
          %s291 = scalar_select %p290, %s23, 1
          %s292 = smul.addr %s291, 8
          %s293 = scalar_lea.vmem %s1, %s292
        $region28: #{tpu_custom_call.1} parent=23 // pred_fallthru
          _
        // Predicated region
        $region29: #{tpu_custom_call.1} parent=23 // pred_check
          %p294 = pneg %p99
        $region30: #{tpu_custom_call.1} parent=23 // pred_check_branch
          %296 = sbr.rel (%p294) target = $region32
        $region31: #{tpu_custom_call.1} parent=23 // pred_region
          %p297 = scmp.lt.s32.totalorder %s23, 1
          %s298 = scalar_select %p297, %s23, 1
          %s299 = smul.addr %s298, 48
          %s300 = smul.addr %s299, 4
          %s301 = scalar_lea.vmem %s2, %s300
        $region32: #{tpu_custom_call.1} parent=23 // pred_fallthru
          _
        // Predicated region
        $region33: #{tpu_custom_call.1} parent=23 // pred_check
          %p302 = pneg %p125
        $region34: #{tpu_custom_call.1} parent=23 // pred_check_branch
          %304 = sbr.rel (%p302) target = $region36
        $region35: #{tpu_custom_call.1} parent=23 // pred_region
          %p305 = scmp.lt.s32.totalorder %s23, 1
          %s306 = scalar_select %p305, %s23, 1
          %s307 = smul.addr %s306, 64
          %s308 = smul.addr %s307, 4
          %s309 = scalar_lea.vmem %s3, %s308
        $region36: #{tpu_custom_call.1} parent=23 // pred_fallthru
          _
        // Predicated region
        $region37: #{tpu_custom_call.1} parent=23 // pred_check
          %p310 = pneg %p151
        $region38: #{tpu_custom_call.1} parent=23 // pred_check_branch
          %312 = sbr.rel (%p310) target = $region40
        $region39: #{tpu_custom_call.1} parent=23 // pred_region
          %p313 = scmp.lt.s32.totalorder %s23, 1
          %s314 = scalar_select %p313, %s23, 1
          %s315 = smul.addr %s314, 4
          %s316 = smul.addr %s315, 4
          %s317 = scalar_lea.vmem %s4, %s316
        $region40: #{tpu_custom_call.1} parent=23 // pred_fallthru
          _
        // Predicated region
        $region41: #{tpu_custom_call.1} parent=23 // pred_check
          %p318 = pneg %p177
        $region42: #{tpu_custom_call.1} parent=23 // pred_check_branch
          %320 = sbr.rel (%p318) target = $region44
        $region43: #{tpu_custom_call.1} parent=23 // pred_region
          %p321 = scmp.lt.s32.totalorder %s23, 1
          %s322 = scalar_select %p321, %s23, 1
          %s323 = scalar_lea.vmem %s5, %s322
        $region44: #{tpu_custom_call.1} parent=23 // pred_fallthru
          _
        // Predicated region
        $region45: #{tpu_custom_call.1} parent=23 // pred_check
          %p324 = pneg %p203
        $region46: #{tpu_custom_call.1} parent=23 // pred_check_branch
          %326 = sbr.rel (%p324) target = $region48
        $region47: #{tpu_custom_call.1} parent=23 // pred_region
          %p327 = scmp.lt.s32.totalorder %s23, 1
          %s328 = scalar_select %p327, %s23, 1
          %s329 = smul.addr %s328, 16
          %s330 = smul.addr %s329, 4
          %s331 = scalar_lea.vmem %s6, %s330
        $region48: #{tpu_custom_call.1} parent=23 // pred_fallthru
          _
      $region24: #{tpu_custom_call.1} parent=5 // pred_fallthru
        _
      %p332 = scmp.le.s32.totalorder 1, %s15
      %p333 = scmp.lt.s32.totalorder %s15, 3
      %p334 = pnand %p332, %p333
      %p335 = pneg %p334
      // Predicated region
      $region49: #{tpu_custom_call.1} parent=5 // pred_check
        _
      $region50: #{tpu_custom_call.1} parent=5 // pred_check_branch
        %337 = sbr.rel (%p334) target = $region52
      $region51: #{tpu_custom_call.1} parent=5 // pred_region
        %s338 = ssub.s32 %s15, 1
        %s339 = smul.u32 2, %s24
        %p340 = scmp.lt.s32.totalorder %s339, 1
        %s341 = scalar_select %p340, %s339, 1
        %s342 = smul.addr %s341, 8
        %s343 = scalar_lea.vmem %s0, %s342
        %p344 = pneg %p53
        %p345 = pneg %p50
        %p346 = scmp.lt.s32.totalorder %s25, 1
        %s347 = scalar_select %p346, %s25, 1
        %s348 = smul.addr %s347, 8
        %s349 = scalar_lea.vmem %s1, %s348
        %p350 = pneg %p79
        %p351 = pneg %p76
        %p352 = scmp.lt.s32.totalorder %s25, 1
        %s353 = scalar_select %p352, %s25, 1
        %s354 = smul.addr %s353, 48
        %s355 = smul.addr %s354, 4
        %s356 = scalar_lea.vmem %s2, %s355
        %p357 = pneg %p105
        %p358 = pneg %p102
        %p359 = scmp.lt.s32.totalorder %s25, 1
        %s360 = scalar_select %p359, %s25, 1
        %s361 = smul.addr %s360, 64
        %s362 = smul.addr %s361, 4
        %s363 = scalar_lea.vmem %s3, %s362
        %p364 = pneg %p131
        %p365 = pneg %p128
        %p366 = scmp.lt.s32.totalorder %s25, 1
        %s367 = scalar_select %p366, %s25, 1
        %s368 = smul.addr %s367, 4
        %s369 = smul.addr %s368, 4
        %s370 = scalar_lea.vmem %s4, %s369
        %p371 = pneg %p157
        %p372 = pneg %p154
        %p373 = scmp.lt.s32.totalorder %s25, 1
        %s374 = scalar_select %p373, %s25, 1
        %s375 = scalar_lea.vmem %s5, %s374
        %p376 = pneg %p183
        %p377 = pneg %p180
        %p378 = scmp.lt.s32.totalorder %s25, 1
        %s379 = scalar_select %p378, %s25, 1
        %s380 = smul.addr %s379, 16
        %s381 = smul.addr %s380, 4
        %s382 = scalar_lea.vmem %s6, %s381
        %p383 = pneg %p209
        %p384 = pneg %p206
        %p385 = pneg %p230
        %p386 = pneg %p227
        %p387 = pneg %p256
        %p388 = pneg %p253
        %s389 = smul.u32 2, %s24
        %p390 = scmp.lt.s32.totalorder %s389, 1
        %s391 = scalar_select %p390, %s389, 1
        %s392 = smul.addr %s391, 8
        %s393 = scalar_lea.vmem %s0, %s392
        %s394 = smul.u32 2, %s24
        %p395 = scmp.lt.s32.totalorder %s25, 1
        %s396 = scalar_select %p395, %s25, 1
        %s397 = smul.addr %s396, 8
        %s398 = scalar_lea.vmem %s1, %s397
        %p399 = scmp.lt.s32.totalorder %s25, 1
        %s400 = scalar_select %p399, %s25, 1
        %s401 = smul.addr %s400, 48
        %s402 = smul.addr %s401, 4
        %s403 = scalar_lea.vmem %s2, %s402
        %p404 = scmp.lt.s32.totalorder %s25, 1
        %s405 = scalar_select %p404, %s25, 1
        %s406 = smul.addr %s405, 64
        %s407 = smul.addr %s406, 4
        %s408 = scalar_lea.vmem %s3, %s407
        %p409 = scmp.lt.s32.totalorder %s25, 1
        %s410 = scalar_select %p409, %s25, 1
        %s411 = smul.addr %s410, 4
        %s412 = smul.addr %s411, 4
        %s413 = scalar_lea.vmem %s4, %s412
        %p414 = scmp.lt.s32.totalorder %s25, 1
        %s415 = scalar_select %p414, %s25, 1
        %s416 = scalar_lea.vmem %s5, %s415
        %p417 = scmp.lt.s32.totalorder %s25, 1
        %s418 = scalar_select %p417, %s25, 1
        %s419 = smul.addr %s418, 16
        %s420 = smul.addr %s419, 4
        %s421 = scalar_lea.vmem %s6, %s420
        %s422 = smul.u32 2, %s24
        %p424 = scmp.eq.s32.totalorder %s25, 0
        // Predicated region
        $region53: #{tpu_custom_call.1} parent=51 // pred_check
          %p425 = pneg %p424
        $region54: #{tpu_custom_call.1} parent=51 // pred_check_branch
          %427 = sbr.rel (%p425) target = $region56
        $region55: #{tpu_custom_call.1} parent=51 // pred_region
          %v428 = vld [vmem:[%s393] sm:$0xff]
          %v429 = vld [vmem:[%s393 + $0x8] sm:$0xff]
          %vm430 = vcmask 261120
          %431 = vst.msk [vmem:[#allocation2] sm:$0xff] %vm430, %v428
          %432 = vst.msk [vmem:[#allocation2 + $0x8] sm:$0xff] %vm430, %v429
        $region56: #{tpu_custom_call.1} parent=51 // pred_fallthru
          _
        %v433 = vld [vmem:[%s398] sm:$0x3f]
        %v434 = vld [vmem:[#allocation2] sm:$0xff]
        %v435 = vld [vmem:[#allocation2 + $0x8] sm:$0xff]
        %v436 = vld [vmem:[%s403] sm:$0xff]
        %v437 = vld [vmem:[%s403 + $0x8] sm:$0xff]
        %v438 = vld [vmem:[%s403 + $0x10] sm:$0xff]
        %v439 = vld [vmem:[%s403 + $0x18] sm:$0xff]
        %v440 = vld [vmem:[%s403 + $0x20] sm:$0xff]
        %v441 = vld [vmem:[%s403 + $0x28] sm:$0xff]
        %v442 = vld [vmem:[%s403 + $0x30] sm:$0xff]
        %v443 = vld [vmem:[%s403 + $0x38] sm:$0xff]
        %v444 = vld [vmem:[%s403 + $0x40] sm:$0xff]
        %v445 = vld [vmem:[%s403 + $0x48] sm:$0xff]
        %v446 = vld [vmem:[%s403 + $0x50] sm:$0xff]
        %v447 = vld [vmem:[%s403 + $0x58] sm:$0xff]
        %v448 = vld [vmem:[%s403 + $0x60] sm:$0xff]
        %v449 = vld [vmem:[%s403 + $0x68] sm:$0xff]
        %v450 = vld [vmem:[%s403 + $0x70] sm:$0xff]
        %v451 = vld [vmem:[%s403 + $0x78] sm:$0xff]
        %v452 = vld [vmem:[%s403 + $0x80] sm:$0xff]
        %v453 = vld [vmem:[%s403 + $0x88] sm:$0xff]
        %v454 = vld [vmem:[%s403 + $0x90] sm:$0xff]
        %v455 = vld [vmem:[%s403 + $0x98] sm:$0xff]
        %v456 = vld [vmem:[%s403 + $0xa0] sm:$0xff]
        %v457 = vld [vmem:[%s403 + $0xa8] sm:$0xff]
        %v458 = vld [vmem:[%s403 + $0xb0] sm:$0xff]
        %v459 = vld [vmem:[%s403 + $0xb8] sm:$0xff]
        %v460 = vld [vmem:[%s408] sm:$0xf]
        %v461 = vld [vmem:[%s408 + $0x4] sm:$0xf]
        %v462 = vld [vmem:[%s408 + $0x8] sm:$0xf]
        %v463 = vld [vmem:[%s408 + $0xc] sm:$0xf]
        %v464 = vld [vmem:[%s408 + $0x10] sm:$0xf]
        %v465 = vld [vmem:[%s408 + $0x14] sm:$0xf]
        %v466 = vld [vmem:[%s408 + $0x18] sm:$0xf]
        %v467 = vld [vmem:[%s408 + $0x1c] sm:$0xf]
        %v468 = vld [vmem:[%s408 + $0x20] sm:$0xf]
        %v469 = vld [vmem:[%s408 + $0x24] sm:$0xf]
        %v470 = vld [vmem:[%s408 + $0x28] sm:$0xf]
        %v471 = vld [vmem:[%s408 + $0x2c] sm:$0xf]
        %v472 = vld [vmem:[%s408 + $0x30] sm:$0xf]
        %v473 = vld [vmem:[%s408 + $0x34] sm:$0xf]
        %v474 = vld [vmem:[%s408 + $0x38] sm:$0xf]
        %v475 = vld [vmem:[%s408 + $0x3c] sm:$0xf]
        %v476 = vld [vmem:[%s408 + $0x40] sm:$0xf]
        %v477 = vld [vmem:[%s408 + $0x44] sm:$0xf]
        %v478 = vld [vmem:[%s408 + $0x48] sm:$0xf]
        %v479 = vld [vmem:[%s408 + $0x4c] sm:$0xf]
        %v480 = vld [vmem:[%s408 + $0x50] sm:$0xf]
        %v481 = vld [vmem:[%s408 + $0x54] sm:$0xf]
        %v482 = vld [vmem:[%s408 + $0x58] sm:$0xf]
        %v483 = vld [vmem:[%s408 + $0x5c] sm:$0xf]
        %v484 = vld [vmem:[%s408 + $0x60] sm:$0xf]
        %v485 = vld [vmem:[%s408 + $0x64] sm:$0xf]
        %v486 = vld [vmem:[%s408 + $0x68] sm:$0xf]
        %v487 = vld [vmem:[%s408 + $0x6c] sm:$0xf]
        %v488 = vld [vmem:[%s408 + $0x70] sm:$0xf]
        %v489 = vld [vmem:[%s408 + $0x74] sm:$0xf]
        %v490 = vld [vmem:[%s408 + $0x78] sm:$0xf]
        %v491 = vld [vmem:[%s408 + $0x7c] sm:$0xf]
        %v492 = vld [vmem:[%s408 + $0x80] sm:$0xf]
        %v493 = vld [vmem:[%s408 + $0x84] sm:$0xf]
        %v494 = vld [vmem:[%s408 + $0x88] sm:$0xf]
        %v495 = vld [vmem:[%s408 + $0x8c] sm:$0xf]
        %v496 = vld [vmem:[%s408 + $0x90] sm:$0xf]
        %v497 = vld [vmem:[%s408 + $0x94] sm:$0xf]
        %v498 = vld [vmem:[%s408 + $0x98] sm:$0xf]
        %v499 = vld [vmem:[%s408 + $0x9c] sm:$0xf]
        %v500 = vld [vmem:[%s408 + $0xa0] sm:$0xf]
        %v501 = vld [vmem:[%s408 + $0xa4] sm:$0xf]
        %v502 = vld [vmem:[%s408 + $0xa8] sm:$0xf]
        %v503 = vld [vmem:[%s408 + $0xac] sm:$0xf]
        %v504 = vld [vmem:[%s408 + $0xb0] sm:$0xf]
        %v505 = vld [vmem:[%s408 + $0xb4] sm:$0xf]
        %v506 = vld [vmem:[%s408 + $0xb8] sm:$0xf]
        %v507 = vld [vmem:[%s408 + $0xbc] sm:$0xf]
        %v508 = vld [vmem:[%s408 + $0xc0] sm:$0xf]
        %v509 = vld [vmem:[%s408 + $0xc4] sm:$0xf]
        %v510 = vld [vmem:[%s408 + $0xc8] sm:$0xf]
        %v511 = vld [vmem:[%s408 + $0xcc] sm:$0xf]
        %v512 = vld [vmem:[%s408 + $0xd0] sm:$0xf]
        %v513 = vld [vmem:[%s408 + $0xd4] sm:$0xf]
        %v514 = vld [vmem:[%s408 + $0xd8] sm:$0xf]
        %v515 = vld [vmem:[%s408 + $0xdc] sm:$0xf]
        %v516 = vld [vmem:[%s408 + $0xe0] sm:$0xf]
        %v517 = vld [vmem:[%s408 + $0xe4] sm:$0xf]
        %v518 = vld [vmem:[%s408 + $0xe8] sm:$0xf]
        %v519 = vld [vmem:[%s408 + $0xec] sm:$0xf]
        %v520 = vld [vmem:[%s408 + $0xf0] sm:$0xf]
        %v521 = vld [vmem:[%s408 + $0xf4] sm:$0xf]
        %v522 = vld [vmem:[%s408 + $0xf8] sm:$0xf]
        %v523 = vld [vmem:[%s408 + $0xfc] sm:$0xf]
        %v524 = vld [vmem:[%s413] sm:$0xf]
        %v525 = vld [vmem:[%s413 + $0x4] sm:$0xf]
        %v526 = vld [vmem:[%s413 + $0x8] sm:$0xf]
        %v527 = vld [vmem:[%s413 + $0xc] sm:$0xf]
        %v528 = vld [vmem:[%s416] sm:$0x1]
        %v529 = vld [vmem:[%s421] sm:$0xf]
        %v530 = vld [vmem:[%s421 + $0x4] sm:$0xf]
        %v531 = vld [vmem:[%s421 + $0x8] sm:$0xf]
        %v532 = vld [vmem:[%s421 + $0xc] sm:$0xf]
        %v533 = vld [vmem:[%s421 + $0x10] sm:$0xf]
        %v534 = vld [vmem:[%s421 + $0x14] sm:$0xf]
        %v535 = vld [vmem:[%s421 + $0x18] sm:$0xf]
        %v536 = vld [vmem:[%s421 + $0x1c] sm:$0xf]
        %v537 = vld [vmem:[%s421 + $0x20] sm:$0xf]
        %v538 = vld [vmem:[%s421 + $0x24] sm:$0xf]
        %v539 = vld [vmem:[%s421 + $0x28] sm:$0xf]
        %v540 = vld [vmem:[%s421 + $0x2c] sm:$0xf]
        %v541 = vld [vmem:[%s421 + $0x30] sm:$0xf]
        %v542 = vld [vmem:[%s421 + $0x34] sm:$0xf]
        %v543 = vld [vmem:[%s421 + $0x38] sm:$0xf]
        %v544 = vld [vmem:[%s421 + $0x3c] sm:$0xf]
        %vm545 = vcmask 261120
        %v546 = vsel %vm545, %v434, 0.0
        %547 = vadd.xlane.f32.xlu0 %v546
        %v548 = vpop.xlane.xlu0 %547
        %v549 = vsel %vm545, %v435, 0.0
        %550 = vadd.xlane.f32.xlu0 %v549
        %v551 = vpop.xlane.xlu0 %550
        %v552 = vrcp.pop 32.0
        %v553 = vmul.f32 %v548, %v552
        %v554 = vmul.f32 %v551, %v552
        %v555 = vsub.f32 %v434, %v553
        %v556 = vsub.f32 %v435, %v554
        %v557 = vmul.f32 %v555, %v555
        %v558 = vmul.f32 %v556, %v556
        %v559 = vsel %vm545, %v557, 0.0
        %560 = vadd.xlane.f32.xlu0 %v559
        %v561 = vpop.xlane.xlu0 %560
        %v562 = vsel %vm545, %v558, 0.0
        %563 = vadd.xlane.f32.xlu0 %v562
        %v564 = vpop.xlane.xlu0 %563
        %v565 = vmul.f32 %v561, %v552
        %v566 = vmul.f32 %v564, %v552
        %v567 = vadd.f32 %v565, 1e-05
        %v568 = vadd.f32 %v566, 1e-05
        %v569 = vrsqrt.pop %v567
        %v570 = vrsqrt.pop %v568
        %v571 = vmul.f32 %v555, %v569
        %v572 = vmul.f32 %v556, %v570
        %v573 = vlaneseq
        %v574 = vshrl.u32 %v573, 7
        %v575 = vsub.s32 0, %v574
        %v576 = vrot.slane %v433, %v575
        %v577 = vmul.f32 %v571, %v576
        %v578 = vmul.f32 %v572, %v576
        %v579 = vlaneseq
        %v580 = vshrl.u32 %v579, 7
        %v581 = vsub.s32 1, %v580
        %v582 = vrot.slane %v433, %v581
        %v583 = vadd.f32 %v577, %v582
        %v584 = vadd.f32 %v578, %v582
        %v585 = vpack.c.bf16 %v584, %v583
        %v610 = vunpack.c.l.b16 %v436
        %v611 = vunpack.c.h.b16 %v436
        %v612 = vunpack.c.l.b16 %v437
        %v613 = vunpack.c.h.b16 %v437
        %v614 = vunpack.c.l.b16 %v438
        %v615 = vunpack.c.h.b16 %v438
        %v616 = vunpack.c.l.b16 %v439
        %v617 = vunpack.c.h.b16 %v439
        %v618 = vunpack.c.l.b16 %v440
        %v619 = vunpack.c.h.b16 %v440
        %v620 = vunpack.c.l.b16 %v441
        %v621 = vunpack.c.h.b16 %v441
        %v622 = vunpack.c.l.b16 %v442
        %v623 = vunpack.c.h.b16 %v442
        %v624 = vunpack.c.l.b16 %v443
        %v625 = vunpack.c.h.b16 %v443
        %v626 = vunpack.c.l.b16 %v444
        %v627 = vunpack.c.h.b16 %v444
        %v628 = vunpack.c.l.b16 %v445
        %v629 = vunpack.c.h.b16 %v445
        %v630 = vunpack.c.l.b16 %v446
        %v631 = vunpack.c.h.b16 %v446
        %v632 = vunpack.c.l.b16 %v447
        %v633 = vunpack.c.h.b16 %v447
        %v634 = vunpack.c.l.b16 %v448
        %v635 = vunpack.c.h.b16 %v448
        %v636 = vunpack.c.l.b16 %v449
        %v637 = vunpack.c.h.b16 %v449
        %v638 = vunpack.c.l.b16 %v450
        %v639 = vunpack.c.h.b16 %v450
        %v640 = vunpack.c.l.b16 %v451
        %v641 = vunpack.c.h.b16 %v451
        %v642 = vunpack.c.l.b16 %v452
        %v643 = vunpack.c.h.b16 %v452
        %v644 = vunpack.c.l.b16 %v453
        %v645 = vunpack.c.h.b16 %v453
        %v646 = vunpack.c.l.b16 %v454
        %v647 = vunpack.c.h.b16 %v454
        %v648 = vunpack.c.l.b16 %v455
        %v649 = vunpack.c.h.b16 %v455
        %v650 = vunpack.c.l.b16 %v456
        %v651 = vunpack.c.h.b16 %v456
        %v652 = vunpack.c.l.b16 %v457
        %v653 = vunpack.c.h.b16 %v457
        %v654 = vunpack.c.l.b16 %v458
        %v655 = vunpack.c.h.b16 %v458
        %v656 = vunpack.c.l.b16 %v459
        %v657 = vunpack.c.h.b16 %v459
        %v658 = vpack.c.b16 %v622, %v610
        %v659 = vpack.c.b16 %v623, %v611
        %v660 = vpack.c.b16 %v624, %v612
        %v661 = vpack.c.b16 %v625, %v613
        %v662 = vpack.c.b16 %v626, %v614
        %v663 = vpack.c.b16 %v627, %v615
        %v664 = vpack.c.b16 %v628, %v616
        %v665 = vpack.c.b16 %v629, %v617
        %v666 = vpack.c.b16 %v630, %v618
        %v667 = vpack.c.b16 %v631, %v619
        %v668 = vpack.c.b16 %v632, %v620
        %v669 = vpack.c.b16 %v633, %v621
        %v670 = vpack.c.b16 %v646, %v634
        %v671 = vpack.c.b16 %v647, %v635
        %v672 = vpack.c.b16 %v648, %v636
        %v673 = vpack.c.b16 %v649, %v637
        %v674 = vpack.c.b16 %v650, %v638
        %v675 = vpack.c.b16 %v651, %v639
        %v676 = vpack.c.b16 %v652, %v640
        %v677 = vpack.c.b16 %v653, %v641
        %v678 = vpack.c.b16 %v654, %v642
        %v679 = vpack.c.b16 %v655, %v643
        %v680 = vpack.c.b16 %v656, %v644
        %v681 = vpack.c.b16 %v657, %v645
        %v707 = vsel %vm545, %v585, 0
        %709 = vmatprep.subr.bf16.mxu0 %v659
        %710 = vmatpush1.bf16.msra.mxu0 %v658
        %711 = vmatprep.subr.bf16.mxu0 %v671
        %712 = vmatpush1.bf16.msra.mxu0 %v670
        %713 = vmatprep.subr.bf16.mxu0 0
        %714 = vmatpush1.bf16.msra.mxu0 0
        %715 = vmatprep.subr.bf16.mxu0 0
        %716 = vmatpush1.bf16.msra.mxu0 0
        %717 = vmatprep.subr.bf16.mxu0 0
        %718 = vmatpush1.bf16.msra.mxu0 0
        %719 = vmatprep.subr.bf16.mxu0 0
        %720 = vmatpush1.bf16.msra.mxu0 0
        %721 = vmatprep.subr.bf16.mxu0 0
        %722 = vmatpush1.bf16.msra.mxu0 0
        %723 = vmatprep.subr.bf16.mxu0 0
        %724 = vmatpush1.bf16.msra.mxu0 0
        %725 = vmatprep.subr.bf16.mxu0 0
        %726 = vmatpush1.bf16.msra.mxu0 0
        %727 = vmatprep.subr.bf16.mxu0 0
        %728 = vmatpush1.bf16.msra.mxu0 0
        %729 = vmatprep.subr.bf16.mxu0 0
        %730 = vmatpush1.bf16.msra.mxu0 0
        %731 = vmatprep.subr.bf16.mxu0 0
        %732 = vmatpush1.bf16.msra.mxu0 0
        %733 = vmatprep.subr.bf16.mxu0 0
        %734 = vmatpush1.bf16.msra.mxu0 0
        %735 = vmatprep.subr.bf16.mxu0 0
        %736 = vmatpush1.bf16.msra.mxu0 0
        %737 = vmatprep.subr.bf16.mxu0 0
        %738 = vmatpush1.bf16.msra.mxu0 0
        %739 = vmatprep.subr.bf16.mxu0 0
        %740 = vmatpush1.bf16.msra.mxu0 0
        %741 = vmatprep.mubr.bf16.mxu0 0
        %742 = vmatmul.mubr.bf16.gmra.mrb[0].mxu0 %v707
        %v743 = vpop.f32.mrb[0].mxu0
        %v744 = vadd.f32 0.0, %v743
        %v745 = vpop.f32.mrb[0].mxu0
        %v746 = vadd.f32 0.0, %v745
        %v747 = vpop.f32.mrb[0].mxu0
        %v748 = vadd.f32 0.0, %v747
        %v749 = vpop.f32.mrb[0].mxu0
        %v750 = vadd.f32 0.0, %v749
        %751 = vdwg.mxu0
        %752 = vmatprep.subr.bf16.mxu0 %v661
        %753 = vmatpush1.bf16.msra.mxu0 %v660
        %754 = vmatprep.subr.bf16.mxu0 %v673
        %755 = vmatpush1.bf16.msra.mxu0 %v672
        %756 = vmatprep.subr.bf16.mxu0 0
        %757 = vmatpush1.bf16.msra.mxu0 0
        %758 = vmatprep.subr.bf16.mxu0 0
        %759 = vmatpush1.bf16.msra.mxu0 0
        %760 = vmatprep.subr.bf16.mxu0 0
        %761 = vmatpush1.bf16.msra.mxu0 0
        %762 = vmatprep.subr.bf16.mxu0 0
        %763 = vmatpush1.bf16.msra.mxu0 0
        %764 = vmatprep.subr.bf16.mxu0 0
        %765 = vmatpush1.bf16.msra.mxu0 0
        %766 = vmatprep.subr.bf16.mxu0 0
        %767 = vmatpush1.bf16.msra.mxu0 0
        %768 = vmatprep.subr.bf16.mxu0 0
        %769 = vmatpush1.bf16.msra.mxu0 0
        %770 = vmatprep.subr.bf16.mxu0 0
        %771 = vmatpush1.bf16.msra.mxu0 0
        %772 = vmatprep.subr.bf16.mxu0 0
        %773 = vmatpush1.bf16.msra.mxu0 0
        %774 = vmatprep.subr.bf16.mxu0 0
        %775 = vmatpush1.bf16.msra.mxu0 0
        %776 = vmatprep.subr.bf16.mxu0 0
        %777 = vmatpush1.bf16.msra.mxu0 0
        %778 = vmatprep.subr.bf16.mxu0 0
        %779 = vmatpush1.bf16.msra.mxu0 0
        %780 = vmatprep.subr.bf16.mxu0 0
        %781 = vmatpush1.bf16.msra.mxu0 0
        %782 = vmatprep.subr.bf16.mxu0 0
        %783 = vmatpush1.bf16.msra.mxu0 0
        %784 = vmatprep.mubr.bf16.mxu0 0
        %785 = vmatmul.mubr.bf16.gmra.mrb[0].mxu0 %v707
        %v786 = vpop.f32.mrb[0].mxu0
        %v787 = vadd.f32 0.0, %v786
        %v788 = vpop.f32.mrb[0].mxu0
        %v789 = vadd.f32 0.0, %v788
        %v790 = vpop.f32.mrb[0].mxu0
        %v791 = vadd.f32 0.0, %v790
        %v792 = vpop.f32.mrb[0].mxu0
        %v793 = vadd.f32 0.0, %v792
        %794 = vdwg.mxu0
        %795 = vmatprep.subr.bf16.mxu0 %v663
        %796 = vmatpush1.bf16.msra.mxu0 %v662
        %797 = vmatprep.subr.bf16.mxu0 %v675
        %798 = vmatpush1.bf16.msra.mxu0 %v674
        %799 = vmatprep.subr.bf16.mxu0 0
        %800 = vmatpush1.bf16.msra.mxu0 0
        %801 = vmatprep.subr.bf16.mxu0 0
        %802 = vmatpush1.bf16.msra.mxu0 0
        %803 = vmatprep.subr.bf16.mxu0 0
        %804 = vmatpush1.bf16.msra.mxu0 0
        %805 = vmatprep.subr.bf16.mxu0 0
        %806 = vmatpush1.bf16.msra.mxu0 0
        %807 = vmatprep.subr.bf16.mxu0 0
        %808 = vmatpush1.bf16.msra.mxu0 0
        %809 = vmatprep.subr.bf16.mxu0 0
        %810 = vmatpush1.bf16.msra.mxu0 0
        %811 = vmatprep.subr.bf16.mxu0 0
        %812 = vmatpush1.bf16.msra.mxu0 0
        %813 = vmatprep.subr.bf16.mxu0 0
        %814 = vmatpush1.bf16.msra.mxu0 0
        %815 = vmatprep.subr.bf16.mxu0 0
        %816 = vmatpush1.bf16.msra.mxu0 0
        %817 = vmatprep.subr.bf16.mxu0 0
        %818 = vmatpush1.bf16.msra.mxu0 0
        %819 = vmatprep.subr.bf16.mxu0 0
        %820 = vmatpush1.bf16.msra.mxu0 0
        %821 = vmatprep.subr.bf16.mxu0 0
        %822 = vmatpush1.bf16.msra.mxu0 0
        %823 = vmatprep.subr.bf16.mxu0 0
        %824 = vmatpush1.bf16.msra.mxu0 0
        %825 = vmatprep.subr.bf16.mxu0 0
        %826 = vmatpush1.bf16.msra.mxu0 0
        %827 = vmatprep.mubr.bf16.mxu0 0
        %828 = vmatmul.mubr.bf16.gmra.mrb[0].mxu0 %v707
        %v829 = vpop.f32.mrb[0].mxu0
        %v830 = vadd.f32 0.0, %v829
        %v831 = vpop.f32.mrb[0].mxu0
        %v832 = vadd.f32 0.0, %v831
        %v833 = vpop.f32.mrb[0].mxu0
        %v834 = vadd.f32 0.0, %v833
        %v835 = vpop.f32.mrb[0].mxu0
        %v836 = vadd.f32 0.0, %v835
        %837 = vdwg.mxu0
        %838 = vmatprep.subr.bf16.mxu0 %v665
        %839 = vmatpush1.bf16.msra.mxu0 %v664
        %840 = vmatprep.subr.bf16.mxu0 %v677
        %841 = vmatpush1.bf16.msra.mxu0 %v676
        %842 = vmatprep.subr.bf16.mxu0 0
        %843 = vmatpush1.bf16.msra.mxu0 0
        %844 = vmatprep.subr.bf16.mxu0 0
        %845 = vmatpush1.bf16.msra.mxu0 0
        %846 = vmatprep.subr.bf16.mxu0 0
        %847 = vmatpush1.bf16.msra.mxu0 0
        %848 = vmatprep.subr.bf16.mxu0 0
        %849 = vmatpush1.bf16.msra.mxu0 0
        %850 = vmatprep.subr.bf16.mxu0 0
        %851 = vmatpush1.bf16.msra.mxu0 0
        %852 = vmatprep.subr.bf16.mxu0 0
        %853 = vmatpush1.bf16.msra.mxu0 0
        %854 = vmatprep.subr.bf16.mxu0 0
        %855 = vmatpush1.bf16.msra.mxu0 0
        %856 = vmatprep.subr.bf16.mxu0 0
        %857 = vmatpush1.bf16.msra.mxu0 0
        %858 = vmatprep.subr.bf16.mxu0 0
        %859 = vmatpush1.bf16.msra.mxu0 0
        %860 = vmatprep.subr.bf16.mxu0 0
        %861 = vmatpush1.bf16.msra.mxu0 0
        %862 = vmatprep.subr.bf16.mxu0 0
        %863 = vmatpush1.bf16.msra.mxu0 0
        %864 = vmatprep.subr.bf16.mxu0 0
        %865 = vmatpush1.bf16.msra.mxu0 0
        %866 = vmatprep.subr.bf16.mxu0 0
        %867 = vmatpush1.bf16.msra.mxu0 0
        %868 = vmatprep.subr.bf16.mxu0 0
        %869 = vmatpush1.bf16.msra.mxu0 0
        %870 = vmatprep.mubr.bf16.mxu0 0
        %871 = vmatmul.mubr.bf16.gmra.mrb[0].mxu0 %v707
        %v872 = vpop.f32.mrb[0].mxu0
        %v873 = vadd.f32 0.0, %v872
        %v874 = vpop.f32.mrb[0].mxu0
        %v875 = vadd.f32 0.0, %v874
        %v876 = vpop.f32.mrb[0].mxu0
        %v877 = vadd.f32 0.0, %v876
        %v878 = vpop.f32.mrb[0].mxu0
        %v879 = vadd.f32 0.0, %v878
        %880 = vdwg.mxu0
        %881 = vmatprep.subr.bf16.mxu0 %v667
        %882 = vmatpush1.bf16.msra.mxu0 %v666
        %883 = vmatprep.subr.bf16.mxu0 %v679
        %884 = vmatpush1.bf16.msra.mxu0 %v678
        %885 = vmatprep.subr.bf16.mxu0 0
        %886 = vmatpush1.bf16.msra.mxu0 0
        %887 = vmatprep.subr.bf16.mxu0 0
        %888 = vmatpush1.bf16.msra.mxu0 0
        %889 = vmatprep.subr.bf16.mxu0 0
        %890 = vmatpush1.bf16.msra.mxu0 0
        %891 = vmatprep.subr.bf16.mxu0 0
        %892 = vmatpush1.bf16.msra.mxu0 0
        %893 = vmatprep.subr.bf16.mxu0 0
        %894 = vmatpush1.bf16.msra.mxu0 0
        %895 = vmatprep.subr.bf16.mxu0 0
        %896 = vmatpush1.bf16.msra.mxu0 0
        %897 = vmatprep.subr.bf16.mxu0 0
        %898 = vmatpush1.bf16.msra.mxu0 0
        %899 = vmatprep.subr.bf16.mxu0 0
        %900 = vmatpush1.bf16.msra.mxu0 0
        %901 = vmatprep.subr.bf16.mxu0 0
        %902 = vmatpush1.bf16.msra.mxu0 0
        %903 = vmatprep.subr.bf16.mxu0 0
        %904 = vmatpush1.bf16.msra.mxu0 0
        %905 = vmatprep.subr.bf16.mxu0 0
        %906 = vmatpush1.bf16.msra.mxu0 0
        %907 = vmatprep.subr.bf16.mxu0 0
        %908 = vmatpush1.bf16.msra.mxu0 0
        %909 = vmatprep.subr.bf16.mxu0 0
        %910 = vmatpush1.bf16.msra.mxu0 0
        %911 = vmatprep.subr.bf16.mxu0 0
        %912 = vmatpush1.bf16.msra.mxu0 0
        %913 = vmatprep.mubr.bf16.mxu0 0
        %914 = vmatmul.mubr.bf16.gmra.mrb[0].mxu0 %v707
        %v915 = vpop.f32.mrb[0].mxu0
        %v916 = vadd.f32 0.0, %v915
        %v917 = vpop.f32.mrb[0].mxu0
        %v918 = vadd.f32 0.0, %v917
        %v919 = vpop.f32.mrb[0].mxu0
        %v920 = vadd.f32 0.0, %v919
        %v921 = vpop.f32.mrb[0].mxu0
        %v922 = vadd.f32 0.0, %v921
        %923 = vdwg.mxu0
        %924 = vmatprep.subr.bf16.mxu0 %v669
        %925 = vmatpush1.bf16.msra.mxu0 %v668
        %926 = vmatprep.subr.bf16.mxu0 %v681
        %927 = vmatpush1.bf16.msra.mxu0 %v680
        %928 = vmatprep.subr.bf16.mxu0 0
        %929 = vmatpush1.bf16.msra.mxu0 0
        %930 = vmatprep.subr.bf16.mxu0 0
        %931 = vmatpush1.bf16.msra.mxu0 0
        %932 = vmatprep.subr.bf16.mxu0 0
        %933 = vmatpush1.bf16.msra.mxu0 0
        %934 = vmatprep.subr.bf16.mxu0 0
        %935 = vmatpush1.bf16.msra.mxu0 0
        %936 = vmatprep.subr.bf16.mxu0 0
        %937 = vmatpush1.bf16.msra.mxu0 0
        %938 = vmatprep.subr.bf16.mxu0 0
        %939 = vmatpush1.bf16.msra.mxu0 0
        %940 = vmatprep.subr.bf16.mxu0 0
        %941 = vmatpush1.bf16.msra.mxu0 0
        %942 = vmatprep.subr.bf16.mxu0 0
        %943 = vmatpush1.bf16.msra.mxu0 0
        %944 = vmatprep.subr.bf16.mxu0 0
        %945 = vmatpush1.bf16.msra.mxu0 0
        %946 = vmatprep.subr.bf16.mxu0 0
        %947 = vmatpush1.bf16.msra.mxu0 0
        %948 = vmatprep.subr.bf16.mxu0 0
        %949 = vmatpush1.bf16.msra.mxu0 0
        %950 = vmatprep.subr.bf16.mxu0 0
        %951 = vmatpush1.bf16.msra.mxu0 0
        %952 = vmatprep.subr.bf16.mxu0 0
        %953 = vmatpush1.bf16.msra.mxu0 0
        %954 = vmatprep.subr.bf16.mxu0 0
        %955 = vmatpush1.bf16.msra.mxu0 0
        %956 = vmatprep.mubr.bf16.mxu0 0
        %957 = vmatmul.mubr.bf16.gmra.mrb[0].mxu0 %v707
        %v958 = vpop.f32.mrb[0].mxu0
        %v959 = vadd.f32 0.0, %v958
        %v960 = vpop.f32.mrb[0].mxu0
        %v961 = vadd.f32 0.0, %v960
        %v962 = vpop.f32.mrb[0].mxu0
        %v963 = vadd.f32 0.0, %v962
        %v964 = vpop.f32.mrb[0].mxu0
        %v965 = vadd.f32 0.0, %v964
        %966 = vdwg.mxu0
        %vm967 = vcmask 523264
        %v969 = vsel %vm967, %v744, 0
        %v972 = vsel %vm967, %v830, 0
        %974 = vmatprep.subr.mxu0 0.0
        %975 = vmatpush1.xpose.msra.mxu0 %v972
        %976 = vmatprep.subr.mxu0 0.0
        %977 = vmatpush1.xpose.msra.mxu0 0.0
        %978 = vmatprep.subr.mxu0 0.0
        %979 = vmatpush1.xpose.msra.mxu0 0.0
        %980 = vmatprep.subr.mxu0 0.0
        %981 = vmatpush1.xpose.msra.mxu0 0.0
        %982 = vmatprep.subr.mxu0 0.0
        %983 = vmatpush1.xpose.msra.mxu0 0.0
        %984 = vmatprep.subr.mxu0 0.0
        %985 = vmatpush1.xpose.msra.mxu0 0.0
        %986 = vmatprep.subr.mxu0 0.0
        %987 = vmatpush1.xpose.msra.mxu0 0.0
        %988 = vmatprep.subr.mxu0 0.0
        %989 = vmatpush1.xpose.msra.mxu0 0.0
        %990 = vmatprep.subr.mxu0 0.0
        %991 = vmatpush1.xpose.msra.mxu0 0.0
        %992 = vmatprep.subr.mxu0 0.0
        %993 = vmatpush1.xpose.msra.mxu0 0.0
        %994 = vmatprep.subr.mxu0 0.0
        %995 = vmatpush1.xpose.msra.mxu0 0.0
        %996 = vmatprep.subr.mxu0 0.0
        %997 = vmatpush1.xpose.msra.mxu0 0.0
        %998 = vmatprep.subr.mxu0 0.0
        %999 = vmatpush1.xpose.msra.mxu0 0.0
        %1000 = vmatprep.subr.mxu0 0.0
        %1001 = vmatpush1.xpose.msra.mxu0 0.0
        %1002 = vmatprep.subr.mxu0 0.0
        %1003 = vmatpush1.xpose.msra.mxu0 0.0
        %1004 = vmatprep.subr.mxu0 0.0
        %1005 = vmatpush1.xpose.msra.mxu0 0.0
        %1006 = vmatprep.subr.mxu0 0.0
        %1007 = vmatpush1.xpose.msra.mxu0 0.0
        %1008 = vmatprep.subr.mxu0 0.0
        %1009 = vmatpush1.xpose.msra.mxu0 0.0
        %1010 = vmatprep.subr.mxu0 0.0
        %1011 = vmatpush1.xpose.msra.mxu0 0.0
        %1012 = vmatprep.subr.mxu0 0.0
        %1013 = vmatpush1.xpose.msra.mxu0 0.0
        %1014 = vmatprep.subr.mxu0 0.0
        %1015 = vmatpush1.xpose.msra.mxu0 0.0
        %1016 = vmatprep.subr.mxu0 0.0
        %1017 = vmatpush1.xpose.msra.mxu0 0.0
        %1018 = vmatprep.subr.mxu0 0.0
        %1019 = vmatpush1.xpose.msra.mxu0 0.0
        %1020 = vmatprep.subr.mxu0 0.0
        %1021 = vmatpush1.xpose.msra.mxu0 0.0
        %1022 = vmatprep.subr.mxu0 0.0
        %1023 = vmatpush1.xpose.msra.mxu0 0.0
        %1024 = vmatprep.subr.mxu0 0.0
        %1025 = vmatpush1.xpose.msra.mxu0 0.0
        %1026 = vmatprep.subr.mxu0 0.0
        %1027 = vmatpush1.xpose.msra.mxu0 0.0
        %1028 = vmatprep.subr.mxu0 0.0
        %1029 = vmatpush1.xpose.msra.mxu0 0.0
        %1030 = vmatprep.subr.mxu0 0.0
        %1031 = vmatpush1.xpose.msra.mxu0 0.0
        %1032 = vmatprep.subr.mxu0 0.0
        %1033 = vmatpush1.xpose.msra.mxu0 0.0
        %1034 = vmatprep.subr.mxu0 0.0
        %1035 = vmatpush1.xpose.msra.mxu0 0.0
        %1036 = vmatprep.subr.mxu0 0.0
        %1037 = vmatpush1.xpose.msra.mxu0 0.0
        %1038 = vmatprep.mubr.f32.mxu0 0.0
        %1039 = vmatmul.mubr.f32.gmra.mrb[0].mxu0 %v969
        %v1040 = vpop.f32.mrb[0].mxu0
        %v1041 = vadd.f32 0.0, %v1040
        %v1042 = vpop.f32.mrb[0].mxu0
        %1043 = vdwg.mxu0
        %v1045 = vsel %vm967, %v748, 0
        %v1048 = vsel %vm967, %v834, 0
        %1050 = vmatprep.subr.mxu0 0.0
        %1051 = vmatpush1.xpose.msra.mxu0 %v1048
        %1052 = vmatprep.subr.mxu0 0.0
        %1053 = vmatpush1.xpose.msra.mxu0 0.0
        %1054 = vmatprep.subr.mxu0 0.0
        %1055 = vmatpush1.xpose.msra.mxu0 0.0
        %1056 = vmatprep.subr.mxu0 0.0
        %1057 = vmatpush1.xpose.msra.mxu0 0.0
        %1058 = vmatprep.subr.mxu0 0.0
        %1059 = vmatpush1.xpose.msra.mxu0 0.0
        %1060 = vmatprep.subr.mxu0 0.0
        %1061 = vmatpush1.xpose.msra.mxu0 0.0
        %1062 = vmatprep.subr.mxu0 0.0
        %1063 = vmatpush1.xpose.msra.mxu0 0.0
        %1064 = vmatprep.subr.mxu0 0.0
        %1065 = vmatpush1.xpose.msra.mxu0 0.0
        %1066 = vmatprep.subr.mxu0 0.0
        %1067 = vmatpush1.xpose.msra.mxu0 0.0
        %1068 = vmatprep.subr.mxu0 0.0
        %1069 = vmatpush1.xpose.msra.mxu0 0.0
        %1070 = vmatprep.subr.mxu0 0.0
        %1071 = vmatpush1.xpose.msra.mxu0 0.0
        %1072 = vmatprep.subr.mxu0 0.0
        %1073 = vmatpush1.xpose.msra.mxu0 0.0
        %1074 = vmatprep.subr.mxu0 0.0
        %1075 = vmatpush1.xpose.msra.mxu0 0.0
        %1076 = vmatprep.subr.mxu0 0.0
        %1077 = vmatpush1.xpose.msra.mxu0 0.0
        %1078 = vmatprep.subr.mxu0 0.0
        %1079 = vmatpush1.xpose.msra.mxu0 0.0
        %1080 = vmatprep.subr.mxu0 0.0
        %1081 = vmatpush1.xpose.msra.mxu0 0.0
        %1082 = vmatprep.subr.mxu0 0.0
        %1083 = vmatpush1.xpose.msra.mxu0 0.0
        %1084 = vmatprep.subr.mxu0 0.0
        %1085 = vmatpush1.xpose.msra.mxu0 0.0
        %1086 = vmatprep.subr.mxu0 0.0
        %1087 = vmatpush1.xpose.msra.mxu0 0.0
        %1088 = vmatprep.subr.mxu0 0.0
        %1089 = vmatpush1.xpose.msra.mxu0 0.0
        %1090 = vmatprep.subr.mxu0 0.0
        %1091 = vmatpush1.xpose.msra.mxu0 0.0
        %1092 = vmatprep.subr.mxu0 0.0
        %1093 = vmatpush1.xpose.msra.mxu0 0.0
        %1094 = vmatprep.subr.mxu0 0.0
        %1095 = vmatpush1.xpose.msra.mxu0 0.0
        %1096 = vmatprep.subr.mxu0 0.0
        %1097 = vmatpush1.xpose.msra.mxu0 0.0
        %1098 = vmatprep.subr.mxu0 0.0
        %1099 = vmatpush1.xpose.msra.mxu0 0.0
        %1100 = vmatprep.subr.mxu0 0.0
        %1101 = vmatpush1.xpose.msra.mxu0 0.0
        %1102 = vmatprep.subr.mxu0 0.0
        %1103 = vmatpush1.xpose.msra.mxu0 0.0
        %1104 = vmatprep.subr.mxu0 0.0
        %1105 = vmatpush1.xpose.msra.mxu0 0.0
        %1106 = vmatprep.subr.mxu0 0.0
        %1107 = vmatpush1.xpose.msra.mxu0 0.0
        %1108 = vmatprep.subr.mxu0 0.0
        %1109 = vmatpush1.xpose.msra.mxu0 0.0
        %1110 = vmatprep.subr.mxu0 0.0
        %1111 = vmatpush1.xpose.msra.mxu0 0.0
        %1112 = vmatprep.subr.mxu0 0.0
        %1113 = vmatpush1.xpose.msra.mxu0 0.0
        %1114 = vmatprep.mubr.f32.mxu0 0.0
        %1115 = vmatmul.mubr.f32.gmra.mrb[0].mxu0 %v1045
        %v1116 = vpop.f32.mrb[0].mxu0
        %v1117 = vadd.f32 0.0, %v1116
        %v1118 = vpop.f32.mrb[0].mxu0
        %1119 = vdwg.mxu0
        %v1120 = vmul.f32 %v1041, 0.125
        %v1121 = vmul.f32 %v1117, 0.125
        %vm1122 = vcmask 64512
        %v1123 = vsel %vm1122, %v1120, -inf
        %1124 = vmax.xlane.f32.xlu0 %v1123
        %v1125 = vpop.xlane.xlu0 %1124
        %v1126 = vsel %vm1122, %v1121, -inf
        %1127 = vmax.xlane.f32.xlu0 %v1126
        %v1128 = vpop.xlane.xlu0 %1127
        %v1129 = vsub.f32 %v1120, %v1125
        %v1130 = vsub.f32 %v1121, %v1128
        %v1131 = vmul.f32 %v1129, 1.442695
        %v1132 = vpow.pop %v1131
        %v1133 = vmul.f32 %v1130, 1.442695
        %v1134 = vpow.pop %v1133
        %v1135 = vsel %vm1122, %v1132, 0.0
        %1136 = vadd.xlane.f32.xlu0 %v1135
        %v1137 = vpop.xlane.xlu0 %1136
        %v1138 = vsel %vm1122, %v1134, 0.0
        %1139 = vadd.xlane.f32.xlu0 %v1138
        %v1140 = vpop.xlane.xlu0 %1139
        %v1141 = vrcp.pop %v1137
        %v1142 = vrcp.pop %v1140
        %v1143 = vmul.f32 %v1132, %v1141
        %v1144 = vmul.f32 %v1134, %v1142
        %v1146 = vsel %vm1122, %v1143, 0
        %1148 = vmatprep.subr.mxu0 0.0
        %1149 = vmatpush1.msra.mxu0 %v916
        %1150 = vmatprep.subr.mxu0 0.0
        %1151 = vmatpush1.msra.mxu0 0.0
        %1152 = vmatprep.subr.mxu0 0.0
        %1153 = vmatpush1.msra.mxu0 0.0
        %1154 = vmatprep.subr.mxu0 0.0
        %1155 = vmatpush1.msra.mxu0 0.0
        %1156 = vmatprep.subr.mxu0 0.0
        %1157 = vmatpush1.msra.mxu0 0.0
        %1158 = vmatprep.subr.mxu0 0.0
        %1159 = vmatpush1.msra.mxu0 0.0
        %1160 = vmatprep.subr.mxu0 0.0
        %1161 = vmatpush1.msra.mxu0 0.0
        %1162 = vmatprep.subr.mxu0 0.0
        %1163 = vmatpush1.msra.mxu0 0.0
        %1164 = vmatprep.subr.mxu0 0.0
        %1165 = vmatpush1.msra.mxu0 0.0
        %1166 = vmatprep.subr.mxu0 0.0
        %1167 = vmatpush1.msra.mxu0 0.0
        %1168 = vmatprep.subr.mxu0 0.0
        %1169 = vmatpush1.msra.mxu0 0.0
        %1170 = vmatprep.subr.mxu0 0.0
        %1171 = vmatpush1.msra.mxu0 0.0
        %1172 = vmatprep.subr.mxu0 0.0
        %1173 = vmatpush1.msra.mxu0 0.0
        %1174 = vmatprep.subr.mxu0 0.0
        %1175 = vmatpush1.msra.mxu0 0.0
        %1176 = vmatprep.subr.mxu0 0.0
        %1177 = vmatpush1.msra.mxu0 0.0
        %1178 = vmatprep.subr.mxu0 0.0
        %1179 = vmatpush1.msra.mxu0 0.0
        %1180 = vmatprep.subr.mxu0 0.0
        %1181 = vmatpush1.msra.mxu0 0.0
        %1182 = vmatprep.subr.mxu0 0.0
        %1183 = vmatpush1.msra.mxu0 0.0
        %1184 = vmatprep.subr.mxu0 0.0
        %1185 = vmatpush1.msra.mxu0 0.0
        %1186 = vmatprep.subr.mxu0 0.0
        %1187 = vmatpush1.msra.mxu0 0.0
        %1188 = vmatprep.subr.mxu0 0.0
        %1189 = vmatpush1.msra.mxu0 0.0
        %1190 = vmatprep.subr.mxu0 0.0
        %1191 = vmatpush1.msra.mxu0 0.0
        %1192 = vmatprep.subr.mxu0 0.0
        %1193 = vmatpush1.msra.mxu0 0.0
        %1194 = vmatprep.subr.mxu0 0.0
        %1195 = vmatpush1.msra.mxu0 0.0
        %1196 = vmatprep.subr.mxu0 0.0
        %1197 = vmatpush1.msra.mxu0 0.0
        %1198 = vmatprep.subr.mxu0 0.0
        %1199 = vmatpush1.msra.mxu0 0.0
        %1200 = vmatprep.subr.mxu0 0.0
        %1201 = vmatpush1.msra.mxu0 0.0
        %1202 = vmatprep.subr.mxu0 0.0
        %1203 = vmatpush1.msra.mxu0 0.0
        %1204 = vmatprep.subr.mxu0 0.0
        %1205 = vmatpush1.msra.mxu0 0.0
        %1206 = vmatprep.subr.mxu0 0.0
        %1207 = vmatpush1.msra.mxu0 0.0
        %1208 = vmatprep.subr.mxu0 0.0
        %1209 = vmatpush1.msra.mxu0 0.0
        %1210 = vmatprep.subr.mxu0 0.0
        %1211 = vmatpush1.msra.mxu0 0.0
        %1212 = vmatprep.mubr.f32.mxu0 0.0
        %1213 = vmatmul.mubr.f32.gmra.mrb[0].mxu0 %v1146
        %v1214 = vpop.f32.mrb[0].mxu0
        %v1215 = vadd.f32 0.0, %v1214
        %v1216 = vpop.f32.mrb[0].mxu0
        %1217 = vdwg.mxu0
        %v1219 = vsel %vm1122, %v1144, 0
        %1221 = vmatprep.subr.mxu0 0.0
        %1222 = vmatpush1.msra.mxu0 %v920
        %1223 = vmatprep.subr.mxu0 0.0
        %1224 = vmatpush1.msra.mxu0 0.0
        %1225 = vmatprep.subr.mxu0 0.0
        %1226 = vmatpush1.msra.mxu0 0.0
        %1227 = vmatprep.subr.mxu0 0.0
        %1228 = vmatpush1.msra.mxu0 0.0
        %1229 = vmatprep.subr.mxu0 0.0
        %1230 = vmatpush1.msra.mxu0 0.0
        %1231 = vmatprep.subr.mxu0 0.0
        %1232 = vmatpush1.msra.mxu0 0.0
        %1233 = vmatprep.subr.mxu0 0.0
        %1234 = vmatpush1.msra.mxu0 0.0
        %1235 = vmatprep.subr.mxu0 0.0
        %1236 = vmatpush1.msra.mxu0 0.0
        %1237 = vmatprep.subr.mxu0 0.0
        %1238 = vmatpush1.msra.mxu0 0.0
        %1239 = vmatprep.subr.mxu0 0.0
        %1240 = vmatpush1.msra.mxu0 0.0
        %1241 = vmatprep.subr.mxu0 0.0
        %1242 = vmatpush1.msra.mxu0 0.0
        %1243 = vmatprep.subr.mxu0 0.0
        %1244 = vmatpush1.msra.mxu0 0.0
        %1245 = vmatprep.subr.mxu0 0.0
        %1246 = vmatpush1.msra.mxu0 0.0
        %1247 = vmatprep.subr.mxu0 0.0
        %1248 = vmatpush1.msra.mxu0 0.0
        %1249 = vmatprep.subr.mxu0 0.0
        %1250 = vmatpush1.msra.mxu0 0.0
        %1251 = vmatprep.subr.mxu0 0.0
        %1252 = vmatpush1.msra.mxu0 0.0
        %1253 = vmatprep.subr.mxu0 0.0
        %1254 = vmatpush1.msra.mxu0 0.0
        %1255 = vmatprep.subr.mxu0 0.0
        %1256 = vmatpush1.msra.mxu0 0.0
        %1257 = vmatprep.subr.mxu0 0.0
        %1258 = vmatpush1.msra.mxu0 0.0
        %1259 = vmatprep.subr.mxu0 0.0
        %1260 = vmatpush1.msra.mxu0 0.0
        %1261 = vmatprep.subr.mxu0 0.0
        %1262 = vmatpush1.msra.mxu0 0.0
        %1263 = vmatprep.subr.mxu0 0.0
        %1264 = vmatpush1.msra.mxu0 0.0
        %1265 = vmatprep.subr.mxu0 0.0
        %1266 = vmatpush1.msra.mxu0 0.0
        %1267 = vmatprep.subr.mxu0 0.0
        %1268 = vmatpush1.msra.mxu0 0.0
        %1269 = vmatprep.subr.mxu0 0.0
        %1270 = vmatpush1.msra.mxu0 0.0
        %1271 = vmatprep.subr.mxu0 0.0
        %1272 = vmatpush1.msra.mxu0 0.0
        %1273 = vmatprep.subr.mxu0 0.0
        %1274 = vmatpush1.msra.mxu0 0.0
        %1275 = vmatprep.subr.mxu0 0.0
        %1276 = vmatpush1.msra.mxu0 0.0
        %1277 = vmatprep.subr.mxu0 0.0
        %1278 = vmatpush1.msra.mxu0 0.0
        %1279 = vmatprep.subr.mxu0 0.0
        %1280 = vmatpush1.msra.mxu0 0.0
        %1281 = vmatprep.subr.mxu0 0.0
        %1282 = vmatpush1.msra.mxu0 0.0
        %1283 = vmatprep.subr.mxu0 0.0
        %1284 = vmatpush1.msra.mxu0 0.0
        %1285 = vmatprep.mubr.f32.mxu0 0.0
        %1286 = vmatmul.mubr.f32.gmra.mrb[0].mxu0 %v1219
        %v1287 = vpop.f32.mrb[0].mxu0
        %v1288 = vadd.f32 0.0, %v1287
        %v1289 = vpop.f32.mrb[0].mxu0
        %1290 = vdwg.mxu0
        %v1291 = vpack.c.bf16 %v1288, %v1215
        %1292 = vrot.lane.b32.xlu0 %v744, 64
        %v1293 = vpop.permute.xlu0 %1292
        %1294 = vrot.lane.b32.xlu0 %v830, 64
        %v1295 = vpop.permute.xlu0 %1294
        %v1296 = vsel %vm967, %v1293, 0
        %v1298 = vsel %vm967, %v1295, 0
        %1300 = vmatprep.subr.mxu0 0.0
        %1301 = vmatpush1.xpose.msra.mxu0 %v1298
        %1302 = vmatprep.subr.mxu0 0.0
        %1303 = vmatpush1.xpose.msra.mxu0 0.0
        %1304 = vmatprep.subr.mxu0 0.0
        %1305 = vmatpush1.xpose.msra.mxu0 0.0
        %1306 = vmatprep.subr.mxu0 0.0
        %1307 = vmatpush1.xpose.msra.mxu0 0.0
        %1308 = vmatprep.subr.mxu0 0.0
        %1309 = vmatpush1.xpose.msra.mxu0 0.0
        %1310 = vmatprep.subr.mxu0 0.0
        %1311 = vmatpush1.xpose.msra.mxu0 0.0
        %1312 = vmatprep.subr.mxu0 0.0
        %1313 = vmatpush1.xpose.msra.mxu0 0.0
        %1314 = vmatprep.subr.mxu0 0.0
        %1315 = vmatpush1.xpose.msra.mxu0 0.0
        %1316 = vmatprep.subr.mxu0 0.0
        %1317 = vmatpush1.xpose.msra.mxu0 0.0
        %1318 = vmatprep.subr.mxu0 0.0
        %1319 = vmatpush1.xpose.msra.mxu0 0.0
        %1320 = vmatprep.subr.mxu0 0.0
        %1321 = vmatpush1.xpose.msra.mxu0 0.0
        %1322 = vmatprep.subr.mxu0 0.0
        %1323 = vmatpush1.xpose.msra.mxu0 0.0
        %1324 = vmatprep.subr.mxu0 0.0
        %1325 = vmatpush1.xpose.msra.mxu0 0.0
        %1326 = vmatprep.subr.mxu0 0.0
        %1327 = vmatpush1.xpose.msra.mxu0 0.0
        %1328 = vmatprep.subr.mxu0 0.0
        %1329 = vmatpush1.xpose.msra.mxu0 0.0
        %1330 = vmatprep.subr.mxu0 0.0
        %1331 = vmatpush1.xpose.msra.mxu0 0.0
        %1332 = vmatprep.subr.mxu0 0.0
        %1333 = vmatpush1.xpose.msra.mxu0 0.0
        %1334 = vmatprep.subr.mxu0 0.0
        %1335 = vmatpush1.xpose.msra.mxu0 0.0
        %1336 = vmatprep.subr.mxu0 0.0
        %1337 = vmatpush1.xpose.msra.mxu0 0.0
        %1338 = vmatprep.subr.mxu0 0.0
        %1339 = vmatpush1.xpose.msra.mxu0 0.0
        %1340 = vmatprep.subr.mxu0 0.0
        %1341 = vmatpush1.xpose.msra.mxu0 0.0
        %1342 = vmatprep.subr.mxu0 0.0
        %1343 = vmatpush1.xpose.msra.mxu0 0.0
        %1344 = vmatprep.subr.mxu0 0.0
        %1345 = vmatpush1.xpose.msra.mxu0 0.0
        %1346 = vmatprep.subr.mxu0 0.0
        %1347 = vmatpush1.xpose.msra.mxu0 0.0
        %1348 = vmatprep.subr.mxu0 0.0
        %1349 = vmatpush1.xpose.msra.mxu0 0.0
        %1350 = vmatprep.subr.mxu0 0.0
        %1351 = vmatpush1.xpose.msra.mxu0 0.0
        %1352 = vmatprep.subr.mxu0 0.0
        %1353 = vmatpush1.xpose.msra.mxu0 0.0
        %1354 = vmatprep.subr.mxu0 0.0
        %1355 = vmatpush1.xpose.msra.mxu0 0.0
        %1356 = vmatprep.subr.mxu0 0.0
        %1357 = vmatpush1.xpose.msra.mxu0 0.0
        %1358 = vmatprep.subr.mxu0 0.0
        %1359 = vmatpush1.xpose.msra.mxu0 0.0
        %1360 = vmatprep.subr.mxu0 0.0
        %1361 = vmatpush1.xpose.msra.mxu0 0.0
        %1362 = vmatprep.subr.mxu0 0.0
        %1363 = vmatpush1.xpose.msra.mxu0 0.0
        %1364 = vmatprep.mubr.f32.mxu0 0.0
        %1365 = vmatmul.mubr.f32.gmra.mrb[0].mxu0 %v1296
        %v1366 = vpop.f32.mrb[0].mxu0
        %v1367 = vadd.f32 0.0, %v1366
        %v1368 = vpop.f32.mrb[0].mxu0
        %1369 = vdwg.mxu0
        %1370 = vrot.lane.b32.xlu0 %v748, 64
        %v1371 = vpop.permute.xlu0 %1370
        %1372 = vrot.lane.b32.xlu0 %v834, 64
        %v1373 = vpop.permute.xlu0 %1372
        %v1374 = vsel %vm967, %v1371, 0
        %v1376 = vsel %vm967, %v1373, 0
        %1378 = vmatprep.subr.mxu0 0.0
        %1379 = vmatpush1.xpose.msra.mxu0 %v1376
        %1380 = vmatprep.subr.mxu0 0.0
        %1381 = vmatpush1.xpose.msra.mxu0 0.0
        %1382 = vmatprep.subr.mxu0 0.0
        %1383 = vmatpush1.xpose.msra.mxu0 0.0
        %1384 = vmatprep.subr.mxu0 0.0
        %1385 = vmatpush1.xpose.msra.mxu0 0.0
        %1386 = vmatprep.subr.mxu0 0.0
        %1387 = vmatpush1.xpose.msra.mxu0 0.0
        %1388 = vmatprep.subr.mxu0 0.0
        %1389 = vmatpush1.xpose.msra.mxu0 0.0
        %1390 = vmatprep.subr.mxu0 0.0
        %1391 = vmatpush1.xpose.msra.mxu0 0.0
        %1392 = vmatprep.subr.mxu0 0.0
        %1393 = vmatpush1.xpose.msra.mxu0 0.0
        %1394 = vmatprep.subr.mxu0 0.0
        %1395 = vmatpush1.xpose.msra.mxu0 0.0
        %1396 = vmatprep.subr.mxu0 0.0
        %1397 = vmatpush1.xpose.msra.mxu0 0.0
        %1398 = vmatprep.subr.mxu0 0.0
        %1399 = vmatpush1.xpose.msra.mxu0 0.0
        %1400 = vmatprep.subr.mxu0 0.0
        %1401 = vmatpush1.xpose.msra.mxu0 0.0
        %1402 = vmatprep.subr.mxu0 0.0
        %1403 = vmatpush1.xpose.msra.mxu0 0.0
        %1404 = vmatprep.subr.mxu0 0.0
        %1405 = vmatpush1.xpose.msra.mxu0 0.0
        %1406 = vmatprep.subr.mxu0 0.0
        %1407 = vmatpush1.xpose.msra.mxu0 0.0
        %1408 = vmatprep.subr.mxu0 0.0
        %1409 = vmatpush1.xpose.msra.mxu0 0.0
        %1410 = vmatprep.subr.mxu0 0.0
        %1411 = vmatpush1.xpose.msra.mxu0 0.0
        %1412 = vmatprep.subr.mxu0 0.0
        %1413 = vmatpush1.xpose.msra.mxu0 0.0
        %1414 = vmatprep.subr.mxu0 0.0
        %1415 = vmatpush1.xpose.msra.mxu0 0.0
        %1416 = vmatprep.subr.mxu0 0.0
        %1417 = vmatpush1.xpose.msra.mxu0 0.0
        %1418 = vmatprep.subr.mxu0 0.0
        %1419 = vmatpush1.xpose.msra.mxu0 0.0
        %1420 = vmatprep.subr.mxu0 0.0
        %1421 = vmatpush1.xpose.msra.mxu0 0.0
        %1422 = vmatprep.subr.mxu0 0.0
        %1423 = vmatpush1.xpose.msra.mxu0 0.0
        %1424 = vmatprep.subr.mxu0 0.0
        %1425 = vmatpush1.xpose.msra.mxu0 0.0
        %1426 = vmatprep.subr.mxu0 0.0
        %1427 = vmatpush1.xpose.msra.mxu0 0.0
        %1428 = vmatprep.subr.mxu0 0.0
        %1429 = vmatpush1.xpose.msra.mxu0 0.0
        %1430 = vmatprep.subr.mxu0 0.0
        %1431 = vmatpush1.xpose.msra.mxu0 0.0
        %1432 = vmatprep.subr.mxu0 0.0
        %1433 = vmatpush1.xpose.msra.mxu0 0.0
        %1434 = vmatprep.subr.mxu0 0.0
        %1435 = vmatpush1.xpose.msra.mxu0 0.0
        %1436 = vmatprep.subr.mxu0 0.0
        %1437 = vmatpush1.xpose.msra.mxu0 0.0
        %1438 = vmatprep.subr.mxu0 0.0
        %1439 = vmatpush1.xpose.msra.mxu0 0.0
        %1440 = vmatprep.subr.mxu0 0.0
        %1441 = vmatpush1.xpose.msra.mxu0 0.0
        %1442 = vmatprep.mubr.f32.mxu0 0.0
        %1443 = vmatmul.mubr.f32.gmra.mrb[0].mxu0 %v1374
        %v1444 = vpop.f32.mrb[0].mxu0
        %v1445 = vadd.f32 0.0, %v1444
        %v1446 = vpop.f32.mrb[0].mxu0
        %1447 = vdwg.mxu0
        %v1448 = vmul.f32 %v1367, 0.125
        %v1449 = vmul.f32 %v1445, 0.125
        %v1450 = vsel %vm1122, %v1448, -inf
        %1451 = vmax.xlane.f32.xlu0 %v1450
        %v1452 = vpop.xlane.xlu0 %1451
        %v1453 = vsel %vm1122, %v1449, -inf
        %1454 = vmax.xlane.f32.xlu0 %v1453
        %v1455 = vpop.xlane.xlu0 %1454
        %v1456 = vsub.f32 %v1448, %v1452
        %v1457 = vsub.f32 %v1449, %v1455
        %v1458 = vmul.f32 %v1456, 1.442695
        %v1459 = vpow.pop %v1458
        %v1460 = vmul.f32 %v1457, 1.442695
        %v1461 = vpow.pop %v1460
        %v1462 = vsel %vm1122, %v1459, 0.0
        %1463 = vadd.xlane.f32.xlu0 %v1462
        %v1464 = vpop.xlane.xlu0 %1463
        %v1465 = vsel %vm1122, %v1461, 0.0
        %1466 = vadd.xlane.f32.xlu0 %v1465
        %v1467 = vpop.xlane.xlu0 %1466
        %v1468 = vrcp.pop %v1464
        %v1469 = vrcp.pop %v1467
        %v1470 = vmul.f32 %v1459, %v1468
        %v1471 = vmul.f32 %v1461, %v1469
        %1473 = vrot.lane.b32.xlu0 %v916, 64
        %v1474 = vpop.permute.xlu0 %1473
        %v1477 = vsel %vm1122, %v1470, 0
        %1479 = vmatprep.subr.mxu0 0.0
        %1480 = vmatpush1.msra.mxu0 %v1474
        %1481 = vmatprep.subr.mxu0 0.0
        %1482 = vmatpush1.msra.mxu0 0.0
        %1483 = vmatprep.subr.mxu0 0.0
        %1484 = vmatpush1.msra.mxu0 0.0
        %1485 = vmatprep.subr.mxu0 0.0
        %1486 = vmatpush1.msra.mxu0 0.0
        %1487 = vmatprep.subr.mxu0 0.0
        %1488 = vmatpush1.msra.mxu0 0.0
        %1489 = vmatprep.subr.mxu0 0.0
        %1490 = vmatpush1.msra.mxu0 0.0
        %1491 = vmatprep.subr.mxu0 0.0
        %1492 = vmatpush1.msra.mxu0 0.0
        %1493 = vmatprep.subr.mxu0 0.0
        %1494 = vmatpush1.msra.mxu0 0.0
        %1495 = vmatprep.subr.mxu0 0.0
        %1496 = vmatpush1.msra.mxu0 0.0
        %1497 = vmatprep.subr.mxu0 0.0
        %1498 = vmatpush1.msra.mxu0 0.0
        %1499 = vmatprep.subr.mxu0 0.0
        %1500 = vmatpush1.msra.mxu0 0.0
        %1501 = vmatprep.subr.mxu0 0.0
        %1502 = vmatpush1.msra.mxu0 0.0
        %1503 = vmatprep.subr.mxu0 0.0
        %1504 = vmatpush1.msra.mxu0 0.0
        %1505 = vmatprep.subr.mxu0 0.0
        %1506 = vmatpush1.msra.mxu0 0.0
        %1507 = vmatprep.subr.mxu0 0.0
        %1508 = vmatpush1.msra.mxu0 0.0
        %1509 = vmatprep.subr.mxu0 0.0
        %1510 = vmatpush1.msra.mxu0 0.0
        %1511 = vmatprep.subr.mxu0 0.0
        %1512 = vmatpush1.msra.mxu0 0.0
        %1513 = vmatprep.subr.mxu0 0.0
        %1514 = vmatpush1.msra.mxu0 0.0
        %1515 = vmatprep.subr.mxu0 0.0
        %1516 = vmatpush1.msra.mxu0 0.0
        %1517 = vmatprep.subr.mxu0 0.0
        %1518 = vmatpush1.msra.mxu0 0.0
        %1519 = vmatprep.subr.mxu0 0.0
        %1520 = vmatpush1.msra.mxu0 0.0
        %1521 = vmatprep.subr.mxu0 0.0
        %1522 = vmatpush1.msra.mxu0 0.0
        %1523 = vmatprep.subr.mxu0 0.0
        %1524 = vmatpush1.msra.mxu0 0.0
        %1525 = vmatprep.subr.mxu0 0.0
        %1526 = vmatpush1.msra.mxu0 0.0
        %1527 = vmatprep.subr.mxu0 0.0
        %1528 = vmatpush1.msra.mxu0 0.0
        %1529 = vmatprep.subr.mxu0 0.0
        %1530 = vmatpush1.msra.mxu0 0.0
        %1531 = vmatprep.subr.mxu0 0.0
        %1532 = vmatpush1.msra.mxu0 0.0
        %1533 = vmatprep.subr.mxu0 0.0
        %1534 = vmatpush1.msra.mxu0 0.0
        %1535 = vmatprep.subr.mxu0 0.0
        %1536 = vmatpush1.msra.mxu0 0.0
        %1537 = vmatprep.subr.mxu0 0.0
        %1538 = vmatpush1.msra.mxu0 0.0
        %1539 = vmatprep.subr.mxu0 0.0
        %1540 = vmatpush1.msra.mxu0 0.0
        %1541 = vmatprep.subr.mxu0 0.0
        %1542 = vmatpush1.msra.mxu0 0.0
        %1543 = vmatprep.mubr.f32.mxu0 0.0
        %1544 = vmatmul.mubr.f32.gmra.mrb[0].mxu0 %v1477
        %v1545 = vpop.f32.mrb[0].mxu0
        %v1546 = vadd.f32 0.0, %v1545
        %v1547 = vpop.f32.mrb[0].mxu0
        %1548 = vdwg.mxu0
        %1550 = vrot.lane.b32.xlu0 %v920, 64
        %v1551 = vpop.permute.xlu0 %1550
        %v1554 = vsel %vm1122, %v1471, 0
        %1556 = vmatprep.subr.mxu0 0.0
        %1557 = vmatpush1.msra.mxu0 %v1551
        %1558 = vmatprep.subr.mxu0 0.0
        %1559 = vmatpush1.msra.mxu0 0.0
        %1560 = vmatprep.subr.mxu0 0.0
        %1561 = vmatpush1.msra.mxu0 0.0
        %1562 = vmatprep.subr.mxu0 0.0
        %1563 = vmatpush1.msra.mxu0 0.0
        %1564 = vmatprep.subr.mxu0 0.0
        %1565 = vmatpush1.msra.mxu0 0.0
        %1566 = vmatprep.subr.mxu0 0.0
        %1567 = vmatpush1.msra.mxu0 0.0
        %1568 = vmatprep.subr.mxu0 0.0
        %1569 = vmatpush1.msra.mxu0 0.0
        %1570 = vmatprep.subr.mxu0 0.0
        %1571 = vmatpush1.msra.mxu0 0.0
        %1572 = vmatprep.subr.mxu0 0.0
        %1573 = vmatpush1.msra.mxu0 0.0
        %1574 = vmatprep.subr.mxu0 0.0
        %1575 = vmatpush1.msra.mxu0 0.0
        %1576 = vmatprep.subr.mxu0 0.0
        %1577 = vmatpush1.msra.mxu0 0.0
        %1578 = vmatprep.subr.mxu0 0.0
        %1579 = vmatpush1.msra.mxu0 0.0
        %1580 = vmatprep.subr.mxu0 0.0
        %1581 = vmatpush1.msra.mxu0 0.0
        %1582 = vmatprep.subr.mxu0 0.0
        %1583 = vmatpush1.msra.mxu0 0.0
        %1584 = vmatprep.subr.mxu0 0.0
        %1585 = vmatpush1.msra.mxu0 0.0
        %1586 = vmatprep.subr.mxu0 0.0
        %1587 = vmatpush1.msra.mxu0 0.0
        %1588 = vmatprep.subr.mxu0 0.0
        %1589 = vmatpush1.msra.mxu0 0.0
        %1590 = vmatprep.subr.mxu0 0.0
        %1591 = vmatpush1.msra.mxu0 0.0
        %1592 = vmatprep.subr.mxu0 0.0
        %1593 = vmatpush1.msra.mxu0 0.0
        %1594 = vmatprep.subr.mxu0 0.0
        %1595 = vmatpush1.msra.mxu0 0.0
        %1596 = vmatprep.subr.mxu0 0.0
        %1597 = vmatpush1.msra.mxu0 0.0
        %1598 = vmatprep.subr.mxu0 0.0
        %1599 = vmatpush1.msra.mxu0 0.0
        %1600 = vmatprep.subr.mxu0 0.0
        %1601 = vmatpush1.msra.mxu0 0.0
        %1602 = vmatprep.subr.mxu0 0.0
        %1603 = vmatpush1.msra.mxu0 0.0
        %1604 = vmatprep.subr.mxu0 0.0
        %1605 = vmatpush1.msra.mxu0 0.0
        %1606 = vmatprep.subr.mxu0 0.0
        %1607 = vmatpush1.msra.mxu0 0.0
        %1608 = vmatprep.subr.mxu0 0.0
        %1609 = vmatpush1.msra.mxu0 0.0
        %1610 = vmatprep.subr.mxu0 0.0
        %1611 = vmatpush1.msra.mxu0 0.0
        %1612 = vmatprep.subr.mxu0 0.0
        %1613 = vmatpush1.msra.mxu0 0.0
        %1614 = vmatprep.subr.mxu0 0.0
        %1615 = vmatpush1.msra.mxu0 0.0
        %1616 = vmatprep.subr.mxu0 0.0
        %1617 = vmatpush1.msra.mxu0 0.0
        %1618 = vmatprep.subr.mxu0 0.0
        %1619 = vmatpush1.msra.mxu0 0.0
        %1620 = vmatprep.mubr.f32.mxu0 0.0
        %1621 = vmatmul.mubr.f32.gmra.mrb[0].mxu0 %v1554
        %v1622 = vpop.f32.mrb[0].mxu0
        %v1623 = vadd.f32 0.0, %v1622
        %v1624 = vpop.f32.mrb[0].mxu0
        %1625 = vdwg.mxu0
        %v1626 = vpack.c.bf16 %v1623, %v1546
        %v1635 = vunpack.c.l.b16 %v468
        %v1636 = vunpack.c.l.b16 %v469
        %v1637 = vunpack.c.l.b16 %v470
        %v1638 = vunpack.c.l.b16 %v471
        %v1639 = vunpack.c.l.b16 %v472
        %v1640 = vunpack.c.l.b16 %v473
        %v1641 = vunpack.c.l.b16 %v474
        %v1642 = vunpack.c.l.b16 %v475
        %v1643 = vpack.c.b16 %v1636, %v1635
        %v1644 = vpack.c.b16 %v1638, %v1637
        %v1645 = vpack.c.b16 %v1640, %v1639
        %v1646 = vpack.c.b16 %v1642, %v1641
        %v1652 = vsel %vm967, %v1626, 0
        %1654 = vmatprep.subr.bf16.mxu0 0
        %1655 = vmatpush1.bf16.msra.mxu0 %v1643
        %1656 = vmatprep.subr.bf16.mxu0 0
        %1657 = vmatpush1.bf16.msra.mxu0 %v1644
        %1658 = vmatprep.subr.bf16.mxu0 0
        %1659 = vmatpush1.bf16.msra.mxu0 %v1645
        %1660 = vmatprep.subr.bf16.mxu0 0
        %1661 = vmatpush1.bf16.msra.mxu0 %v1646
        %1662 = vmatprep.subr.bf16.mxu0 0
        %1663 = vmatpush1.bf16.msra.mxu0 0
        %1664 = vmatprep.subr.bf16.mxu0 0
        %1665 = vmatpush1.bf16.msra.mxu0 0
        %1666 = vmatprep.subr.bf16.mxu0 0
        %1667 = vmatpush1.bf16.msra.mxu0 0
        %1668 = vmatprep.subr.bf16.mxu0 0
        %1669 = vmatpush1.bf16.msra.mxu0 0
        %1670 = vmatprep.subr.bf16.mxu0 0
        %1671 = vmatpush1.bf16.msra.mxu0 0
        %1672 = vmatprep.subr.bf16.mxu0 0
        %1673 = vmatpush1.bf16.msra.mxu0 0
        %1674 = vmatprep.subr.bf16.mxu0 0
        %1675 = vmatpush1.bf16.msra.mxu0 0
        %1676 = vmatprep.subr.bf16.mxu0 0
        %1677 = vmatpush1.bf16.msra.mxu0 0
        %1678 = vmatprep.subr.bf16.mxu0 0
        %1679 = vmatpush1.bf16.msra.mxu0 0
        %1680 = vmatprep.subr.bf16.mxu0 0
        %1681 = vmatpush1.bf16.msra.mxu0 0
        %1682 = vmatprep.subr.bf16.mxu0 0
        %1683 = vmatpush1.bf16.msra.mxu0 0
        %1684 = vmatprep.subr.bf16.mxu0 0
        %1685 = vmatpush1.bf16.msra.mxu0 0
        %1686 = vmatprep.mubr.bf16.mxu0 0
        %1687 = vmatmul.mubr.bf16.gmra.mrb[0].mxu0 %v1652
        %v1688 = vpop.f32.mrb[0].mxu0
        %v1689 = vadd.f32 0.0, %v1688
        %v1690 = vpop.f32.mrb[0].mxu0
        %v1691 = vpop.f32.mrb[0].mxu0
        %v1692 = vadd.f32 0.0, %v1691
        %v1693 = vpop.f32.mrb[0].mxu0
        %1694 = vdwg.mxu0
        %v1703 = vunpack.c.l.b16 %v460
        %v1704 = vunpack.c.l.b16 %v461
        %v1705 = vunpack.c.l.b16 %v462
        %v1706 = vunpack.c.l.b16 %v463
        %v1707 = vunpack.c.l.b16 %v464
        %v1708 = vunpack.c.l.b16 %v465
        %v1709 = vunpack.c.l.b16 %v466
        %v1710 = vunpack.c.l.b16 %v467
        %v1711 = vpack.c.b16 %v1704, %v1703
        %v1712 = vpack.c.b16 %v1706, %v1705
        %v1713 = vpack.c.b16 %v1708, %v1707
        %v1714 = vpack.c.b16 %v1710, %v1709
        %v1720 = vsel %vm967, %v1291, 0
        %1722 = vmatprep.subr.bf16.mxu0 0
        %1723 = vmatpush1.bf16.msra.mxu0 %v1711
        %1724 = vmatprep.subr.bf16.mxu0 0
        %1725 = vmatpush1.bf16.msra.mxu0 %v1712
        %1726 = vmatprep.subr.bf16.mxu0 0
        %1727 = vmatpush1.bf16.msra.mxu0 %v1713
        %1728 = vmatprep.subr.bf16.mxu0 0
        %1729 = vmatpush1.bf16.msra.mxu0 %v1714
        %1730 = vmatprep.subr.bf16.mxu0 0
        %1731 = vmatpush1.bf16.msra.mxu0 0
        %1732 = vmatprep.subr.bf16.mxu0 0
        %1733 = vmatpush1.bf16.msra.mxu0 0
        %1734 = vmatprep.subr.bf16.mxu0 0
        %1735 = vmatpush1.bf16.msra.mxu0 0
        %1736 = vmatprep.subr.bf16.mxu0 0
        %1737 = vmatpush1.bf16.msra.mxu0 0
        %1738 = vmatprep.subr.bf16.mxu0 0
        %1739 = vmatpush1.bf16.msra.mxu0 0
        %1740 = vmatprep.subr.bf16.mxu0 0
        %1741 = vmatpush1.bf16.msra.mxu0 0
        %1742 = vmatprep.subr.bf16.mxu0 0
        %1743 = vmatpush1.bf16.msra.mxu0 0
        %1744 = vmatprep.subr.bf16.mxu0 0
        %1745 = vmatpush1.bf16.msra.mxu0 0
        %1746 = vmatprep.subr.bf16.mxu0 0
        %1747 = vmatpush1.bf16.msra.mxu0 0
        %1748 = vmatprep.subr.bf16.mxu0 0
        %1749 = vmatpush1.bf16.msra.mxu0 0
        %1750 = vmatprep.subr.bf16.mxu0 0
        %1751 = vmatpush1.bf16.msra.mxu0 0
        %1752 = vmatprep.subr.bf16.mxu0 0
        %1753 = vmatpush1.bf16.msra.mxu0 0
        %1754 = vmatprep.mubr.bf16.mxu0 0
        %1755 = vmatmul.mubr.bf16.gmra.mrb[0].mxu0 %v1720
        %v1756 = vpop.f32.mrb[0].mxu0
        %v1757 = vadd.f32 %v1689, %v1756
        %v1758 = vpop.f32.mrb[0].mxu0
        %v1759 = vpop.f32.mrb[0].mxu0
        %v1760 = vadd.f32 %v1692, %v1759
        %v1761 = vpop.f32.mrb[0].mxu0
        %1762 = vdwg.mxu0
        %v1764 = vsel %vm967, %v746, 0
        %v1767 = vsel %vm967, %v832, 0
        %1769 = vmatprep.subr.mxu0 0.0
        %1770 = vmatpush1.xpose.msra.mxu0 %v1767
        %1771 = vmatprep.subr.mxu0 0.0
        %1772 = vmatpush1.xpose.msra.mxu0 0.0
        %1773 = vmatprep.subr.mxu0 0.0
        %1774 = vmatpush1.xpose.msra.mxu0 0.0
        %1775 = vmatprep.subr.mxu0 0.0
        %1776 = vmatpush1.xpose.msra.mxu0 0.0
        %1777 = vmatprep.subr.mxu0 0.0
        %1778 = vmatpush1.xpose.msra.mxu0 0.0
        %1779 = vmatprep.subr.mxu0 0.0
        %1780 = vmatpush1.xpose.msra.mxu0 0.0
        %1781 = vmatprep.subr.mxu0 0.0
        %1782 = vmatpush1.xpose.msra.mxu0 0.0
        %1783 = vmatprep.subr.mxu0 0.0
        %1784 = vmatpush1.xpose.msra.mxu0 0.0
        %1785 = vmatprep.subr.mxu0 0.0
        %1786 = vmatpush1.xpose.msra.mxu0 0.0
        %1787 = vmatprep.subr.mxu0 0.0
        %1788 = vmatpush1.xpose.msra.mxu0 0.0
        %1789 = vmatprep.subr.mxu0 0.0
        %1790 = vmatpush1.xpose.msra.mxu0 0.0
        %1791 = vmatprep.subr.mxu0 0.0
        %1792 = vmatpush1.xpose.msra.mxu0 0.0
        %1793 = vmatprep.subr.mxu0 0.0
        %1794 = vmatpush1.xpose.msra.mxu0 0.0
        %1795 = vmatprep.subr.mxu0 0.0
        %1796 = vmatpush1.xpose.msra.mxu0 0.0
        %1797 = vmatprep.subr.mxu0 0.0
        %1798 = vmatpush1.xpose.msra.mxu0 0.0
        %1799 = vmatprep.subr.mxu0 0.0
        %1800 = vmatpush1.xpose.msra.mxu0 0.0
        %1801 = vmatprep.subr.mxu0 0.0
        %1802 = vmatpush1.xpose.msra.mxu0 0.0
        %1803 = vmatprep.subr.mxu0 0.0
        %1804 = vmatpush1.xpose.msra.mxu0 0.0
        %1805 = vmatprep.subr.mxu0 0.0
        %1806 = vmatpush1.xpose.msra.mxu0 0.0
        %1807 = vmatprep.subr.mxu0 0.0
        %1808 = vmatpush1.xpose.msra.mxu0 0.0
        %1809 = vmatprep.subr.mxu0 0.0
        %1810 = vmatpush1.xpose.msra.mxu0 0.0
        %1811 = vmatprep.subr.mxu0 0.0
        %1812 = vmatpush1.xpose.msra.mxu0 0.0
        %1813 = vmatprep.subr.mxu0 0.0
        %1814 = vmatpush1.xpose.msra.mxu0 0.0
        %1815 = vmatprep.subr.mxu0 0.0
        %1816 = vmatpush1.xpose.msra.mxu0 0.0
        %1817 = vmatprep.subr.mxu0 0.0
        %1818 = vmatpush1.xpose.msra.mxu0 0.0
        %1819 = vmatprep.subr.mxu0 0.0
        %1820 = vmatpush1.xpose.msra.mxu0 0.0
        %1821 = vmatprep.subr.mxu0 0.0
        %1822 = vmatpush1.xpose.msra.mxu0 0.0
        %1823 = vmatprep.subr.mxu0 0.0
        %1824 = vmatpush1.xpose.msra.mxu0 0.0
        %1825 = vmatprep.subr.mxu0 0.0
        %1826 = vmatpush1.xpose.msra.mxu0 0.0
        %1827 = vmatprep.subr.mxu0 0.0
        %1828 = vmatpush1.xpose.msra.mxu0 0.0
        %1829 = vmatprep.subr.mxu0 0.0
        %1830 = vmatpush1.xpose.msra.mxu0 0.0
        %1831 = vmatprep.subr.mxu0 0.0
        %1832 = vmatpush1.xpose.msra.mxu0 0.0
        %1833 = vmatprep.mubr.f32.mxu0 0.0
        %1834 = vmatmul.mubr.f32.gmra.mrb[0].mxu0 %v1764
        %v1835 = vpop.f32.mrb[0].mxu0
        %v1836 = vadd.f32 0.0, %v1835
        %v1837 = vpop.f32.mrb[0].mxu0
        %1838 = vdwg.mxu0
        %v1840 = vsel %vm967, %v750, 0
        %v1843 = vsel %vm967, %v836, 0
        %1845 = vmatprep.subr.mxu0 0.0
        %1846 = vmatpush1.xpose.msra.mxu0 %v1843
        %1847 = vmatprep.subr.mxu0 0.0
        %1848 = vmatpush1.xpose.msra.mxu0 0.0
        %1849 = vmatprep.subr.mxu0 0.0
        %1850 = vmatpush1.xpose.msra.mxu0 0.0
        %1851 = vmatprep.subr.mxu0 0.0
        %1852 = vmatpush1.xpose.msra.mxu0 0.0
        %1853 = vmatprep.subr.mxu0 0.0
        %1854 = vmatpush1.xpose.msra.mxu0 0.0
        %1855 = vmatprep.subr.mxu0 0.0
        %1856 = vmatpush1.xpose.msra.mxu0 0.0
        %1857 = vmatprep.subr.mxu0 0.0
        %1858 = vmatpush1.xpose.msra.mxu0 0.0
        %1859 = vmatprep.subr.mxu0 0.0
        %1860 = vmatpush1.xpose.msra.mxu0 0.0
        %1861 = vmatprep.subr.mxu0 0.0
        %1862 = vmatpush1.xpose.msra.mxu0 0.0
        %1863 = vmatprep.subr.mxu0 0.0
        %1864 = vmatpush1.xpose.msra.mxu0 0.0
        %1865 = vmatprep.subr.mxu0 0.0
        %1866 = vmatpush1.xpose.msra.mxu0 0.0
        %1867 = vmatprep.subr.mxu0 0.0
        %1868 = vmatpush1.xpose.msra.mxu0 0.0
        %1869 = vmatprep.subr.mxu0 0.0
        %1870 = vmatpush1.xpose.msra.mxu0 0.0
        %1871 = vmatprep.subr.mxu0 0.0
        %1872 = vmatpush1.xpose.msra.mxu0 0.0
        %1873 = vmatprep.subr.mxu0 0.0
        %1874 = vmatpush1.xpose.msra.mxu0 0.0
        %1875 = vmatprep.subr.mxu0 0.0
        %1876 = vmatpush1.xpose.msra.mxu0 0.0
        %1877 = vmatprep.subr.mxu0 0.0
        %1878 = vmatpush1.xpose.msra.mxu0 0.0
        %1879 = vmatprep.subr.mxu0 0.0
        %1880 = vmatpush1.xpose.msra.mxu0 0.0
        %1881 = vmatprep.subr.mxu0 0.0
        %1882 = vmatpush1.xpose.msra.mxu0 0.0
        %1883 = vmatprep.subr.mxu0 0.0
        %1884 = vmatpush1.xpose.msra.mxu0 0.0
        %1885 = vmatprep.subr.mxu0 0.0
        %1886 = vmatpush1.xpose.msra.mxu0 0.0
        %1887 = vmatprep.subr.mxu0 0.0
        %1888 = vmatpush1.xpose.msra.mxu0 0.0
        %1889 = vmatprep.subr.mxu0 0.0
        %1890 = vmatpush1.xpose.msra.mxu0 0.0
        %1891 = vmatprep.subr.mxu0 0.0
        %1892 = vmatpush1.xpose.msra.mxu0 0.0
        %1893 = vmatprep.subr.mxu0 0.0
        %1894 = vmatpush1.xpose.msra.mxu0 0.0
        %1895 = vmatprep.subr.mxu0 0.0
        %1896 = vmatpush1.xpose.msra.mxu0 0.0
        %1897 = vmatprep.subr.mxu0 0.0
        %1898 = vmatpush1.xpose.msra.mxu0 0.0
        %1899 = vmatprep.subr.mxu0 0.0
        %1900 = vmatpush1.xpose.msra.mxu0 0.0
        %1901 = vmatprep.subr.mxu0 0.0
        %1902 = vmatpush1.xpose.msra.mxu0 0.0
        %1903 = vmatprep.subr.mxu0 0.0
        %1904 = vmatpush1.xpose.msra.mxu0 0.0
        %1905 = vmatprep.subr.mxu0 0.0
        %1906 = vmatpush1.xpose.msra.mxu0 0.0
        %1907 = vmatprep.subr.mxu0 0.0
        %1908 = vmatpush1.xpose.msra.mxu0 0.0
        %1909 = vmatprep.mubr.f32.mxu0 0.0
        %1910 = vmatmul.mubr.f32.gmra.mrb[0].mxu0 %v1840
        %v1911 = vpop.f32.mrb[0].mxu0
        %v1912 = vadd.f32 0.0, %v1911
        %v1913 = vpop.f32.mrb[0].mxu0
        %1914 = vdwg.mxu0
        %v1915 = vmul.f32 %v1836, 0.125
        %v1916 = vmul.f32 %v1912, 0.125
        %v1917 = vsel %vm1122, %v1915, -inf
        %1918 = vmax.xlane.f32.xlu0 %v1917
        %v1919 = vpop.xlane.xlu0 %1918
        %v1920 = vsel %vm1122, %v1916, -inf
        %1921 = vmax.xlane.f32.xlu0 %v1920
        %v1922 = vpop.xlane.xlu0 %1921
        %v1923 = vsub.f32 %v1915, %v1919
        %v1924 = vsub.f32 %v1916, %v1922
        %v1925 = vmul.f32 %v1923, 1.442695
        %v1926 = vpow.pop %v1925
        %v1927 = vmul.f32 %v1924, 1.442695
        %v1928 = vpow.pop %v1927
        %v1929 = vsel %vm1122, %v1926, 0.0
        %1930 = vadd.xlane.f32.xlu0 %v1929
        %v1931 = vpop.xlane.xlu0 %1930
        %v1932 = vsel %vm1122, %v1928, 0.0
        %1933 = vadd.xlane.f32.xlu0 %v1932
        %v1934 = vpop.xlane.xlu0 %1933
        %v1935 = vrcp.pop %v1931
        %v1936 = vrcp.pop %v1934
        %v1937 = vmul.f32 %v1926, %v1935
        %v1938 = vmul.f32 %v1928, %v1936
        %v1940 = vsel %vm1122, %v1937, 0
        %1942 = vmatprep.subr.mxu0 0.0
        %1943 = vmatpush1.msra.mxu0 %v918
        %1944 = vmatprep.subr.mxu0 0.0
        %1945 = vmatpush1.msra.mxu0 0.0
        %1946 = vmatprep.subr.mxu0 0.0
        %1947 = vmatpush1.msra.mxu0 0.0
        %1948 = vmatprep.subr.mxu0 0.0
        %1949 = vmatpush1.msra.mxu0 0.0
        %1950 = vmatprep.subr.mxu0 0.0
        %1951 = vmatpush1.msra.mxu0 0.0
        %1952 = vmatprep.subr.mxu0 0.0
        %1953 = vmatpush1.msra.mxu0 0.0
        %1954 = vmatprep.subr.mxu0 0.0
        %1955 = vmatpush1.msra.mxu0 0.0
        %1956 = vmatprep.subr.mxu0 0.0
        %1957 = vmatpush1.msra.mxu0 0.0
        %1958 = vmatprep.subr.mxu0 0.0
        %1959 = vmatpush1.msra.mxu0 0.0
        %1960 = vmatprep.subr.mxu0 0.0
        %1961 = vmatpush1.msra.mxu0 0.0
        %1962 = vmatprep.subr.mxu0 0.0
        %1963 = vmatpush1.msra.mxu0 0.0
        %1964 = vmatprep.subr.mxu0 0.0
        %1965 = vmatpush1.msra.mxu0 0.0
        %1966 = vmatprep.subr.mxu0 0.0
        %1967 = vmatpush1.msra.mxu0 0.0
        %1968 = vmatprep.subr.mxu0 0.0
        %1969 = vmatpush1.msra.mxu0 0.0
        %1970 = vmatprep.subr.mxu0 0.0
        %1971 = vmatpush1.msra.mxu0 0.0
        %1972 = vmatprep.subr.mxu0 0.0
        %1973 = vmatpush1.msra.mxu0 0.0
        %1974 = vmatprep.subr.mxu0 0.0
        %1975 = vmatpush1.msra.mxu0 0.0
        %1976 = vmatprep.subr.mxu0 0.0
        %1977 = vmatpush1.msra.mxu0 0.0
        %1978 = vmatprep.subr.mxu0 0.0
        %1979 = vmatpush1.msra.mxu0 0.0
        %1980 = vmatprep.subr.mxu0 0.0
        %1981 = vmatpush1.msra.mxu0 0.0
        %1982 = vmatprep.subr.mxu0 0.0
        %1983 = vmatpush1.msra.mxu0 0.0
        %1984 = vmatprep.subr.mxu0 0.0
        %1985 = vmatpush1.msra.mxu0 0.0
        %1986 = vmatprep.subr.mxu0 0.0
        %1987 = vmatpush1.msra.mxu0 0.0
        %1988 = vmatprep.subr.mxu0 0.0
        %1989 = vmatpush1.msra.mxu0 0.0
        %1990 = vmatprep.subr.mxu0 0.0
        %1991 = vmatpush1.msra.mxu0 0.0
        %1992 = vmatprep.subr.mxu0 0.0
        %1993 = vmatpush1.msra.mxu0 0.0
        %1994 = vmatprep.subr.mxu0 0.0
        %1995 = vmatpush1.msra.mxu0 0.0
        %1996 = vmatprep.subr.mxu0 0.0
        %1997 = vmatpush1.msra.mxu0 0.0
        %1998 = vmatprep.subr.mxu0 0.0
        %1999 = vmatpush1.msra.mxu0 0.0
        %2000 = vmatprep.subr.mxu0 0.0
        %2001 = vmatpush1.msra.mxu0 0.0
        %2002 = vmatprep.subr.mxu0 0.0
        %2003 = vmatpush1.msra.mxu0 0.0
        %2004 = vmatprep.subr.mxu0 0.0
        %2005 = vmatpush1.msra.mxu0 0.0
        %2006 = vmatprep.mubr.f32.mxu0 0.0
        %2007 = vmatmul.mubr.f32.gmra.mrb[0].mxu0 %v1940
        %v2008 = vpop.f32.mrb[0].mxu0
        %v2009 = vadd.f32 0.0, %v2008
        %v2010 = vpop.f32.mrb[0].mxu0
        %2011 = vdwg.mxu0
        %v2013 = vsel %vm1122, %v1938, 0
        %2015 = vmatprep.subr.mxu0 0.0
        %2016 = vmatpush1.msra.mxu0 %v922
        %2017 = vmatprep.subr.mxu0 0.0
        %2018 = vmatpush1.msra.mxu0 0.0
        %2019 = vmatprep.subr.mxu0 0.0
        %2020 = vmatpush1.msra.mxu0 0.0
        %2021 = vmatprep.subr.mxu0 0.0
        %2022 = vmatpush1.msra.mxu0 0.0
        %2023 = vmatprep.subr.mxu0 0.0
        %2024 = vmatpush1.msra.mxu0 0.0
        %2025 = vmatprep.subr.mxu0 0.0
        %2026 = vmatpush1.msra.mxu0 0.0
        %2027 = vmatprep.subr.mxu0 0.0
        %2028 = vmatpush1.msra.mxu0 0.0
        %2029 = vmatprep.subr.mxu0 0.0
        %2030 = vmatpush1.msra.mxu0 0.0
        %2031 = vmatprep.subr.mxu0 0.0
        %2032 = vmatpush1.msra.mxu0 0.0
        %2033 = vmatprep.subr.mxu0 0.0
        %2034 = vmatpush1.msra.mxu0 0.0
        %2035 = vmatprep.subr.mxu0 0.0
        %2036 = vmatpush1.msra.mxu0 0.0
        %2037 = vmatprep.subr.mxu0 0.0
        %2038 = vmatpush1.msra.mxu0 0.0
        %2039 = vmatprep.subr.mxu0 0.0
        %2040 = vmatpush1.msra.mxu0 0.0
        %2041 = vmatprep.subr.mxu0 0.0
        %2042 = vmatpush1.msra.mxu0 0.0
        %2043 = vmatprep.subr.mxu0 0.0
        %2044 = vmatpush1.msra.mxu0 0.0
        %2045 = vmatprep.subr.mxu0 0.0
        %2046 = vmatpush1.msra.mxu0 0.0
        %2047 = vmatprep.subr.mxu0 0.0
        %2048 = vmatpush1.msra.mxu0 0.0
        %2049 = vmatprep.subr.mxu0 0.0
        %2050 = vmatpush1.msra.mxu0 0.0
        %2051 = vmatprep.subr.mxu0 0.0
        %2052 = vmatpush1.msra.mxu0 0.0
        %2053 = vmatprep.subr.mxu0 0.0
        %2054 = vmatpush1.msra.mxu0 0.0
        %2055 = vmatprep.subr.mxu0 0.0
        %2056 = vmatpush1.msra.mxu0 0.0
        %2057 = vmatprep.subr.mxu0 0.0
        %2058 = vmatpush1.msra.mxu0 0.0
        %2059 = vmatprep.subr.mxu0 0.0
        %2060 = vmatpush1.msra.mxu0 0.0
        %2061 = vmatprep.subr.mxu0 0.0
        %2062 = vmatpush1.msra.mxu0 0.0
        %2063 = vmatprep.subr.mxu0 0.0
        %2064 = vmatpush1.msra.mxu0 0.0
        %2065 = vmatprep.subr.mxu0 0.0
        %2066 = vmatpush1.msra.mxu0 0.0
        %2067 = vmatprep.subr.mxu0 0.0
        %2068 = vmatpush1.msra.mxu0 0.0
        %2069 = vmatprep.subr.mxu0 0.0
        %2070 = vmatpush1.msra.mxu0 0.0
        %2071 = vmatprep.subr.mxu0 0.0
        %2072 = vmatpush1.msra.mxu0 0.0
        %2073 = vmatprep.subr.mxu0 0.0
        %2074 = vmatpush1.msra.mxu0 0.0
        %2075 = vmatprep.subr.mxu0 0.0
        %2076 = vmatpush1.msra.mxu0 0.0
        %2077 = vmatprep.subr.mxu0 0.0
        %2078 = vmatpush1.msra.mxu0 0.0
        %2079 = vmatprep.mubr.f32.mxu0 0.0
        %2080 = vmatmul.mubr.f32.gmra.mrb[0].mxu0 %v2013
        %v2081 = vpop.f32.mrb[0].mxu0
        %v2082 = vadd.f32 0.0, %v2081
        %v2083 = vpop.f32.mrb[0].mxu0
        %2084 = vdwg.mxu0
        %v2085 = vpack.c.bf16 %v2082, %v2009
        %v2094 = vunpack.c.l.b16 %v476
        %v2095 = vunpack.c.l.b16 %v477
        %v2096 = vunpack.c.l.b16 %v478
        %v2097 = vunpack.c.l.b16 %v479
        %v2098 = vunpack.c.l.b16 %v480
        %v2099 = vunpack.c.l.b16 %v481
        %v2100 = vunpack.c.l.b16 %v482
        %v2101 = vunpack.c.l.b16 %v483
        %v2102 = vpack.c.b16 %v2095, %v2094
        %v2103 = vpack.c.b16 %v2097, %v2096
        %v2104 = vpack.c.b16 %v2099, %v2098
        %v2105 = vpack.c.b16 %v2101, %v2100
        %v2111 = vsel %vm967, %v2085, 0
        %2113 = vmatprep.subr.bf16.mxu0 0
        %2114 = vmatpush1.bf16.msra.mxu0 %v2102
        %2115 = vmatprep.subr.bf16.mxu0 0
        %2116 = vmatpush1.bf16.msra.mxu0 %v2103
        %2117 = vmatprep.subr.bf16.mxu0 0
        %2118 = vmatpush1.bf16.msra.mxu0 %v2104
        %2119 = vmatprep.subr.bf16.mxu0 0
        %2120 = vmatpush1.bf16.msra.mxu0 %v2105
        %2121 = vmatprep.subr.bf16.mxu0 0
        %2122 = vmatpush1.bf16.msra.mxu0 0
        %2123 = vmatprep.subr.bf16.mxu0 0
        %2124 = vmatpush1.bf16.msra.mxu0 0
        %2125 = vmatprep.subr.bf16.mxu0 0
        %2126 = vmatpush1.bf16.msra.mxu0 0
        %2127 = vmatprep.subr.bf16.mxu0 0
        %2128 = vmatpush1.bf16.msra.mxu0 0
        %2129 = vmatprep.subr.bf16.mxu0 0
        %2130 = vmatpush1.bf16.msra.mxu0 0
        %2131 = vmatprep.subr.bf16.mxu0 0
        %2132 = vmatpush1.bf16.msra.mxu0 0
        %2133 = vmatprep.subr.bf16.mxu0 0
        %2134 = vmatpush1.bf16.msra.mxu0 0
        %2135 = vmatprep.subr.bf16.mxu0 0
        %2136 = vmatpush1.bf16.msra.mxu0 0
        %2137 = vmatprep.subr.bf16.mxu0 0
        %2138 = vmatpush1.bf16.msra.mxu0 0
        %2139 = vmatprep.subr.bf16.mxu0 0
        %2140 = vmatpush1.bf16.msra.mxu0 0
        %2141 = vmatprep.subr.bf16.mxu0 0
        %2142 = vmatpush1.bf16.msra.mxu0 0
        %2143 = vmatprep.subr.bf16.mxu0 0
        %2144 = vmatpush1.bf16.msra.mxu0 0
        %2145 = vmatprep.mubr.bf16.mxu0 0
        %2146 = vmatmul.mubr.bf16.gmra.mrb[0].mxu0 %v2111
        %v2147 = vpop.f32.mrb[0].mxu0
        %v2148 = vadd.f32 0.0, %v2147
        %v2149 = vpop.f32.mrb[0].mxu0
        %v2150 = vpop.f32.mrb[0].mxu0
        %v2151 = vadd.f32 0.0, %v2150
        %v2152 = vpop.f32.mrb[0].mxu0
        %2153 = vdwg.mxu0
        %v2154 = vadd.f32 %v1757, %v2148
        %v2155 = vadd.f32 %v1760, %v2151
        %2156 = vrot.lane.b32.xlu0 %v746, 64
        %v2157 = vpop.permute.xlu0 %2156
        %2158 = vrot.lane.b32.xlu0 %v832, 64
        %v2159 = vpop.permute.xlu0 %2158
        %v2160 = vsel %vm967, %v2157, 0
        %v2162 = vsel %vm967, %v2159, 0
        %2164 = vmatprep.subr.mxu0 0.0
        %2165 = vmatpush1.xpose.msra.mxu0 %v2162
        %2166 = vmatprep.subr.mxu0 0.0
        %2167 = vmatpush1.xpose.msra.mxu0 0.0
        %2168 = vmatprep.subr.mxu0 0.0
        %2169 = vmatpush1.xpose.msra.mxu0 0.0
        %2170 = vmatprep.subr.mxu0 0.0
        %2171 = vmatpush1.xpose.msra.mxu0 0.0
        %2172 = vmatprep.subr.mxu0 0.0
        %2173 = vmatpush1.xpose.msra.mxu0 0.0
        %2174 = vmatprep.subr.mxu0 0.0
        %2175 = vmatpush1.xpose.msra.mxu0 0.0
        %2176 = vmatprep.subr.mxu0 0.0
        %2177 = vmatpush1.xpose.msra.mxu0 0.0
        %2178 = vmatprep.subr.mxu0 0.0
        %2179 = vmatpush1.xpose.msra.mxu0 0.0
        %2180 = vmatprep.subr.mxu0 0.0
        %2181 = vmatpush1.xpose.msra.mxu0 0.0
        %2182 = vmatprep.subr.mxu0 0.0
        %2183 = vmatpush1.xpose.msra.mxu0 0.0
        %2184 = vmatprep.subr.mxu0 0.0
        %2185 = vmatpush1.xpose.msra.mxu0 0.0
        %2186 = vmatprep.subr.mxu0 0.0
        %2187 = vmatpush1.xpose.msra.mxu0 0.0
        %2188 = vmatprep.subr.mxu0 0.0
        %2189 = vmatpush1.xpose.msra.mxu0 0.0
        %2190 = vmatprep.subr.mxu0 0.0
        %2191 = vmatpush1.xpose.msra.mxu0 0.0
        %2192 = vmatprep.subr.mxu0 0.0
        %2193 = vmatpush1.xpose.msra.mxu0 0.0
        %2194 = vmatprep.subr.mxu0 0.0
        %2195 = vmatpush1.xpose.msra.mxu0 0.0
        %2196 = vmatprep.subr.mxu0 0.0
        %2197 = vmatpush1.xpose.msra.mxu0 0.0
        %2198 = vmatprep.subr.mxu0 0.0
        %2199 = vmatpush1.xpose.msra.mxu0 0.0
        %2200 = vmatprep.subr.mxu0 0.0
        %2201 = vmatpush1.xpose.msra.mxu0 0.0
        %2202 = vmatprep.subr.mxu0 0.0
        %2203 = vmatpush1.xpose.msra.mxu0 0.0
        %2204 = vmatprep.subr.mxu0 0.0
        %2205 = vmatpush1.xpose.msra.mxu0 0.0
        %2206 = vmatprep.subr.mxu0 0.0
        %2207 = vmatpush1.xpose.msra.mxu0 0.0
        %2208 = vmatprep.subr.mxu0 0.0
        %2209 = vmatpush1.xpose.msra.mxu0 0.0
        %2210 = vmatprep.subr.mxu0 0.0
        %2211 = vmatpush1.xpose.msra.mxu0 0.0
        %2212 = vmatprep.subr.mxu0 0.0
        %2213 = vmatpush1.xpose.msra.mxu0 0.0
        %2214 = vmatprep.subr.mxu0 0.0
        %2215 = vmatpush1.xpose.msra.mxu0 0.0
        %2216 = vmatprep.subr.mxu0 0.0
        %2217 = vmatpush1.xpose.msra.mxu0 0.0
        %2218 = vmatprep.subr.mxu0 0.0
        %2219 = vmatpush1.xpose.msra.mxu0 0.0
        %2220 = vmatprep.subr.mxu0 0.0
        %2221 = vmatpush1.xpose.msra.mxu0 0.0
        %2222 = vmatprep.subr.mxu0 0.0
        %2223 = vmatpush1.xpose.msra.mxu0 0.0
        %2224 = vmatprep.subr.mxu0 0.0
        %2225 = vmatpush1.xpose.msra.mxu0 0.0
        %2226 = vmatprep.subr.mxu0 0.0
        %2227 = vmatpush1.xpose.msra.mxu0 0.0
        %2228 = vmatprep.mubr.f32.mxu0 0.0
        %2229 = vmatmul.mubr.f32.gmra.mrb[0].mxu0 %v2160
        %v2230 = vpop.f32.mrb[0].mxu0
        %v2231 = vadd.f32 0.0, %v2230
        %v2232 = vpop.f32.mrb[0].mxu0
        %2233 = vdwg.mxu0
        %2234 = vrot.lane.b32.xlu0 %v750, 64
        %v2235 = vpop.permute.xlu0 %2234
        %2236 = vrot.lane.b32.xlu0 %v836, 64
        %v2237 = vpop.permute.xlu0 %2236
        %v2238 = vsel %vm967, %v2235, 0
        %v2240 = vsel %vm967, %v2237, 0
        %2242 = vmatprep.subr.mxu0 0.0
        %2243 = vmatpush1.xpose.msra.mxu0 %v2240
        %2244 = vmatprep.subr.mxu0 0.0
        %2245 = vmatpush1.xpose.msra.mxu0 0.0
        %2246 = vmatprep.subr.mxu0 0.0
        %2247 = vmatpush1.xpose.msra.mxu0 0.0
        %2248 = vmatprep.subr.mxu0 0.0
        %2249 = vmatpush1.xpose.msra.mxu0 0.0
        %2250 = vmatprep.subr.mxu0 0.0
        %2251 = vmatpush1.xpose.msra.mxu0 0.0
        %2252 = vmatprep.subr.mxu0 0.0
        %2253 = vmatpush1.xpose.msra.mxu0 0.0
        %2254 = vmatprep.subr.mxu0 0.0
        %2255 = vmatpush1.xpose.msra.mxu0 0.0
        %2256 = vmatprep.subr.mxu0 0.0
        %2257 = vmatpush1.xpose.msra.mxu0 0.0
        %2258 = vmatprep.subr.mxu0 0.0
        %2259 = vmatpush1.xpose.msra.mxu0 0.0
        %2260 = vmatprep.subr.mxu0 0.0
        %2261 = vmatpush1.xpose.msra.mxu0 0.0
        %2262 = vmatprep.subr.mxu0 0.0
        %2263 = vmatpush1.xpose.msra.mxu0 0.0
        %2264 = vmatprep.subr.mxu0 0.0
        %2265 = vmatpush1.xpose.msra.mxu0 0.0
        %2266 = vmatprep.subr.mxu0 0.0
        %2267 = vmatpush1.xpose.msra.mxu0 0.0
        %2268 = vmatprep.subr.mxu0 0.0
        %2269 = vmatpush1.xpose.msra.mxu0 0.0
        %2270 = vmatprep.subr.mxu0 0.0
        %2271 = vmatpush1.xpose.msra.mxu0 0.0
        %2272 = vmatprep.subr.mxu0 0.0
        %2273 = vmatpush1.xpose.msra.mxu0 0.0
        %2274 = vmatprep.subr.mxu0 0.0
        %2275 = vmatpush1.xpose.msra.mxu0 0.0
        %2276 = vmatprep.subr.mxu0 0.0
        %2277 = vmatpush1.xpose.msra.mxu0 0.0
        %2278 = vmatprep.subr.mxu0 0.0
        %2279 = vmatpush1.xpose.msra.mxu0 0.0
        %2280 = vmatprep.subr.mxu0 0.0
        %2281 = vmatpush1.xpose.msra.mxu0 0.0
        %2282 = vmatprep.subr.mxu0 0.0
        %2283 = vmatpush1.xpose.msra.mxu0 0.0
        %2284 = vmatprep.subr.mxu0 0.0
        %2285 = vmatpush1.xpose.msra.mxu0 0.0
        %2286 = vmatprep.subr.mxu0 0.0
        %2287 = vmatpush1.xpose.msra.mxu0 0.0
        %2288 = vmatprep.subr.mxu0 0.0
        %2289 = vmatpush1.xpose.msra.mxu0 0.0
        %2290 = vmatprep.subr.mxu0 0.0
        %2291 = vmatpush1.xpose.msra.mxu0 0.0
        %2292 = vmatprep.subr.mxu0 0.0
        %2293 = vmatpush1.xpose.msra.mxu0 0.0
        %2294 = vmatprep.subr.mxu0 0.0
        %2295 = vmatpush1.xpose.msra.mxu0 0.0
        %2296 = vmatprep.subr.mxu0 0.0
        %2297 = vmatpush1.xpose.msra.mxu0 0.0
        %2298 = vmatprep.subr.mxu0 0.0
        %2299 = vmatpush1.xpose.msra.mxu0 0.0
        %2300 = vmatprep.subr.mxu0 0.0
        %2301 = vmatpush1.xpose.msra.mxu0 0.0
        %2302 = vmatprep.subr.mxu0 0.0
        %2303 = vmatpush1.xpose.msra.mxu0 0.0
        %2304 = vmatprep.subr.mxu0 0.0
        %2305 = vmatpush1.xpose.msra.mxu0 0.0
        %2306 = vmatprep.mubr.f32.mxu0 0.0
        %2307 = vmatmul.mubr.f32.gmra.mrb[0].mxu0 %v2238
        %v2308 = vpop.f32.mrb[0].mxu0
        %v2309 = vadd.f32 0.0, %v2308
        %v2310 = vpop.f32.mrb[0].mxu0
        %2311 = vdwg.mxu0
        %v2312 = vmul.f32 %v2231, 0.125
        %v2313 = vmul.f32 %v2309, 0.125
        %v2314 = vsel %vm1122, %v2312, -inf
        %2315 = vmax.xlane.f32.xlu0 %v2314
        %v2316 = vpop.xlane.xlu0 %2315
        %v2317 = vsel %vm1122, %v2313, -inf
        %2318 = vmax.xlane.f32.xlu0 %v2317
        %v2319 = vpop.xlane.xlu0 %2318
        %v2320 = vsub.f32 %v2312, %v2316
        %v2321 = vsub.f32 %v2313, %v2319
        %v2322 = vmul.f32 %v2320, 1.442695
        %v2323 = vpow.pop %v2322
        %v2324 = vmul.f32 %v2321, 1.442695
        %v2325 = vpow.pop %v2324
        %v2326 = vsel %vm1122, %v2323, 0.0
        %2327 = vadd.xlane.f32.xlu0 %v2326
        %v2328 = vpop.xlane.xlu0 %2327
        %v2329 = vsel %vm1122, %v2325, 0.0
        %2330 = vadd.xlane.f32.xlu0 %v2329
        %v2331 = vpop.xlane.xlu0 %2330
        %v2332 = vrcp.pop %v2328
        %v2333 = vrcp.pop %v2331
        %v2334 = vmul.f32 %v2323, %v2332
        %v2335 = vmul.f32 %v2325, %v2333
        %2337 = vrot.lane.b32.xlu0 %v918, 64
        %v2338 = vpop.permute.xlu0 %2337
        %v2341 = vsel %vm1122, %v2334, 0
        %2343 = vmatprep.subr.mxu0 0.0
        %2344 = vmatpush1.msra.mxu0 %v2338
        %2345 = vmatprep.subr.mxu0 0.0
        %2346 = vmatpush1.msra.mxu0 0.0
        %2347 = vmatprep.subr.mxu0 0.0
        %2348 = vmatpush1.msra.mxu0 0.0
        %2349 = vmatprep.subr.mxu0 0.0
        %2350 = vmatpush1.msra.mxu0 0.0
        %2351 = vmatprep.subr.mxu0 0.0
        %2352 = vmatpush1.msra.mxu0 0.0
        %2353 = vmatprep.subr.mxu0 0.0
        %2354 = vmatpush1.msra.mxu0 0.0
        %2355 = vmatprep.subr.mxu0 0.0
        %2356 = vmatpush1.msra.mxu0 0.0
        %2357 = vmatprep.subr.mxu0 0.0
        %2358 = vmatpush1.msra.mxu0 0.0
        %2359 = vmatprep.subr.mxu0 0.0
        %2360 = vmatpush1.msra.mxu0 0.0
        %2361 = vmatprep.subr.mxu0 0.0
        %2362 = vmatpush1.msra.mxu0 0.0
        %2363 = vmatprep.subr.mxu0 0.0
        %2364 = vmatpush1.msra.mxu0 0.0
        %2365 = vmatprep.subr.mxu0 0.0
        %2366 = vmatpush1.msra.mxu0 0.0
        %2367 = vmatprep.subr.mxu0 0.0
        %2368 = vmatpush1.msra.mxu0 0.0
        %2369 = vmatprep.subr.mxu0 0.0
        %2370 = vmatpush1.msra.mxu0 0.0
        %2371 = vmatprep.subr.mxu0 0.0
        %2372 = vmatpush1.msra.mxu0 0.0
        %2373 = vmatprep.subr.mxu0 0.0
        %2374 = vmatpush1.msra.mxu0 0.0
        %2375 = vmatprep.subr.mxu0 0.0
        %2376 = vmatpush1.msra.mxu0 0.0
        %2377 = vmatprep.subr.mxu0 0.0
        %2378 = vmatpush1.msra.mxu0 0.0
        %2379 = vmatprep.subr.mxu0 0.0
        %2380 = vmatpush1.msra.mxu0 0.0
        %2381 = vmatprep.subr.mxu0 0.0
        %2382 = vmatpush1.msra.mxu0 0.0
        %2383 = vmatprep.subr.mxu0 0.0
        %2384 = vmatpush1.msra.mxu0 0.0
        %2385 = vmatprep.subr.mxu0 0.0
        %2386 = vmatpush1.msra.mxu0 0.0
        %2387 = vmatprep.subr.mxu0 0.0
        %2388 = vmatpush1.msra.mxu0 0.0
        %2389 = vmatprep.subr.mxu0 0.0
        %2390 = vmatpush1.msra.mxu0 0.0
        %2391 = vmatprep.subr.mxu0 0.0
        %2392 = vmatpush1.msra.mxu0 0.0
        %2393 = vmatprep.subr.mxu0 0.0
        %2394 = vmatpush1.msra.mxu0 0.0
        %2395 = vmatprep.subr.mxu0 0.0
        %2396 = vmatpush1.msra.mxu0 0.0
        %2397 = vmatprep.subr.mxu0 0.0
        %2398 = vmatpush1.msra.mxu0 0.0
        %2399 = vmatprep.subr.mxu0 0.0
        %2400 = vmatpush1.msra.mxu0 0.0
        %2401 = vmatprep.subr.mxu0 0.0
        %2402 = vmatpush1.msra.mxu0 0.0
        %2403 = vmatprep.subr.mxu0 0.0
        %2404 = vmatpush1.msra.mxu0 0.0
        %2405 = vmatprep.subr.mxu0 0.0
        %2406 = vmatpush1.msra.mxu0 0.0
        %2407 = vmatprep.mubr.f32.mxu0 0.0
        %2408 = vmatmul.mubr.f32.gmra.mrb[0].mxu0 %v2341
        %v2409 = vpop.f32.mrb[0].mxu0
        %v2410 = vadd.f32 0.0, %v2409
        %v2411 = vpop.f32.mrb[0].mxu0
        %2412 = vdwg.mxu0
        %2414 = vrot.lane.b32.xlu0 %v922, 64
        %v2415 = vpop.permute.xlu0 %2414
        %v2418 = vsel %vm1122, %v2335, 0
        %2420 = vmatprep.subr.mxu0 0.0
        %2421 = vmatpush1.msra.mxu0 %v2415
        %2422 = vmatprep.subr.mxu0 0.0
        %2423 = vmatpush1.msra.mxu0 0.0
        %2424 = vmatprep.subr.mxu0 0.0
        %2425 = vmatpush1.msra.mxu0 0.0
        %2426 = vmatprep.subr.mxu0 0.0
        %2427 = vmatpush1.msra.mxu0 0.0
        %2428 = vmatprep.subr.mxu0 0.0
        %2429 = vmatpush1.msra.mxu0 0.0
        %2430 = vmatprep.subr.mxu0 0.0
        %2431 = vmatpush1.msra.mxu0 0.0
        %2432 = vmatprep.subr.mxu0 0.0
        %2433 = vmatpush1.msra.mxu0 0.0
        %2434 = vmatprep.subr.mxu0 0.0
        %2435 = vmatpush1.msra.mxu0 0.0
        %2436 = vmatprep.subr.mxu0 0.0
        %2437 = vmatpush1.msra.mxu0 0.0
        %2438 = vmatprep.subr.mxu0 0.0
        %2439 = vmatpush1.msra.mxu0 0.0
        %2440 = vmatprep.subr.mxu0 0.0
        %2441 = vmatpush1.msra.mxu0 0.0
        %2442 = vmatprep.subr.mxu0 0.0
        %2443 = vmatpush1.msra.mxu0 0.0
        %2444 = vmatprep.subr.mxu0 0.0
        %2445 = vmatpush1.msra.mxu0 0.0
        %2446 = vmatprep.subr.mxu0 0.0
        %2447 = vmatpush1.msra.mxu0 0.0
        %2448 = vmatprep.subr.mxu0 0.0
        %2449 = vmatpush1.msra.mxu0 0.0
        %2450 = vmatprep.subr.mxu0 0.0
        %2451 = vmatpush1.msra.mxu0 0.0
        %2452 = vmatprep.subr.mxu0 0.0
        %2453 = vmatpush1.msra.mxu0 0.0
        %2454 = vmatprep.subr.mxu0 0.0
        %2455 = vmatpush1.msra.mxu0 0.0
        %2456 = vmatprep.subr.mxu0 0.0
        %2457 = vmatpush1.msra.mxu0 0.0
        %2458 = vmatprep.subr.mxu0 0.0
        %2459 = vmatpush1.msra.mxu0 0.0
        %2460 = vmatprep.subr.mxu0 0.0
        %2461 = vmatpush1.msra.mxu0 0.0
        %2462 = vmatprep.subr.mxu0 0.0
        %2463 = vmatpush1.msra.mxu0 0.0
        %2464 = vmatprep.subr.mxu0 0.0
        %2465 = vmatpush1.msra.mxu0 0.0
        %2466 = vmatprep.subr.mxu0 0.0
        %2467 = vmatpush1.msra.mxu0 0.0
        %2468 = vmatprep.subr.mxu0 0.0
        %2469 = vmatpush1.msra.mxu0 0.0
        %2470 = vmatprep.subr.mxu0 0.0
        %2471 = vmatpush1.msra.mxu0 0.0
        %2472 = vmatprep.subr.mxu0 0.0
        %2473 = vmatpush1.msra.mxu0 0.0
        %2474 = vmatprep.subr.mxu0 0.0
        %2475 = vmatpush1.msra.mxu0 0.0
        %2476 = vmatprep.subr.mxu0 0.0
        %2477 = vmatpush1.msra.mxu0 0.0
        %2478 = vmatprep.subr.mxu0 0.0
        %2479 = vmatpush1.msra.mxu0 0.0
        %2480 = vmatprep.subr.mxu0 0.0
        %2481 = vmatpush1.msra.mxu0 0.0
        %2482 = vmatprep.subr.mxu0 0.0
        %2483 = vmatpush1.msra.mxu0 0.0
        %2484 = vmatprep.mubr.f32.mxu0 0.0
        %2485 = vmatmul.mubr.f32.gmra.mrb[0].mxu0 %v2418
        %v2486 = vpop.f32.mrb[0].mxu0
        %v2487 = vadd.f32 0.0, %v2486
        %v2488 = vpop.f32.mrb[0].mxu0
        %2489 = vdwg.mxu0
        %v2490 = vpack.c.bf16 %v2487, %v2410
        %v2499 = vunpack.c.l.b16 %v484
        %v2500 = vunpack.c.l.b16 %v485
        %v2501 = vunpack.c.l.b16 %v486
        %v2502 = vunpack.c.l.b16 %v487
        %v2503 = vunpack.c.l.b16 %v488
        %v2504 = vunpack.c.l.b16 %v489
        %v2505 = vunpack.c.l.b16 %v490
        %v2506 = vunpack.c.l.b16 %v491
        %v2507 = vpack.c.b16 %v2500, %v2499
        %v2508 = vpack.c.b16 %v2502, %v2501
        %v2509 = vpack.c.b16 %v2504, %v2503
        %v2510 = vpack.c.b16 %v2506, %v2505
        %v2516 = vsel %vm967, %v2490, 0
        %2518 = vmatprep.subr.bf16.mxu0 0
        %2519 = vmatpush1.bf16.msra.mxu0 %v2507
        %2520 = vmatprep.subr.bf16.mxu0 0
        %2521 = vmatpush1.bf16.msra.mxu0 %v2508
        %2522 = vmatprep.subr.bf16.mxu0 0
        %2523 = vmatpush1.bf16.msra.mxu0 %v2509
        %2524 = vmatprep.subr.bf16.mxu0 0
        %2525 = vmatpush1.bf16.msra.mxu0 %v2510
        %2526 = vmatprep.subr.bf16.mxu0 0
        %2527 = vmatpush1.bf16.msra.mxu0 0
        %2528 = vmatprep.subr.bf16.mxu0 0
        %2529 = vmatpush1.bf16.msra.mxu0 0
        %2530 = vmatprep.subr.bf16.mxu0 0
        %2531 = vmatpush1.bf16.msra.mxu0 0
        %2532 = vmatprep.subr.bf16.mxu0 0
        %2533 = vmatpush1.bf16.msra.mxu0 0
        %2534 = vmatprep.subr.bf16.mxu0 0
        %2535 = vmatpush1.bf16.msra.mxu0 0
        %2536 = vmatprep.subr.bf16.mxu0 0
        %2537 = vmatpush1.bf16.msra.mxu0 0
        %2538 = vmatprep.subr.bf16.mxu0 0
        %2539 = vmatpush1.bf16.msra.mxu0 0
        %2540 = vmatprep.subr.bf16.mxu0 0
        %2541 = vmatpush1.bf16.msra.mxu0 0
        %2542 = vmatprep.subr.bf16.mxu0 0
        %2543 = vmatpush1.bf16.msra.mxu0 0
        %2544 = vmatprep.subr.bf16.mxu0 0
        %2545 = vmatpush1.bf16.msra.mxu0 0
        %2546 = vmatprep.subr.bf16.mxu0 0
        %2547 = vmatpush1.bf16.msra.mxu0 0
        %2548 = vmatprep.subr.bf16.mxu0 0
        %2549 = vmatpush1.bf16.msra.mxu0 0
        %2550 = vmatprep.mubr.bf16.mxu0 0
        %2551 = vmatmul.mubr.bf16.gmra.mrb[0].mxu0 %v2516
        %v2552 = vpop.f32.mrb[0].mxu0
        %v2553 = vadd.f32 0.0, %v2552
        %v2554 = vpop.f32.mrb[0].mxu0
        %v2555 = vpop.f32.mrb[0].mxu0
        %v2556 = vadd.f32 0.0, %v2555
        %v2557 = vpop.f32.mrb[0].mxu0
        %2558 = vdwg.mxu0
        %v2559 = vadd.f32 %v2154, %v2553
        %v2560 = vadd.f32 %v2155, %v2556
        %v2562 = vsel %vm967, %v787, 0
        %v2565 = vsel %vm967, %v873, 0
        %2567 = vmatprep.subr.mxu0 0.0
        %2568 = vmatpush1.xpose.msra.mxu0 %v2565
        %2569 = vmatprep.subr.mxu0 0.0
        %2570 = vmatpush1.xpose.msra.mxu0 0.0
        %2571 = vmatprep.subr.mxu0 0.0
        %2572 = vmatpush1.xpose.msra.mxu0 0.0
        %2573 = vmatprep.subr.mxu0 0.0
        %2574 = vmatpush1.xpose.msra.mxu0 0.0
        %2575 = vmatprep.subr.mxu0 0.0
        %2576 = vmatpush1.xpose.msra.mxu0 0.0
        %2577 = vmatprep.subr.mxu0 0.0
        %2578 = vmatpush1.xpose.msra.mxu0 0.0
        %2579 = vmatprep.subr.mxu0 0.0
        %2580 = vmatpush1.xpose.msra.mxu0 0.0
        %2581 = vmatprep.subr.mxu0 0.0
        %2582 = vmatpush1.xpose.msra.mxu0 0.0
        %2583 = vmatprep.subr.mxu0 0.0
        %2584 = vmatpush1.xpose.msra.mxu0 0.0
        %2585 = vmatprep.subr.mxu0 0.0
        %2586 = vmatpush1.xpose.msra.mxu0 0.0
        %2587 = vmatprep.subr.mxu0 0.0
        %2588 = vmatpush1.xpose.msra.mxu0 0.0
        %2589 = vmatprep.subr.mxu0 0.0
        %2590 = vmatpush1.xpose.msra.mxu0 0.0
        %2591 = vmatprep.subr.mxu0 0.0
        %2592 = vmatpush1.xpose.msra.mxu0 0.0
        %2593 = vmatprep.subr.mxu0 0.0
        %2594 = vmatpush1.xpose.msra.mxu0 0.0
        %2595 = vmatprep.subr.mxu0 0.0
        %2596 = vmatpush1.xpose.msra.mxu0 0.0
        %2597 = vmatprep.subr.mxu0 0.0
        %2598 = vmatpush1.xpose.msra.mxu0 0.0
        %2599 = vmatprep.subr.mxu0 0.0
        %2600 = vmatpush1.xpose.msra.mxu0 0.0
        %2601 = vmatprep.subr.mxu0 0.0
        %2602 = vmatpush1.xpose.msra.mxu0 0.0
        %2603 = vmatprep.subr.mxu0 0.0
        %2604 = vmatpush1.xpose.msra.mxu0 0.0
        %2605 = vmatprep.subr.mxu0 0.0
        %2606 = vmatpush1.xpose.msra.mxu0 0.0
        %2607 = vmatprep.subr.mxu0 0.0
        %2608 = vmatpush1.xpose.msra.mxu0 0.0
        %2609 = vmatprep.subr.mxu0 0.0
        %2610 = vmatpush1.xpose.msra.mxu0 0.0
        %2611 = vmatprep.subr.mxu0 0.0
        %2612 = vmatpush1.xpose.msra.mxu0 0.0
        %2613 = vmatprep.subr.mxu0 0.0
        %2614 = vmatpush1.xpose.msra.mxu0 0.0
        %2615 = vmatprep.subr.mxu0 0.0
        %2616 = vmatpush1.xpose.msra.mxu0 0.0
        %2617 = vmatprep.subr.mxu0 0.0
        %2618 = vmatpush1.xpose.msra.mxu0 0.0
        %2619 = vmatprep.subr.mxu0 0.0
        %2620 = vmatpush1.xpose.msra.mxu0 0.0
        %2621 = vmatprep.subr.mxu0 0.0
        %2622 = vmatpush1.xpose.msra.mxu0 0.0
        %2623 = vmatprep.subr.mxu0 0.0
        %2624 = vmatpush1.xpose.msra.mxu0 0.0
        %2625 = vmatprep.subr.mxu0 0.0
        %2626 = vmatpush1.xpose.msra.mxu0 0.0
        %2627 = vmatprep.subr.mxu0 0.0
        %2628 = vmatpush1.xpose.msra.mxu0 0.0
        %2629 = vmatprep.subr.mxu0 0.0
        %2630 = vmatpush1.xpose.msra.mxu0 0.0
        %2631 = vmatprep.mubr.f32.mxu0 0.0
        %2632 = vmatmul.mubr.f32.gmra.mrb[0].mxu0 %v2562
        %v2633 = vpop.f32.mrb[0].mxu0
        %v2634 = vadd.f32 0.0, %v2633
        %v2635 = vpop.f32.mrb[0].mxu0
        %2636 = vdwg.mxu0
        %v2638 = vsel %vm967, %v791, 0
        %v2641 = vsel %vm967, %v877, 0
        %2643 = vmatprep.subr.mxu0 0.0
        %2644 = vmatpush1.xpose.msra.mxu0 %v2641
        %2645 = vmatprep.subr.mxu0 0.0
        %2646 = vmatpush1.xpose.msra.mxu0 0.0
        %2647 = vmatprep.subr.mxu0 0.0
        %2648 = vmatpush1.xpose.msra.mxu0 0.0
        %2649 = vmatprep.subr.mxu0 0.0
        %2650 = vmatpush1.xpose.msra.mxu0 0.0
        %2651 = vmatprep.subr.mxu0 0.0
        %2652 = vmatpush1.xpose.msra.mxu0 0.0
        %2653 = vmatprep.subr.mxu0 0.0
        %2654 = vmatpush1.xpose.msra.mxu0 0.0
        %2655 = vmatprep.subr.mxu0 0.0
        %2656 = vmatpush1.xpose.msra.mxu0 0.0
        %2657 = vmatprep.subr.mxu0 0.0
        %2658 = vmatpush1.xpose.msra.mxu0 0.0
        %2659 = vmatprep.subr.mxu0 0.0
        %2660 = vmatpush1.xpose.msra.mxu0 0.0
        %2661 = vmatprep.subr.mxu0 0.0
        %2662 = vmatpush1.xpose.msra.mxu0 0.0
        %2663 = vmatprep.subr.mxu0 0.0
        %2664 = vmatpush1.xpose.msra.mxu0 0.0
        %2665 = vmatprep.subr.mxu0 0.0
        %2666 = vmatpush1.xpose.msra.mxu0 0.0
        %2667 = vmatprep.subr.mxu0 0.0
        %2668 = vmatpush1.xpose.msra.mxu0 0.0
        %2669 = vmatprep.subr.mxu0 0.0
        %2670 = vmatpush1.xpose.msra.mxu0 0.0
        %2671 = vmatprep.subr.mxu0 0.0
        %2672 = vmatpush1.xpose.msra.mxu0 0.0
        %2673 = vmatprep.subr.mxu0 0.0
        %2674 = vmatpush1.xpose.msra.mxu0 0.0
        %2675 = vmatprep.subr.mxu0 0.0
        %2676 = vmatpush1.xpose.msra.mxu0 0.0
        %2677 = vmatprep.subr.mxu0 0.0
        %2678 = vmatpush1.xpose.msra.mxu0 0.0
        %2679 = vmatprep.subr.mxu0 0.0
        %2680 = vmatpush1.xpose.msra.mxu0 0.0
        %2681 = vmatprep.subr.mxu0 0.0
        %2682 = vmatpush1.xpose.msra.mxu0 0.0
        %2683 = vmatprep.subr.mxu0 0.0
        %2684 = vmatpush1.xpose.msra.mxu0 0.0
        %2685 = vmatprep.subr.mxu0 0.0
        %2686 = vmatpush1.xpose.msra.mxu0 0.0
        %2687 = vmatprep.subr.mxu0 0.0
        %2688 = vmatpush1.xpose.msra.mxu0 0.0
        %2689 = vmatprep.subr.mxu0 0.0
        %2690 = vmatpush1.xpose.msra.mxu0 0.0
        %2691 = vmatprep.subr.mxu0 0.0
        %2692 = vmatpush1.xpose.msra.mxu0 0.0
        %2693 = vmatprep.subr.mxu0 0.0
        %2694 = vmatpush1.xpose.msra.mxu0 0.0
        %2695 = vmatprep.subr.mxu0 0.0
        %2696 = vmatpush1.xpose.msra.mxu0 0.0
        %2697 = vmatprep.subr.mxu0 0.0
        %2698 = vmatpush1.xpose.msra.mxu0 0.0
        %2699 = vmatprep.subr.mxu0 0.0
        %2700 = vmatpush1.xpose.msra.mxu0 0.0
        %2701 = vmatprep.subr.mxu0 0.0
        %2702 = vmatpush1.xpose.msra.mxu0 0.0
        %2703 = vmatprep.subr.mxu0 0.0
        %2704 = vmatpush1.xpose.msra.mxu0 0.0
        %2705 = vmatprep.subr.mxu0 0.0
        %2706 = vmatpush1.xpose.msra.mxu0 0.0
        %2707 = vmatprep.mubr.f32.mxu0 0.0
        %2708 = vmatmul.mubr.f32.gmra.mrb[0].mxu0 %v2638
        %v2709 = vpop.f32.mrb[0].mxu0
        %v2710 = vadd.f32 0.0, %v2709
        %v2711 = vpop.f32.mrb[0].mxu0
        %2712 = vdwg.mxu0
        %v2713 = vmul.f32 %v2634, 0.125
        %v2714 = vmul.f32 %v2710, 0.125
        %v2715 = vsel %vm1122, %v2713, -inf
        %2716 = vmax.xlane.f32.xlu0 %v2715
        %v2717 = vpop.xlane.xlu0 %2716
        %v2718 = vsel %vm1122, %v2714, -inf
        %2719 = vmax.xlane.f32.xlu0 %v2718
        %v2720 = vpop.xlane.xlu0 %2719
        %v2721 = vsub.f32 %v2713, %v2717
        %v2722 = vsub.f32 %v2714, %v2720
        %v2723 = vmul.f32 %v2721, 1.442695
        %v2724 = vpow.pop %v2723
        %v2725 = vmul.f32 %v2722, 1.442695
        %v2726 = vpow.pop %v2725
        %v2727 = vsel %vm1122, %v2724, 0.0
        %2728 = vadd.xlane.f32.xlu0 %v2727
        %v2729 = vpop.xlane.xlu0 %2728
        %v2730 = vsel %vm1122, %v2726, 0.0
        %2731 = vadd.xlane.f32.xlu0 %v2730
        %v2732 = vpop.xlane.xlu0 %2731
        %v2733 = vrcp.pop %v2729
        %v2734 = vrcp.pop %v2732
        %v2735 = vmul.f32 %v2724, %v2733
        %v2736 = vmul.f32 %v2726, %v2734
        %v2738 = vsel %vm1122, %v2735, 0
        %2740 = vmatprep.subr.mxu0 0.0
        %2741 = vmatpush1.msra.mxu0 %v959
        %2742 = vmatprep.subr.mxu0 0.0
        %2743 = vmatpush1.msra.mxu0 0.0
        %2744 = vmatprep.subr.mxu0 0.0
        %2745 = vmatpush1.msra.mxu0 0.0
        %2746 = vmatprep.subr.mxu0 0.0
        %2747 = vmatpush1.msra.mxu0 0.0
        %2748 = vmatprep.subr.mxu0 0.0
        %2749 = vmatpush1.msra.mxu0 0.0
        %2750 = vmatprep.subr.mxu0 0.0
        %2751 = vmatpush1.msra.mxu0 0.0
        %2752 = vmatprep.subr.mxu0 0.0
        %2753 = vmatpush1.msra.mxu0 0.0
        %2754 = vmatprep.subr.mxu0 0.0
        %2755 = vmatpush1.msra.mxu0 0.0
        %2756 = vmatprep.subr.mxu0 0.0
        %2757 = vmatpush1.msra.mxu0 0.0
        %2758 = vmatprep.subr.mxu0 0.0
        %2759 = vmatpush1.msra.mxu0 0.0
        %2760 = vmatprep.subr.mxu0 0.0
        %2761 = vmatpush1.msra.mxu0 0.0
        %2762 = vmatprep.subr.mxu0 0.0
        %2763 = vmatpush1.msra.mxu0 0.0
        %2764 = vmatprep.subr.mxu0 0.0
        %2765 = vmatpush1.msra.mxu0 0.0
        %2766 = vmatprep.subr.mxu0 0.0
        %2767 = vmatpush1.msra.mxu0 0.0
        %2768 = vmatprep.subr.mxu0 0.0
        %2769 = vmatpush1.msra.mxu0 0.0
        %2770 = vmatprep.subr.mxu0 0.0
        %2771 = vmatpush1.msra.mxu0 0.0
        %2772 = vmatprep.subr.mxu0 0.0
        %2773 = vmatpush1.msra.mxu0 0.0
        %2774 = vmatprep.subr.mxu0 0.0
        %2775 = vmatpush1.msra.mxu0 0.0
        %2776 = vmatprep.subr.mxu0 0.0
        %2777 = vmatpush1.msra.mxu0 0.0
        %2778 = vmatprep.subr.mxu0 0.0
        %2779 = vmatpush1.msra.mxu0 0.0
        %2780 = vmatprep.subr.mxu0 0.0
        %2781 = vmatpush1.msra.mxu0 0.0
        %2782 = vmatprep.subr.mxu0 0.0
        %2783 = vmatpush1.msra.mxu0 0.0
        %2784 = vmatprep.subr.mxu0 0.0
        %2785 = vmatpush1.msra.mxu0 0.0
        %2786 = vmatprep.subr.mxu0 0.0
        %2787 = vmatpush1.msra.mxu0 0.0
        %2788 = vmatprep.subr.mxu0 0.0
        %2789 = vmatpush1.msra.mxu0 0.0
        %2790 = vmatprep.subr.mxu0 0.0
        %2791 = vmatpush1.msra.mxu0 0.0
        %2792 = vmatprep.subr.mxu0 0.0
        %2793 = vmatpush1.msra.mxu0 0.0
        %2794 = vmatprep.subr.mxu0 0.0
        %2795 = vmatpush1.msra.mxu0 0.0
        %2796 = vmatprep.subr.mxu0 0.0
        %2797 = vmatpush1.msra.mxu0 0.0
        %2798 = vmatprep.subr.mxu0 0.0
        %2799 = vmatpush1.msra.mxu0 0.0
        %2800 = vmatprep.subr.mxu0 0.0
        %2801 = vmatpush1.msra.mxu0 0.0
        %2802 = vmatprep.subr.mxu0 0.0
        %2803 = vmatpush1.msra.mxu0 0.0
        %2804 = vmatprep.mubr.f32.mxu0 0.0
        %2805 = vmatmul.mubr.f32.gmra.mrb[0].mxu0 %v2738
        %v2806 = vpop.f32.mrb[0].mxu0
        %v2807 = vadd.f32 0.0, %v2806
        %v2808 = vpop.f32.mrb[0].mxu0
        %2809 = vdwg.mxu0
        %v2811 = vsel %vm1122, %v2736, 0
        %2813 = vmatprep.subr.mxu0 0.0
        %2814 = vmatpush1.msra.mxu0 %v963
        %2815 = vmatprep.subr.mxu0 0.0
        %2816 = vmatpush1.msra.mxu0 0.0
        %2817 = vmatprep.subr.mxu0 0.0
        %2818 = vmatpush1.msra.mxu0 0.0
        %2819 = vmatprep.subr.mxu0 0.0
        %2820 = vmatpush1.msra.mxu0 0.0
        %2821 = vmatprep.subr.mxu0 0.0
        %2822 = vmatpush1.msra.mxu0 0.0
        %2823 = vmatprep.subr.mxu0 0.0
        %2824 = vmatpush1.msra.mxu0 0.0
        %2825 = vmatprep.subr.mxu0 0.0
        %2826 = vmatpush1.msra.mxu0 0.0
        %2827 = vmatprep.subr.mxu0 0.0
        %2828 = vmatpush1.msra.mxu0 0.0
        %2829 = vmatprep.subr.mxu0 0.0
        %2830 = vmatpush1.msra.mxu0 0.0
        %2831 = vmatprep.subr.mxu0 0.0
        %2832 = vmatpush1.msra.mxu0 0.0
        %2833 = vmatprep.subr.mxu0 0.0
        %2834 = vmatpush1.msra.mxu0 0.0
        %2835 = vmatprep.subr.mxu0 0.0
        %2836 = vmatpush1.msra.mxu0 0.0
        %2837 = vmatprep.subr.mxu0 0.0
        %2838 = vmatpush1.msra.mxu0 0.0
        %2839 = vmatprep.subr.mxu0 0.0
        %2840 = vmatpush1.msra.mxu0 0.0
        %2841 = vmatprep.subr.mxu0 0.0
        %2842 = vmatpush1.msra.mxu0 0.0
        %2843 = vmatprep.subr.mxu0 0.0
        %2844 = vmatpush1.msra.mxu0 0.0
        %2845 = vmatprep.subr.mxu0 0.0
        %2846 = vmatpush1.msra.mxu0 0.0
        %2847 = vmatprep.subr.mxu0 0.0
        %2848 = vmatpush1.msra.mxu0 0.0
        %2849 = vmatprep.subr.mxu0 0.0
        %2850 = vmatpush1.msra.mxu0 0.0
        %2851 = vmatprep.subr.mxu0 0.0
        %2852 = vmatpush1.msra.mxu0 0.0
        %2853 = vmatprep.subr.mxu0 0.0
        %2854 = vmatpush1.msra.mxu0 0.0
        %2855 = vmatprep.subr.mxu0 0.0
        %2856 = vmatpush1.msra.mxu0 0.0
        %2857 = vmatprep.subr.mxu0 0.0
        %2858 = vmatpush1.msra.mxu0 0.0
        %2859 = vmatprep.subr.mxu0 0.0
        %2860 = vmatpush1.msra.mxu0 0.0
        %2861 = vmatprep.subr.mxu0 0.0
        %2862 = vmatpush1.msra.mxu0 0.0
        %2863 = vmatprep.subr.mxu0 0.0
        %2864 = vmatpush1.msra.mxu0 0.0
        %2865 = vmatprep.subr.mxu0 0.0
        %2866 = vmatpush1.msra.mxu0 0.0
        %2867 = vmatprep.subr.mxu0 0.0
        %2868 = vmatpush1.msra.mxu0 0.0
        %2869 = vmatprep.subr.mxu0 0.0
        %2870 = vmatpush1.msra.mxu0 0.0
        %2871 = vmatprep.subr.mxu0 0.0
        %2872 = vmatpush1.msra.mxu0 0.0
        %2873 = vmatprep.subr.mxu0 0.0
        %2874 = vmatpush1.msra.mxu0 0.0
        %2875 = vmatprep.subr.mxu0 0.0
        %2876 = vmatpush1.msra.mxu0 0.0
        %2877 = vmatprep.mubr.f32.mxu0 0.0
        %2878 = vmatmul.mubr.f32.gmra.mrb[0].mxu0 %v2811
        %v2879 = vpop.f32.mrb[0].mxu0
        %v2880 = vadd.f32 0.0, %v2879
        %v2881 = vpop.f32.mrb[0].mxu0
        %2882 = vdwg.mxu0
        %v2883 = vpack.c.bf16 %v2880, %v2807
        %v2892 = vunpack.c.l.b16 %v492
        %v2893 = vunpack.c.l.b16 %v493
        %v2894 = vunpack.c.l.b16 %v494
        %v2895 = vunpack.c.l.b16 %v495
        %v2896 = vunpack.c.l.b16 %v496
        %v2897 = vunpack.c.l.b16 %v497
        %v2898 = vunpack.c.l.b16 %v498
        %v2899 = vunpack.c.l.b16 %v499
        %v2900 = vpack.c.b16 %v2893, %v2892
        %v2901 = vpack.c.b16 %v2895, %v2894
        %v2902 = vpack.c.b16 %v2897, %v2896
        %v2903 = vpack.c.b16 %v2899, %v2898
        %v2909 = vsel %vm967, %v2883, 0
        %2911 = vmatprep.subr.bf16.mxu0 0
        %2912 = vmatpush1.bf16.msra.mxu0 %v2900
        %2913 = vmatprep.subr.bf16.mxu0 0
        %2914 = vmatpush1.bf16.msra.mxu0 %v2901
        %2915 = vmatprep.subr.bf16.mxu0 0
        %2916 = vmatpush1.bf16.msra.mxu0 %v2902
        %2917 = vmatprep.subr.bf16.mxu0 0
        %2918 = vmatpush1.bf16.msra.mxu0 %v2903
        %2919 = vmatprep.subr.bf16.mxu0 0
        %2920 = vmatpush1.bf16.msra.mxu0 0
        %2921 = vmatprep.subr.bf16.mxu0 0
        %2922 = vmatpush1.bf16.msra.mxu0 0
        %2923 = vmatprep.subr.bf16.mxu0 0
        %2924 = vmatpush1.bf16.msra.mxu0 0
        %2925 = vmatprep.subr.bf16.mxu0 0
        %2926 = vmatpush1.bf16.msra.mxu0 0
        %2927 = vmatprep.subr.bf16.mxu0 0
        %2928 = vmatpush1.bf16.msra.mxu0 0
        %2929 = vmatprep.subr.bf16.mxu0 0
        %2930 = vmatpush1.bf16.msra.mxu0 0
        %2931 = vmatprep.subr.bf16.mxu0 0
        %2932 = vmatpush1.bf16.msra.mxu0 0
        %2933 = vmatprep.subr.bf16.mxu0 0
        %2934 = vmatpush1.bf16.msra.mxu0 0
        %2935 = vmatprep.subr.bf16.mxu0 0
        %2936 = vmatpush1.bf16.msra.mxu0 0
        %2937 = vmatprep.subr.bf16.mxu0 0
        %2938 = vmatpush1.bf16.msra.mxu0 0
        %2939 = vmatprep.subr.bf16.mxu0 0
        %2940 = vmatpush1.bf16.msra.mxu0 0
        %2941 = vmatprep.subr.bf16.mxu0 0
        %2942 = vmatpush1.bf16.msra.mxu0 0
        %2943 = vmatprep.mubr.bf16.mxu0 0
        %2944 = vmatmul.mubr.bf16.gmra.mrb[0].mxu0 %v2909
        %v2945 = vpop.f32.mrb[0].mxu0
        %v2946 = vadd.f32 0.0, %v2945
        %v2947 = vpop.f32.mrb[0].mxu0
        %v2948 = vpop.f32.mrb[0].mxu0
        %v2949 = vadd.f32 0.0, %v2948
        %v2950 = vpop.f32.mrb[0].mxu0
        %2951 = vdwg.mxu0
        %v2952 = vadd.f32 %v2559, %v2946
        %v2953 = vadd.f32 %v2560, %v2949
        %2954 = vrot.lane.b32.xlu0 %v787, 64
        %v2955 = vpop.permute.xlu0 %2954
        %2956 = vrot.lane.b32.xlu0 %v873, 64
        %v2957 = vpop.permute.xlu0 %2956
        %v2958 = vsel %vm967, %v2955, 0
        %v2960 = vsel %vm967, %v2957, 0
        %2962 = vmatprep.subr.mxu0 0.0
        %2963 = vmatpush1.xpose.msra.mxu0 %v2960
        %2964 = vmatprep.subr.mxu0 0.0
        %2965 = vmatpush1.xpose.msra.mxu0 0.0
        %2966 = vmatprep.subr.mxu0 0.0
        %2967 = vmatpush1.xpose.msra.mxu0 0.0
        %2968 = vmatprep.subr.mxu0 0.0
        %2969 = vmatpush1.xpose.msra.mxu0 0.0
        %2970 = vmatprep.subr.mxu0 0.0
        %2971 = vmatpush1.xpose.msra.mxu0 0.0
        %2972 = vmatprep.subr.mxu0 0.0
        %2973 = vmatpush1.xpose.msra.mxu0 0.0
        %2974 = vmatprep.subr.mxu0 0.0
        %2975 = vmatpush1.xpose.msra.mxu0 0.0
        %2976 = vmatprep.subr.mxu0 0.0
        %2977 = vmatpush1.xpose.msra.mxu0 0.0
        %2978 = vmatprep.subr.mxu0 0.0
        %2979 = vmatpush1.xpose.msra.mxu0 0.0
        %2980 = vmatprep.subr.mxu0 0.0
        %2981 = vmatpush1.xpose.msra.mxu0 0.0
        %2982 = vmatprep.subr.mxu0 0.0
        %2983 = vmatpush1.xpose.msra.mxu0 0.0
        %2984 = vmatprep.subr.mxu0 0.0
        %2985 = vmatpush1.xpose.msra.mxu0 0.0
        %2986 = vmatprep.subr.mxu0 0.0
        %2987 = vmatpush1.xpose.msra.mxu0 0.0
        %2988 = vmatprep.subr.mxu0 0.0
        %2989 = vmatpush1.xpose.msra.mxu0 0.0
        %2990 = vmatprep.subr.mxu0 0.0
        %2991 = vmatpush1.xpose.msra.mxu0 0.0
        %2992 = vmatprep.subr.mxu0 0.0
        %2993 = vmatpush1.xpose.msra.mxu0 0.0
        %2994 = vmatprep.subr.mxu0 0.0
        %2995 = vmatpush1.xpose.msra.mxu0 0.0
        %2996 = vmatprep.subr.mxu0 0.0
        %2997 = vmatpush1.xpose.msra.mxu0 0.0
        %2998 = vmatprep.subr.mxu0 0.0
        %2999 = vmatpush1.xpose.msra.mxu0 0.0
        %3000 = vmatprep.subr.mxu0 0.0
        %3001 = vmatpush1.xpose.msra.mxu0 0.0
        %3002 = vmatprep.subr.mxu0 0.0
        %3003 = vmatpush1.xpose.msra.mxu0 0.0
        %3004 = vmatprep.subr.mxu0 0.0
        %3005 = vmatpush1.xpose.msra.mxu0 0.0
        %3006 = vmatprep.subr.mxu0 0.0
        %3007 = vmatpush1.xpose.msra.mxu0 0.0
        %3008 = vmatprep.subr.mxu0 0.0
        %3009 = vmatpush1.xpose.msra.mxu0 0.0
        %3010 = vmatprep.subr.mxu0 0.0
        %3011 = vmatpush1.xpose.msra.mxu0 0.0
        %3012 = vmatprep.subr.mxu0 0.0
        %3013 = vmatpush1.xpose.msra.mxu0 0.0
        %3014 = vmatprep.subr.mxu0 0.0
        %3015 = vmatpush1.xpose.msra.mxu0 0.0
        %3016 = vmatprep.subr.mxu0 0.0
        %3017 = vmatpush1.xpose.msra.mxu0 0.0
        %3018 = vmatprep.subr.mxu0 0.0
        %3019 = vmatpush1.xpose.msra.mxu0 0.0
        %3020 = vmatprep.subr.mxu0 0.0
        %3021 = vmatpush1.xpose.msra.mxu0 0.0
        %3022 = vmatprep.subr.mxu0 0.0
        %3023 = vmatpush1.xpose.msra.mxu0 0.0
        %3024 = vmatprep.subr.mxu0 0.0
        %3025 = vmatpush1.xpose.msra.mxu0 0.0
        %3026 = vmatprep.mubr.f32.mxu0 0.0
        %3027 = vmatmul.mubr.f32.gmra.mrb[0].mxu0 %v2958
        %v3028 = vpop.f32.mrb[0].mxu0
        %v3029 = vadd.f32 0.0, %v3028
        %v3030 = vpop.f32.mrb[0].mxu0
        %3031 = vdwg.mxu0
        %3032 = vrot.lane.b32.xlu0 %v791, 64
        %v3033 = vpop.permute.xlu0 %3032
        %3034 = vrot.lane.b32.xlu0 %v877, 64
        %v3035 = vpop.permute.xlu0 %3034
        %v3036 = vsel %vm967, %v3033, 0
        %v3038 = vsel %vm967, %v3035, 0
        %3040 = vmatprep.subr.mxu0 0.0
        %3041 = vmatpush1.xpose.msra.mxu0 %v3038
        %3042 = vmatprep.subr.mxu0 0.0
        %3043 = vmatpush1.xpose.msra.mxu0 0.0
        %3044 = vmatprep.subr.mxu0 0.0
        %3045 = vmatpush1.xpose.msra.mxu0 0.0
        %3046 = vmatprep.subr.mxu0 0.0
        %3047 = vmatpush1.xpose.msra.mxu0 0.0
        %3048 = vmatprep.subr.mxu0 0.0
        %3049 = vmatpush1.xpose.msra.mxu0 0.0
        %3050 = vmatprep.subr.mxu0 0.0
        %3051 = vmatpush1.xpose.msra.mxu0 0.0
        %3052 = vmatprep.subr.mxu0 0.0
        %3053 = vmatpush1.xpose.msra.mxu0 0.0
        %3054 = vmatprep.subr.mxu0 0.0
        %3055 = vmatpush1.xpose.msra.mxu0 0.0
        %3056 = vmatprep.subr.mxu0 0.0
        %3057 = vmatpush1.xpose.msra.mxu0 0.0
        %3058 = vmatprep.subr.mxu0 0.0
        %3059 = vmatpush1.xpose.msra.mxu0 0.0
        %3060 = vmatprep.subr.mxu0 0.0
        %3061 = vmatpush1.xpose.msra.mxu0 0.0
        %3062 = vmatprep.subr.mxu0 0.0
        %3063 = vmatpush1.xpose.msra.mxu0 0.0
        %3064 = vmatprep.subr.mxu0 0.0
        %3065 = vmatpush1.xpose.msra.mxu0 0.0
        %3066 = vmatprep.subr.mxu0 0.0
        %3067 = vmatpush1.xpose.msra.mxu0 0.0
        %3068 = vmatprep.subr.mxu0 0.0
        %3069 = vmatpush1.xpose.msra.mxu0 0.0
        %3070 = vmatprep.subr.mxu0 0.0
        %3071 = vmatpush1.xpose.msra.mxu0 0.0
        %3072 = vmatprep.subr.mxu0 0.0
        %3073 = vmatpush1.xpose.msra.mxu0 0.0
        %3074 = vmatprep.subr.mxu0 0.0
        %3075 = vmatpush1.xpose.msra.mxu0 0.0
        %3076 = vmatprep.subr.mxu0 0.0
        %3077 = vmatpush1.xpose.msra.mxu0 0.0
        %3078 = vmatprep.subr.mxu0 0.0
        %3079 = vmatpush1.xpose.msra.mxu0 0.0
        %3080 = vmatprep.subr.mxu0 0.0
        %3081 = vmatpush1.xpose.msra.mxu0 0.0
        %3082 = vmatprep.subr.mxu0 0.0
        %3083 = vmatpush1.xpose.msra.mxu0 0.0
        %3084 = vmatprep.subr.mxu0 0.0
        %3085 = vmatpush1.xpose.msra.mxu0 0.0
        %3086 = vmatprep.subr.mxu0 0.0
        %3087 = vmatpush1.xpose.msra.mxu0 0.0
        %3088 = vmatprep.subr.mxu0 0.0
        %3089 = vmatpush1.xpose.msra.mxu0 0.0
        %3090 = vmatprep.subr.mxu0 0.0
        %3091 = vmatpush1.xpose.msra.mxu0 0.0
        %3092 = vmatprep.subr.mxu0 0.0
        %3093 = vmatpush1.xpose.msra.mxu0 0.0
        %3094 = vmatprep.subr.mxu0 0.0
        %3095 = vmatpush1.xpose.msra.mxu0 0.0
        %3096 = vmatprep.subr.mxu0 0.0
        %3097 = vmatpush1.xpose.msra.mxu0 0.0
        %3098 = vmatprep.subr.mxu0 0.0
        %3099 = vmatpush1.xpose.msra.mxu0 0.0
        %3100 = vmatprep.subr.mxu0 0.0
        %3101 = vmatpush1.xpose.msra.mxu0 0.0
        %3102 = vmatprep.subr.mxu0 0.0
        %3103 = vmatpush1.xpose.msra.mxu0 0.0
        %3104 = vmatprep.mubr.f32.mxu0 0.0
        %3105 = vmatmul.mubr.f32.gmra.mrb[0].mxu0 %v3036
        %v3106 = vpop.f32.mrb[0].mxu0
        %v3107 = vadd.f32 0.0, %v3106
        %v3108 = vpop.f32.mrb[0].mxu0
        %3109 = vdwg.mxu0
        %v3110 = vmul.f32 %v3029, 0.125
        %v3111 = vmul.f32 %v3107, 0.125
        %v3112 = vsel %vm1122, %v3110, -inf
        %3113 = vmax.xlane.f32.xlu0 %v3112
        %v3114 = vpop.xlane.xlu0 %3113
        %v3115 = vsel %vm1122, %v3111, -inf
        %3116 = vmax.xlane.f32.xlu0 %v3115
        %v3117 = vpop.xlane.xlu0 %3116
        %v3118 = vsub.f32 %v3110, %v3114
        %v3119 = vsub.f32 %v3111, %v3117
        %v3120 = vmul.f32 %v3118, 1.442695
        %v3121 = vpow.pop %v3120
        %v3122 = vmul.f32 %v3119, 1.442695
        %v3123 = vpow.pop %v3122
        %v3124 = vsel %vm1122, %v3121, 0.0
        %3125 = vadd.xlane.f32.xlu0 %v3124
        %v3126 = vpop.xlane.xlu0 %3125
        %v3127 = vsel %vm1122, %v3123, 0.0
        %3128 = vadd.xlane.f32.xlu0 %v3127
        %v3129 = vpop.xlane.xlu0 %3128
        %v3130 = vrcp.pop %v3126
        %v3131 = vrcp.pop %v3129
        %v3132 = vmul.f32 %v3121, %v3130
        %v3133 = vmul.f32 %v3123, %v3131
        %3135 = vrot.lane.b32.xlu0 %v959, 64
        %v3136 = vpop.permute.xlu0 %3135
        %v3139 = vsel %vm1122, %v3132, 0
        %3141 = vmatprep.subr.mxu0 0.0
        %3142 = vmatpush1.msra.mxu0 %v3136
        %3143 = vmatprep.subr.mxu0 0.0
        %3144 = vmatpush1.msra.mxu0 0.0
        %3145 = vmatprep.subr.mxu0 0.0
        %3146 = vmatpush1.msra.mxu0 0.0
        %3147 = vmatprep.subr.mxu0 0.0
        %3148 = vmatpush1.msra.mxu0 0.0
        %3149 = vmatprep.subr.mxu0 0.0
        %3150 = vmatpush1.msra.mxu0 0.0
        %3151 = vmatprep.subr.mxu0 0.0
        %3152 = vmatpush1.msra.mxu0 0.0
        %3153 = vmatprep.subr.mxu0 0.0
        %3154 = vmatpush1.msra.mxu0 0.0
        %3155 = vmatprep.subr.mxu0 0.0
        %3156 = vmatpush1.msra.mxu0 0.0
        %3157 = vmatprep.subr.mxu0 0.0
        %3158 = vmatpush1.msra.mxu0 0.0
        %3159 = vmatprep.subr.mxu0 0.0
        %3160 = vmatpush1.msra.mxu0 0.0
        %3161 = vmatprep.subr.mxu0 0.0
        %3162 = vmatpush1.msra.mxu0 0.0
        %3163 = vmatprep.subr.mxu0 0.0
        %3164 = vmatpush1.msra.mxu0 0.0
        %3165 = vmatprep.subr.mxu0 0.0
        %3166 = vmatpush1.msra.mxu0 0.0
        %3167 = vmatprep.subr.mxu0 0.0
        %3168 = vmatpush1.msra.mxu0 0.0
        %3169 = vmatprep.subr.mxu0 0.0
        %3170 = vmatpush1.msra.mxu0 0.0
        %3171 = vmatprep.subr.mxu0 0.0
        %3172 = vmatpush1.msra.mxu0 0.0
        %3173 = vmatprep.subr.mxu0 0.0
        %3174 = vmatpush1.msra.mxu0 0.0
        %3175 = vmatprep.subr.mxu0 0.0
        %3176 = vmatpush1.msra.mxu0 0.0
        %3177 = vmatprep.subr.mxu0 0.0
        %3178 = vmatpush1.msra.mxu0 0.0
        %3179 = vmatprep.subr.mxu0 0.0
        %3180 = vmatpush1.msra.mxu0 0.0
        %3181 = vmatprep.subr.mxu0 0.0
        %3182 = vmatpush1.msra.mxu0 0.0
        %3183 = vmatprep.subr.mxu0 0.0
        %3184 = vmatpush1.msra.mxu0 0.0
        %3185 = vmatprep.subr.mxu0 0.0
        %3186 = vmatpush1.msra.mxu0 0.0
        %3187 = vmatprep.subr.mxu0 0.0
        %3188 = vmatpush1.msra.mxu0 0.0
        %3189 = vmatprep.subr.mxu0 0.0
        %3190 = vmatpush1.msra.mxu0 0.0
        %3191 = vmatprep.subr.mxu0 0.0
        %3192 = vmatpush1.msra.mxu0 0.0
        %3193 = vmatprep.subr.mxu0 0.0
        %3194 = vmatpush1.msra.mxu0 0.0
        %3195 = vmatprep.subr.mxu0 0.0
        %3196 = vmatpush1.msra.mxu0 0.0
        %3197 = vmatprep.subr.mxu0 0.0
        %3198 = vmatpush1.msra.mxu0 0.0
        %3199 = vmatprep.subr.mxu0 0.0
        %3200 = vmatpush1.msra.mxu0 0.0
        %3201 = vmatprep.subr.mxu0 0.0
        %3202 = vmatpush1.msra.mxu0 0.0
        %3203 = vmatprep.subr.mxu0 0.0
        %3204 = vmatpush1.msra.mxu0 0.0
        %3205 = vmatprep.mubr.f32.mxu0 0.0
        %3206 = vmatmul.mubr.f32.gmra.mrb[0].mxu0 %v3139
        %v3207 = vpop.f32.mrb[0].mxu0
        %v3208 = vadd.f32 0.0, %v3207
        %v3209 = vpop.f32.mrb[0].mxu0
        %3210 = vdwg.mxu0
        %3212 = vrot.lane.b32.xlu0 %v963, 64
        %v3213 = vpop.permute.xlu0 %3212
        %v3216 = vsel %vm1122, %v3133, 0
        %3218 = vmatprep.subr.mxu0 0.0
        %3219 = vmatpush1.msra.mxu0 %v3213
        %3220 = vmatprep.subr.mxu0 0.0
        %3221 = vmatpush1.msra.mxu0 0.0
        %3222 = vmatprep.subr.mxu0 0.0
        %3223 = vmatpush1.msra.mxu0 0.0
        %3224 = vmatprep.subr.mxu0 0.0
        %3225 = vmatpush1.msra.mxu0 0.0
        %3226 = vmatprep.subr.mxu0 0.0
        %3227 = vmatpush1.msra.mxu0 0.0
        %3228 = vmatprep.subr.mxu0 0.0
        %3229 = vmatpush1.msra.mxu0 0.0
        %3230 = vmatprep.subr.mxu0 0.0
        %3231 = vmatpush1.msra.mxu0 0.0
        %3232 = vmatprep.subr.mxu0 0.0
        %3233 = vmatpush1.msra.mxu0 0.0
        %3234 = vmatprep.subr.mxu0 0.0
        %3235 = vmatpush1.msra.mxu0 0.0
        %3236 = vmatprep.subr.mxu0 0.0
        %3237 = vmatpush1.msra.mxu0 0.0
        %3238 = vmatprep.subr.mxu0 0.0
        %3239 = vmatpush1.msra.mxu0 0.0
        %3240 = vmatprep.subr.mxu0 0.0
        %3241 = vmatpush1.msra.mxu0 0.0
        %3242 = vmatprep.subr.mxu0 0.0
        %3243 = vmatpush1.msra.mxu0 0.0
        %3244 = vmatprep.subr.mxu0 0.0
        %3245 = vmatpush1.msra.mxu0 0.0
        %3246 = vmatprep.subr.mxu0 0.0
        %3247 = vmatpush1.msra.mxu0 0.0
        %3248 = vmatprep.subr.mxu0 0.0
        %3249 = vmatpush1.msra.mxu0 0.0
        %3250 = vmatprep.subr.mxu0 0.0
        %3251 = vmatpush1.msra.mxu0 0.0
        %3252 = vmatprep.subr.mxu0 0.0
        %3253 = vmatpush1.msra.mxu0 0.0
        %3254 = vmatprep.subr.mxu0 0.0
        %3255 = vmatpush1.msra.mxu0 0.0
        %3256 = vmatprep.subr.mxu0 0.0
        %3257 = vmatpush1.msra.mxu0 0.0
        %3258 = vmatprep.subr.mxu0 0.0
        %3259 = vmatpush1.msra.mxu0 0.0
        %3260 = vmatprep.subr.mxu0 0.0
        %3261 = vmatpush1.msra.mxu0 0.0
        %3262 = vmatprep.subr.mxu0 0.0
        %3263 = vmatpush1.msra.mxu0 0.0
        %3264 = vmatprep.subr.mxu0 0.0
        %3265 = vmatpush1.msra.mxu0 0.0
        %3266 = vmatprep.subr.mxu0 0.0
        %3267 = vmatpush1.msra.mxu0 0.0
        %3268 = vmatprep.subr.mxu0 0.0
        %3269 = vmatpush1.msra.mxu0 0.0
        %3270 = vmatprep.subr.mxu0 0.0
        %3271 = vmatpush1.msra.mxu0 0.0
        %3272 = vmatprep.subr.mxu0 0.0
        %3273 = vmatpush1.msra.mxu0 0.0
        %3274 = vmatprep.subr.mxu0 0.0
        %3275 = vmatpush1.msra.mxu0 0.0
        %3276 = vmatprep.subr.mxu0 0.0
        %3277 = vmatpush1.msra.mxu0 0.0
        %3278 = vmatprep.subr.mxu0 0.0
        %3279 = vmatpush1.msra.mxu0 0.0
        %3280 = vmatprep.subr.mxu0 0.0
        %3281 = vmatpush1.msra.mxu0 0.0
        %3282 = vmatprep.mubr.f32.mxu0 0.0
        %3283 = vmatmul.mubr.f32.gmra.mrb[0].mxu0 %v3216
        %v3284 = vpop.f32.mrb[0].mxu0
        %v3285 = vadd.f32 0.0, %v3284
        %v3286 = vpop.f32.mrb[0].mxu0
        %3287 = vdwg.mxu0
        %v3288 = vpack.c.bf16 %v3285, %v3208
        %v3297 = vunpack.c.l.b16 %v500
        %v3298 = vunpack.c.l.b16 %v501
        %v3299 = vunpack.c.l.b16 %v502
        %v3300 = vunpack.c.l.b16 %v503
        %v3301 = vunpack.c.l.b16 %v504
        %v3302 = vunpack.c.l.b16 %v505
        %v3303 = vunpack.c.l.b16 %v506
        %v3304 = vunpack.c.l.b16 %v507
        %v3305 = vpack.c.b16 %v3298, %v3297
        %v3306 = vpack.c.b16 %v3300, %v3299
        %v3307 = vpack.c.b16 %v3302, %v3301
        %v3308 = vpack.c.b16 %v3304, %v3303
        %v3314 = vsel %vm967, %v3288, 0
        %3316 = vmatprep.subr.bf16.mxu0 0
        %3317 = vmatpush1.bf16.msra.mxu0 %v3305
        %3318 = vmatprep.subr.bf16.mxu0 0
        %3319 = vmatpush1.bf16.msra.mxu0 %v3306
        %3320 = vmatprep.subr.bf16.mxu0 0
        %3321 = vmatpush1.bf16.msra.mxu0 %v3307
        %3322 = vmatprep.subr.bf16.mxu0 0
        %3323 = vmatpush1.bf16.msra.mxu0 %v3308
        %3324 = vmatprep.subr.bf16.mxu0 0
        %3325 = vmatpush1.bf16.msra.mxu0 0
        %3326 = vmatprep.subr.bf16.mxu0 0
        %3327 = vmatpush1.bf16.msra.mxu0 0
        %3328 = vmatprep.subr.bf16.mxu0 0
        %3329 = vmatpush1.bf16.msra.mxu0 0
        %3330 = vmatprep.subr.bf16.mxu0 0
        %3331 = vmatpush1.bf16.msra.mxu0 0
        %3332 = vmatprep.subr.bf16.mxu0 0
        %3333 = vmatpush1.bf16.msra.mxu0 0
        %3334 = vmatprep.subr.bf16.mxu0 0
        %3335 = vmatpush1.bf16.msra.mxu0 0
        %3336 = vmatprep.subr.bf16.mxu0 0
        %3337 = vmatpush1.bf16.msra.mxu0 0
        %3338 = vmatprep.subr.bf16.mxu0 0
        %3339 = vmatpush1.bf16.msra.mxu0 0
        %3340 = vmatprep.subr.bf16.mxu0 0
        %3341 = vmatpush1.bf16.msra.mxu0 0
        %3342 = vmatprep.subr.bf16.mxu0 0
        %3343 = vmatpush1.bf16.msra.mxu0 0
        %3344 = vmatprep.subr.bf16.mxu0 0
        %3345 = vmatpush1.bf16.msra.mxu0 0
        %3346 = vmatprep.subr.bf16.mxu0 0
        %3347 = vmatpush1.bf16.msra.mxu0 0
        %3348 = vmatprep.mubr.bf16.mxu0 0
        %3349 = vmatmul.mubr.bf16.gmra.mrb[0].mxu0 %v3314
        %v3350 = vpop.f32.mrb[0].mxu0
        %v3351 = vadd.f32 0.0, %v3350
        %v3352 = vpop.f32.mrb[0].mxu0
        %v3353 = vpop.f32.mrb[0].mxu0
        %v3354 = vadd.f32 0.0, %v3353
        %v3355 = vpop.f32.mrb[0].mxu0
        %3356 = vdwg.mxu0
        %v3357 = vadd.f32 %v2952, %v3351
        %v3358 = vadd.f32 %v2953, %v3354
        %v3360 = vsel %vm967, %v789, 0
        %v3363 = vsel %vm967, %v875, 0
        %3365 = vmatprep.subr.mxu0 0.0
        %3366 = vmatpush1.xpose.msra.mxu0 %v3363
        %3367 = vmatprep.subr.mxu0 0.0
        %3368 = vmatpush1.xpose.msra.mxu0 0.0
        %3369 = vmatprep.subr.mxu0 0.0
        %3370 = vmatpush1.xpose.msra.mxu0 0.0
        %3371 = vmatprep.subr.mxu0 0.0
        %3372 = vmatpush1.xpose.msra.mxu0 0.0
        %3373 = vmatprep.subr.mxu0 0.0
        %3374 = vmatpush1.xpose.msra.mxu0 0.0
        %3375 = vmatprep.subr.mxu0 0.0
        %3376 = vmatpush1.xpose.msra.mxu0 0.0
        %3377 = vmatprep.subr.mxu0 0.0
        %3378 = vmatpush1.xpose.msra.mxu0 0.0
        %3379 = vmatprep.subr.mxu0 0.0
        %3380 = vmatpush1.xpose.msra.mxu0 0.0
        %3381 = vmatprep.subr.mxu0 0.0
        %3382 = vmatpush1.xpose.msra.mxu0 0.0
        %3383 = vmatprep.subr.mxu0 0.0
        %3384 = vmatpush1.xpose.msra.mxu0 0.0
        %3385 = vmatprep.subr.mxu0 0.0
        %3386 = vmatpush1.xpose.msra.mxu0 0.0
        %3387 = vmatprep.subr.mxu0 0.0
        %3388 = vmatpush1.xpose.msra.mxu0 0.0
        %3389 = vmatprep.subr.mxu0 0.0
        %3390 = vmatpush1.xpose.msra.mxu0 0.0
        %3391 = vmatprep.subr.mxu0 0.0
        %3392 = vmatpush1.xpose.msra.mxu0 0.0
        %3393 = vmatprep.subr.mxu0 0.0
        %3394 = vmatpush1.xpose.msra.mxu0 0.0
        %3395 = vmatprep.subr.mxu0 0.0
        %3396 = vmatpush1.xpose.msra.mxu0 0.0
        %3397 = vmatprep.subr.mxu0 0.0
        %3398 = vmatpush1.xpose.msra.mxu0 0.0
        %3399 = vmatprep.subr.mxu0 0.0
        %3400 = vmatpush1.xpose.msra.mxu0 0.0
        %3401 = vmatprep.subr.mxu0 0.0
        %3402 = vmatpush1.xpose.msra.mxu0 0.0
        %3403 = vmatprep.subr.mxu0 0.0
        %3404 = vmatpush1.xpose.msra.mxu0 0.0
        %3405 = vmatprep.subr.mxu0 0.0
        %3406 = vmatpush1.xpose.msra.mxu0 0.0
        %3407 = vmatprep.subr.mxu0 0.0
        %3408 = vmatpush1.xpose.msra.mxu0 0.0
        %3409 = vmatprep.subr.mxu0 0.0
        %3410 = vmatpush1.xpose.msra.mxu0 0.0
        %3411 = vmatprep.subr.mxu0 0.0
        %3412 = vmatpush1.xpose.msra.mxu0 0.0
        %3413 = vmatprep.subr.mxu0 0.0
        %3414 = vmatpush1.xpose.msra.mxu0 0.0
        %3415 = vmatprep.subr.mxu0 0.0
        %3416 = vmatpush1.xpose.msra.mxu0 0.0
        %3417 = vmatprep.subr.mxu0 0.0
        %3418 = vmatpush1.xpose.msra.mxu0 0.0
        %3419 = vmatprep.subr.mxu0 0.0
        %3420 = vmatpush1.xpose.msra.mxu0 0.0
        %3421 = vmatprep.subr.mxu0 0.0
        %3422 = vmatpush1.xpose.msra.mxu0 0.0
        %3423 = vmatprep.subr.mxu0 0.0
        %3424 = vmatpush1.xpose.msra.mxu0 0.0
        %3425 = vmatprep.subr.mxu0 0.0
        %3426 = vmatpush1.xpose.msra.mxu0 0.0
        %3427 = vmatprep.subr.mxu0 0.0
        %3428 = vmatpush1.xpose.msra.mxu0 0.0
        %3429 = vmatprep.mubr.f32.mxu0 0.0
        %3430 = vmatmul.mubr.f32.gmra.mrb[0].mxu0 %v3360
        %v3431 = vpop.f32.mrb[0].mxu0
        %v3432 = vadd.f32 0.0, %v3431
        %v3433 = vpop.f32.mrb[0].mxu0
        %3434 = vdwg.mxu0
        %v3436 = vsel %vm967, %v793, 0
        %v3439 = vsel %vm967, %v879, 0
        %3441 = vmatprep.subr.mxu0 0.0
        %3442 = vmatpush1.xpose.msra.mxu0 %v3439
        %3443 = vmatprep.subr.mxu0 0.0
        %3444 = vmatpush1.xpose.msra.mxu0 0.0
        %3445 = vmatprep.subr.mxu0 0.0
        %3446 = vmatpush1.xpose.msra.mxu0 0.0
        %3447 = vmatprep.subr.mxu0 0.0
        %3448 = vmatpush1.xpose.msra.mxu0 0.0
        %3449 = vmatprep.subr.mxu0 0.0
        %3450 = vmatpush1.xpose.msra.mxu0 0.0
        %3451 = vmatprep.subr.mxu0 0.0
        %3452 = vmatpush1.xpose.msra.mxu0 0.0
        %3453 = vmatprep.subr.mxu0 0.0
        %3454 = vmatpush1.xpose.msra.mxu0 0.0
        %3455 = vmatprep.subr.mxu0 0.0
        %3456 = vmatpush1.xpose.msra.mxu0 0.0
        %3457 = vmatprep.subr.mxu0 0.0
        %3458 = vmatpush1.xpose.msra.mxu0 0.0
        %3459 = vmatprep.subr.mxu0 0.0
        %3460 = vmatpush1.xpose.msra.mxu0 0.0
        %3461 = vmatprep.subr.mxu0 0.0
        %3462 = vmatpush1.xpose.msra.mxu0 0.0
        %3463 = vmatprep.subr.mxu0 0.0
        %3464 = vmatpush1.xpose.msra.mxu0 0.0
        %3465 = vmatprep.subr.mxu0 0.0
        %3466 = vmatpush1.xpose.msra.mxu0 0.0
        %3467 = vmatprep.subr.mxu0 0.0
        %3468 = vmatpush1.xpose.msra.mxu0 0.0
        %3469 = vmatprep.subr.mxu0 0.0
        %3470 = vmatpush1.xpose.msra.mxu0 0.0
        %3471 = vmatprep.subr.mxu0 0.0
        %3472 = vmatpush1.xpose.msra.mxu0 0.0
        %3473 = vmatprep.subr.mxu0 0.0
        %3474 = vmatpush1.xpose.msra.mxu0 0.0
        %3475 = vmatprep.subr.mxu0 0.0
        %3476 = vmatpush1.xpose.msra.mxu0 0.0
        %3477 = vmatprep.subr.mxu0 0.0
        %3478 = vmatpush1.xpose.msra.mxu0 0.0
        %3479 = vmatprep.subr.mxu0 0.0
        %3480 = vmatpush1.xpose.msra.mxu0 0.0
        %3481 = vmatprep.subr.mxu0 0.0
        %3482 = vmatpush1.xpose.msra.mxu0 0.0
        %3483 = vmatprep.subr.mxu0 0.0
        %3484 = vmatpush1.xpose.msra.mxu0 0.0
        %3485 = vmatprep.subr.mxu0 0.0
        %3486 = vmatpush1.xpose.msra.mxu0 0.0
        %3487 = vmatprep.subr.mxu0 0.0
        %3488 = vmatpush1.xpose.msra.mxu0 0.0
        %3489 = vmatprep.subr.mxu0 0.0
        %3490 = vmatpush1.xpose.msra.mxu0 0.0
        %3491 = vmatprep.subr.mxu0 0.0
        %3492 = vmatpush1.xpose.msra.mxu0 0.0
        %3493 = vmatprep.subr.mxu0 0.0
        %3494 = vmatpush1.xpose.msra.mxu0 0.0
        %3495 = vmatprep.subr.mxu0 0.0
        %3496 = vmatpush1.xpose.msra.mxu0 0.0
        %3497 = vmatprep.subr.mxu0 0.0
        %3498 = vmatpush1.xpose.msra.mxu0 0.0
        %3499 = vmatprep.subr.mxu0 0.0
        %3500 = vmatpush1.xpose.msra.mxu0 0.0
        %3501 = vmatprep.subr.mxu0 0.0
        %3502 = vmatpush1.xpose.msra.mxu0 0.0
        %3503 = vmatprep.subr.mxu0 0.0
        %3504 = vmatpush1.xpose.msra.mxu0 0.0
        %3505 = vmatprep.mubr.f32.mxu0 0.0
        %3506 = vmatmul.mubr.f32.gmra.mrb[0].mxu0 %v3436
        %v3507 = vpop.f32.mrb[0].mxu0
        %v3508 = vadd.f32 0.0, %v3507
        %v3509 = vpop.f32.mrb[0].mxu0
        %3510 = vdwg.mxu0
        %v3511 = vmul.f32 %v3432, 0.125
        %v3512 = vmul.f32 %v3508, 0.125
        %v3513 = vsel %vm1122, %v3511, -inf
        %3514 = vmax.xlane.f32.xlu0 %v3513
        %v3515 = vpop.xlane.xlu0 %3514
        %v3516 = vsel %vm1122, %v3512, -inf
        %3517 = vmax.xlane.f32.xlu0 %v3516
        %v3518 = vpop.xlane.xlu0 %3517
        %v3519 = vsub.f32 %v3511, %v3515
        %v3520 = vsub.f32 %v3512, %v3518
        %v3521 = vmul.f32 %v3519, 1.442695
        %v3522 = vpow.pop %v3521
        %v3523 = vmul.f32 %v3520, 1.442695
        %v3524 = vpow.pop %v3523
        %v3525 = vsel %vm1122, %v3522, 0.0
        %3526 = vadd.xlane.f32.xlu0 %v3525
        %v3527 = vpop.xlane.xlu0 %3526
        %v3528 = vsel %vm1122, %v3524, 0.0
        %3529 = vadd.xlane.f32.xlu0 %v3528
        %v3530 = vpop.xlane.xlu0 %3529
        %v3531 = vrcp.pop %v3527
        %v3532 = vrcp.pop %v3530
        %v3533 = vmul.f32 %v3522, %v3531
        %v3534 = vmul.f32 %v3524, %v3532
        %v3536 = vsel %vm1122, %v3533, 0
        %3538 = vmatprep.subr.mxu0 0.0
        %3539 = vmatpush1.msra.mxu0 %v961
        %3540 = vmatprep.subr.mxu0 0.0
        %3541 = vmatpush1.msra.mxu0 0.0
        %3542 = vmatprep.subr.mxu0 0.0
        %3543 = vmatpush1.msra.mxu0 0.0
        %3544 = vmatprep.subr.mxu0 0.0
        %3545 = vmatpush1.msra.mxu0 0.0
        %3546 = vmatprep.subr.mxu0 0.0
        %3547 = vmatpush1.msra.mxu0 0.0
        %3548 = vmatprep.subr.mxu0 0.0
        %3549 = vmatpush1.msra.mxu0 0.0
        %3550 = vmatprep.subr.mxu0 0.0
        %3551 = vmatpush1.msra.mxu0 0.0
        %3552 = vmatprep.subr.mxu0 0.0
        %3553 = vmatpush1.msra.mxu0 0.0
        %3554 = vmatprep.subr.mxu0 0.0
        %3555 = vmatpush1.msra.mxu0 0.0
        %3556 = vmatprep.subr.mxu0 0.0
        %3557 = vmatpush1.msra.mxu0 0.0
        %3558 = vmatprep.subr.mxu0 0.0
        %3559 = vmatpush1.msra.mxu0 0.0
        %3560 = vmatprep.subr.mxu0 0.0
        %3561 = vmatpush1.msra.mxu0 0.0
        %3562 = vmatprep.subr.mxu0 0.0
        %3563 = vmatpush1.msra.mxu0 0.0
        %3564 = vmatprep.subr.mxu0 0.0
        %3565 = vmatpush1.msra.mxu0 0.0
        %3566 = vmatprep.subr.mxu0 0.0
        %3567 = vmatpush1.msra.mxu0 0.0
        %3568 = vmatprep.subr.mxu0 0.0
        %3569 = vmatpush1.msra.mxu0 0.0
        %3570 = vmatprep.subr.mxu0 0.0
        %3571 = vmatpush1.msra.mxu0 0.0
        %3572 = vmatprep.subr.mxu0 0.0
        %3573 = vmatpush1.msra.mxu0 0.0
        %3574 = vmatprep.subr.mxu0 0.0
        %3575 = vmatpush1.msra.mxu0 0.0
        %3576 = vmatprep.subr.mxu0 0.0
        %3577 = vmatpush1.msra.mxu0 0.0
        %3578 = vmatprep.subr.mxu0 0.0
        %3579 = vmatpush1.msra.mxu0 0.0
        %3580 = vmatprep.subr.mxu0 0.0
        %3581 = vmatpush1.msra.mxu0 0.0
        %3582 = vmatprep.subr.mxu0 0.0
        %3583 = vmatpush1.msra.mxu0 0.0
        %3584 = vmatprep.subr.mxu0 0.0
        %3585 = vmatpush1.msra.mxu0 0.0
        %3586 = vmatprep.subr.mxu0 0.0
        %3587 = vmatpush1.msra.mxu0 0.0
        %3588 = vmatprep.subr.mxu0 0.0
        %3589 = vmatpush1.msra.mxu0 0.0
        %3590 = vmatprep.subr.mxu0 0.0
        %3591 = vmatpush1.msra.mxu0 0.0
        %3592 = vmatprep.subr.mxu0 0.0
        %3593 = vmatpush1.msra.mxu0 0.0
        %3594 = vmatprep.subr.mxu0 0.0
        %3595 = vmatpush1.msra.mxu0 0.0
        %3596 = vmatprep.subr.mxu0 0.0
        %3597 = vmatpush1.msra.mxu0 0.0
        %3598 = vmatprep.subr.mxu0 0.0
        %3599 = vmatpush1.msra.mxu0 0.0
        %3600 = vmatprep.subr.mxu0 0.0
        %3601 = vmatpush1.msra.mxu0 0.0
        %3602 = vmatprep.mubr.f32.mxu0 0.0
        %3603 = vmatmul.mubr.f32.gmra.mrb[0].mxu0 %v3536
        %v3604 = vpop.f32.mrb[0].mxu0
        %v3605 = vadd.f32 0.0, %v3604
        %v3606 = vpop.f32.mrb[0].mxu0
        %3607 = vdwg.mxu0
        %v3609 = vsel %vm1122, %v3534, 0
        %3611 = vmatprep.subr.mxu0 0.0
        %3612 = vmatpush1.msra.mxu0 %v965
        %3613 = vmatprep.subr.mxu0 0.0
        %3614 = vmatpush1.msra.mxu0 0.0
        %3615 = vmatprep.subr.mxu0 0.0
        %3616 = vmatpush1.msra.mxu0 0.0
        %3617 = vmatprep.subr.mxu0 0.0
        %3618 = vmatpush1.msra.mxu0 0.0
        %3619 = vmatprep.subr.mxu0 0.0
        %3620 = vmatpush1.msra.mxu0 0.0
        %3621 = vmatprep.subr.mxu0 0.0
        %3622 = vmatpush1.msra.mxu0 0.0
        %3623 = vmatprep.subr.mxu0 0.0
        %3624 = vmatpush1.msra.mxu0 0.0
        %3625 = vmatprep.subr.mxu0 0.0
        %3626 = vmatpush1.msra.mxu0 0.0
        %3627 = vmatprep.subr.mxu0 0.0
        %3628 = vmatpush1.msra.mxu0 0.0
        %3629 = vmatprep.subr.mxu0 0.0
        %3630 = vmatpush1.msra.mxu0 0.0
        %3631 = vmatprep.subr.mxu0 0.0
        %3632 = vmatpush1.msra.mxu0 0.0
        %3633 = vmatprep.subr.mxu0 0.0
        %3634 = vmatpush1.msra.mxu0 0.0
        %3635 = vmatprep.subr.mxu0 0.0
        %3636 = vmatpush1.msra.mxu0 0.0
        %3637 = vmatprep.subr.mxu0 0.0
        %3638 = vmatpush1.msra.mxu0 0.0
        %3639 = vmatprep.subr.mxu0 0.0
        %3640 = vmatpush1.msra.mxu0 0.0
        %3641 = vmatprep.subr.mxu0 0.0
        %3642 = vmatpush1.msra.mxu0 0.0
        %3643 = vmatprep.subr.mxu0 0.0
        %3644 = vmatpush1.msra.mxu0 0.0
        %3645 = vmatprep.subr.mxu0 0.0
        %3646 = vmatpush1.msra.mxu0 0.0
        %3647 = vmatprep.subr.mxu0 0.0
        %3648 = vmatpush1.msra.mxu0 0.0
        %3649 = vmatprep.subr.mxu0 0.0
        %3650 = vmatpush1.msra.mxu0 0.0
        %3651 = vmatprep.subr.mxu0 0.0
        %3652 = vmatpush1.msra.mxu0 0.0
        %3653 = vmatprep.subr.mxu0 0.0
        %3654 = vmatpush1.msra.mxu0 0.0
        %3655 = vmatprep.subr.mxu0 0.0
        %3656 = vmatpush1.msra.mxu0 0.0
        %3657 = vmatprep.subr.mxu0 0.0
        %3658 = vmatpush1.msra.mxu0 0.0
        %3659 = vmatprep.subr.mxu0 0.0
        %3660 = vmatpush1.msra.mxu0 0.0
        %3661 = vmatprep.subr.mxu0 0.0
        %3662 = vmatpush1.msra.mxu0 0.0
        %3663 = vmatprep.subr.mxu0 0.0
        %3664 = vmatpush1.msra.mxu0 0.0
        %3665 = vmatprep.subr.mxu0 0.0
        %3666 = vmatpush1.msra.mxu0 0.0
        %3667 = vmatprep.subr.mxu0 0.0
        %3668 = vmatpush1.msra.mxu0 0.0
        %3669 = vmatprep.subr.mxu0 0.0
        %3670 = vmatpush1.msra.mxu0 0.0
        %3671 = vmatprep.subr.mxu0 0.0
        %3672 = vmatpush1.msra.mxu0 0.0
        %3673 = vmatprep.subr.mxu0 0.0
        %3674 = vmatpush1.msra.mxu0 0.0
        %3675 = vmatprep.mubr.f32.mxu0 0.0
        %3676 = vmatmul.mubr.f32.gmra.mrb[0].mxu0 %v3609
        %v3677 = vpop.f32.mrb[0].mxu0
        %v3678 = vadd.f32 0.0, %v3677
        %v3679 = vpop.f32.mrb[0].mxu0
        %3680 = vdwg.mxu0
        %v3681 = vpack.c.bf16 %v3678, %v3605
        %v3690 = vunpack.c.l.b16 %v508
        %v3691 = vunpack.c.l.b16 %v509
        %v3692 = vunpack.c.l.b16 %v510
        %v3693 = vunpack.c.l.b16 %v511
        %v3694 = vunpack.c.l.b16 %v512
        %v3695 = vunpack.c.l.b16 %v513
        %v3696 = vunpack.c.l.b16 %v514
        %v3697 = vunpack.c.l.b16 %v515
        %v3698 = vpack.c.b16 %v3691, %v3690
        %v3699 = vpack.c.b16 %v3693, %v3692
        %v3700 = vpack.c.b16 %v3695, %v3694
        %v3701 = vpack.c.b16 %v3697, %v3696
        %v3707 = vsel %vm967, %v3681, 0
        %3709 = vmatprep.subr.bf16.mxu0 0
        %3710 = vmatpush1.bf16.msra.mxu0 %v3698
        %3711 = vmatprep.subr.bf16.mxu0 0
        %3712 = vmatpush1.bf16.msra.mxu0 %v3699
        %3713 = vmatprep.subr.bf16.mxu0 0
        %3714 = vmatpush1.bf16.msra.mxu0 %v3700
        %3715 = vmatprep.subr.bf16.mxu0 0
        %3716 = vmatpush1.bf16.msra.mxu0 %v3701
        %3717 = vmatprep.subr.bf16.mxu0 0
        %3718 = vmatpush1.bf16.msra.mxu0 0
        %3719 = vmatprep.subr.bf16.mxu0 0
        %3720 = vmatpush1.bf16.msra.mxu0 0
        %3721 = vmatprep.subr.bf16.mxu0 0
        %3722 = vmatpush1.bf16.msra.mxu0 0
        %3723 = vmatprep.subr.bf16.mxu0 0
        %3724 = vmatpush1.bf16.msra.mxu0 0
        %3725 = vmatprep.subr.bf16.mxu0 0
        %3726 = vmatpush1.bf16.msra.mxu0 0
        %3727 = vmatprep.subr.bf16.mxu0 0
        %3728 = vmatpush1.bf16.msra.mxu0 0
        %3729 = vmatprep.subr.bf16.mxu0 0
        %3730 = vmatpush1.bf16.msra.mxu0 0
        %3731 = vmatprep.subr.bf16.mxu0 0
        %3732 = vmatpush1.bf16.msra.mxu0 0
        %3733 = vmatprep.subr.bf16.mxu0 0
        %3734 = vmatpush1.bf16.msra.mxu0 0
        %3735 = vmatprep.subr.bf16.mxu0 0
        %3736 = vmatpush1.bf16.msra.mxu0 0
        %3737 = vmatprep.subr.bf16.mxu0 0
        %3738 = vmatpush1.bf16.msra.mxu0 0
        %3739 = vmatprep.subr.bf16.mxu0 0
        %3740 = vmatpush1.bf16.msra.mxu0 0
        %3741 = vmatprep.mubr.bf16.mxu0 0
        %3742 = vmatmul.mubr.bf16.gmra.mrb[0].mxu0 %v3707
        %v3743 = vpop.f32.mrb[0].mxu0
        %v3744 = vadd.f32 0.0, %v3743
        %v3745 = vpop.f32.mrb[0].mxu0
        %v3746 = vpop.f32.mrb[0].mxu0
        %v3747 = vadd.f32 0.0, %v3746
        %v3748 = vpop.f32.mrb[0].mxu0
        %3749 = vdwg.mxu0
        %v3750 = vadd.f32 %v3357, %v3744
        %v3751 = vadd.f32 %v3358, %v3747
        %3752 = vrot.lane.b32.xlu0 %v789, 64
        %v3753 = vpop.permute.xlu0 %3752
        %3754 = vrot.lane.b32.xlu0 %v875, 64
        %v3755 = vpop.permute.xlu0 %3754
        %v3756 = vsel %vm967, %v3753, 0
        %v3758 = vsel %vm967, %v3755, 0
        %3760 = vmatprep.subr.mxu0 0.0
        %3761 = vmatpush1.xpose.msra.mxu0 %v3758
        %3762 = vmatprep.subr.mxu0 0.0
        %3763 = vmatpush1.xpose.msra.mxu0 0.0
        %3764 = vmatprep.subr.mxu0 0.0
        %3765 = vmatpush1.xpose.msra.mxu0 0.0
        %3766 = vmatprep.subr.mxu0 0.0
        %3767 = vmatpush1.xpose.msra.mxu0 0.0
        %3768 = vmatprep.subr.mxu0 0.0
        %3769 = vmatpush1.xpose.msra.mxu0 0.0
        %3770 = vmatprep.subr.mxu0 0.0
        %3771 = vmatpush1.xpose.msra.mxu0 0.0
        %3772 = vmatprep.subr.mxu0 0.0
        %3773 = vmatpush1.xpose.msra.mxu0 0.0
        %3774 = vmatprep.subr.mxu0 0.0
        %3775 = vmatpush1.xpose.msra.mxu0 0.0
        %3776 = vmatprep.subr.mxu0 0.0
        %3777 = vmatpush1.xpose.msra.mxu0 0.0
        %3778 = vmatprep.subr.mxu0 0.0
        %3779 = vmatpush1.xpose.msra.mxu0 0.0
        %3780 = vmatprep.subr.mxu0 0.0
        %3781 = vmatpush1.xpose.msra.mxu0 0.0
        %3782 = vmatprep.subr.mxu0 0.0
        %3783 = vmatpush1.xpose.msra.mxu0 0.0
        %3784 = vmatprep.subr.mxu0 0.0
        %3785 = vmatpush1.xpose.msra.mxu0 0.0
        %3786 = vmatprep.subr.mxu0 0.0
        %3787 = vmatpush1.xpose.msra.mxu0 0.0
        %3788 = vmatprep.subr.mxu0 0.0
        %3789 = vmatpush1.xpose.msra.mxu0 0.0
        %3790 = vmatprep.subr.mxu0 0.0
        %3791 = vmatpush1.xpose.msra.mxu0 0.0
        %3792 = vmatprep.subr.mxu0 0.0
        %3793 = vmatpush1.xpose.msra.mxu0 0.0
        %3794 = vmatprep.subr.mxu0 0.0
        %3795 = vmatpush1.xpose.msra.mxu0 0.0
        %3796 = vmatprep.subr.mxu0 0.0
        %3797 = vmatpush1.xpose.msra.mxu0 0.0
        %3798 = vmatprep.subr.mxu0 0.0
        %3799 = vmatpush1.xpose.msra.mxu0 0.0
        %3800 = vmatprep.subr.mxu0 0.0
        %3801 = vmatpush1.xpose.msra.mxu0 0.0
        %3802 = vmatprep.subr.mxu0 0.0
        %3803 = vmatpush1.xpose.msra.mxu0 0.0
        %3804 = vmatprep.subr.mxu0 0.0
        %3805 = vmatpush1.xpose.msra.mxu0 0.0
        %3806 = vmatprep.subr.mxu0 0.0
        %3807 = vmatpush1.xpose.msra.mxu0 0.0
        %3808 = vmatprep.subr.mxu0 0.0
        %3809 = vmatpush1.xpose.msra.mxu0 0.0
        %3810 = vmatprep.subr.mxu0 0.0
        %3811 = vmatpush1.xpose.msra.mxu0 0.0
        %3812 = vmatprep.subr.mxu0 0.0
        %3813 = vmatpush1.xpose.msra.mxu0 0.0
        %3814 = vmatprep.subr.mxu0 0.0
        %3815 = vmatpush1.xpose.msra.mxu0 0.0
        %3816 = vmatprep.subr.mxu0 0.0
        %3817 = vmatpush1.xpose.msra.mxu0 0.0
        %3818 = vmatprep.subr.mxu0 0.0
        %3819 = vmatpush1.xpose.msra.mxu0 0.0
        %3820 = vmatprep.subr.mxu0 0.0
        %3821 = vmatpush1.xpose.msra.mxu0 0.0
        %3822 = vmatprep.subr.mxu0 0.0
        %3823 = vmatpush1.xpose.msra.mxu0 0.0
        %3824 = vmatprep.mubr.f32.mxu0 0.0
        %3825 = vmatmul.mubr.f32.gmra.mrb[0].mxu0 %v3756
        %v3826 = vpop.f32.mrb[0].mxu0
        %v3827 = vadd.f32 0.0, %v3826
        %v3828 = vpop.f32.mrb[0].mxu0
        %3829 = vdwg.mxu0
        %3830 = vrot.lane.b32.xlu0 %v793, 64
        %v3831 = vpop.permute.xlu0 %3830
        %3832 = vrot.lane.b32.xlu0 %v879, 64
        %v3833 = vpop.permute.xlu0 %3832
        %v3834 = vsel %vm967, %v3831, 0
        %v3836 = vsel %vm967, %v3833, 0
        %3838 = vmatprep.subr.mxu0 0.0
        %3839 = vmatpush1.xpose.msra.mxu0 %v3836
        %3840 = vmatprep.subr.mxu0 0.0
        %3841 = vmatpush1.xpose.msra.mxu0 0.0
        %3842 = vmatprep.subr.mxu0 0.0
        %3843 = vmatpush1.xpose.msra.mxu0 0.0
        %3844 = vmatprep.subr.mxu0 0.0
        %3845 = vmatpush1.xpose.msra.mxu0 0.0
        %3846 = vmatprep.subr.mxu0 0.0
        %3847 = vmatpush1.xpose.msra.mxu0 0.0
        %3848 = vmatprep.subr.mxu0 0.0
        %3849 = vmatpush1.xpose.msra.mxu0 0.0
        %3850 = vmatprep.subr.mxu0 0.0
        %3851 = vmatpush1.xpose.msra.mxu0 0.0
        %3852 = vmatprep.subr.mxu0 0.0
        %3853 = vmatpush1.xpose.msra.mxu0 0.0
        %3854 = vmatprep.subr.mxu0 0.0
        %3855 = vmatpush1.xpose.msra.mxu0 0.0
        %3856 = vmatprep.subr.mxu0 0.0
        %3857 = vmatpush1.xpose.msra.mxu0 0.0
        %3858 = vmatprep.subr.mxu0 0.0
        %3859 = vmatpush1.xpose.msra.mxu0 0.0
        %3860 = vmatprep.subr.mxu0 0.0
        %3861 = vmatpush1.xpose.msra.mxu0 0.0
        %3862 = vmatprep.subr.mxu0 0.0
        %3863 = vmatpush1.xpose.msra.mxu0 0.0
        %3864 = vmatprep.subr.mxu0 0.0
        %3865 = vmatpush1.xpose.msra.mxu0 0.0
        %3866 = vmatprep.subr.mxu0 0.0
        %3867 = vmatpush1.xpose.msra.mxu0 0.0
        %3868 = vmatprep.subr.mxu0 0.0
        %3869 = vmatpush1.xpose.msra.mxu0 0.0
        %3870 = vmatprep.subr.mxu0 0.0
        %3871 = vmatpush1.xpose.msra.mxu0 0.0
        %3872 = vmatprep.subr.mxu0 0.0
        %3873 = vmatpush1.xpose.msra.mxu0 0.0
        %3874 = vmatprep.subr.mxu0 0.0
        %3875 = vmatpush1.xpose.msra.mxu0 0.0
        %3876 = vmatprep.subr.mxu0 0.0
        %3877 = vmatpush1.xpose.msra.mxu0 0.0
        %3878 = vmatprep.subr.mxu0 0.0
        %3879 = vmatpush1.xpose.msra.mxu0 0.0
        %3880 = vmatprep.subr.mxu0 0.0
        %3881 = vmatpush1.xpose.msra.mxu0 0.0
        %3882 = vmatprep.subr.mxu0 0.0
        %3883 = vmatpush1.xpose.msra.mxu0 0.0
        %3884 = vmatprep.subr.mxu0 0.0
        %3885 = vmatpush1.xpose.msra.mxu0 0.0
        %3886 = vmatprep.subr.mxu0 0.0
        %3887 = vmatpush1.xpose.msra.mxu0 0.0
        %3888 = vmatprep.subr.mxu0 0.0
        %3889 = vmatpush1.xpose.msra.mxu0 0.0
        %3890 = vmatprep.subr.mxu0 0.0
        %3891 = vmatpush1.xpose.msra.mxu0 0.0
        %3892 = vmatprep.subr.mxu0 0.0
        %3893 = vmatpush1.xpose.msra.mxu0 0.0
        %3894 = vmatprep.subr.mxu0 0.0
        %3895 = vmatpush1.xpose.msra.mxu0 0.0
        %3896 = vmatprep.subr.mxu0 0.0
        %3897 = vmatpush1.xpose.msra.mxu0 0.0
        %3898 = vmatprep.subr.mxu0 0.0
        %3899 = vmatpush1.xpose.msra.mxu0 0.0
        %3900 = vmatprep.subr.mxu0 0.0
        %3901 = vmatpush1.xpose.msra.mxu0 0.0
        %3902 = vmatprep.mubr.f32.mxu0 0.0
        %3903 = vmatmul.mubr.f32.gmra.mrb[0].mxu0 %v3834
        %v3904 = vpop.f32.mrb[0].mxu0
        %v3905 = vadd.f32 0.0, %v3904
        %v3906 = vpop.f32.mrb[0].mxu0
        %3907 = vdwg.mxu0
        %v3908 = vmul.f32 %v3827, 0.125
        %v3909 = vmul.f32 %v3905, 0.125
        %v3910 = vsel %vm1122, %v3908, -inf
        %3911 = vmax.xlane.f32.xlu0 %v3910
        %v3912 = vpop.xlane.xlu0 %3911
        %v3913 = vsel %vm1122, %v3909, -inf
        %3914 = vmax.xlane.f32.xlu0 %v3913
        %v3915 = vpop.xlane.xlu0 %3914
        %v3916 = vsub.f32 %v3908, %v3912
        %v3917 = vsub.f32 %v3909, %v3915
        %v3918 = vmul.f32 %v3916, 1.442695
        %v3919 = vpow.pop %v3918
        %v3920 = vmul.f32 %v3917, 1.442695
        %v3921 = vpow.pop %v3920
        %v3922 = vsel %vm1122, %v3919, 0.0
        %3923 = vadd.xlane.f32.xlu0 %v3922
        %v3924 = vpop.xlane.xlu0 %3923
        %v3925 = vsel %vm1122, %v3921, 0.0
        %3926 = vadd.xlane.f32.xlu0 %v3925
        %v3927 = vpop.xlane.xlu0 %3926
        %v3928 = vrcp.pop %v3924
        %v3929 = vrcp.pop %v3927
        %v3930 = vmul.f32 %v3919, %v3928
        %v3931 = vmul.f32 %v3921, %v3929
        %3933 = vrot.lane.b32.xlu0 %v961, 64
        %v3934 = vpop.permute.xlu0 %3933
        %v3937 = vsel %vm1122, %v3930, 0
        %3939 = vmatprep.subr.mxu0 0.0
        %3940 = vmatpush1.msra.mxu0 %v3934
        %3941 = vmatprep.subr.mxu0 0.0
        %3942 = vmatpush1.msra.mxu0 0.0
        %3943 = vmatprep.subr.mxu0 0.0
        %3944 = vmatpush1.msra.mxu0 0.0
        %3945 = vmatprep.subr.mxu0 0.0
        %3946 = vmatpush1.msra.mxu0 0.0
        %3947 = vmatprep.subr.mxu0 0.0
        %3948 = vmatpush1.msra.mxu0 0.0
        %3949 = vmatprep.subr.mxu0 0.0
        %3950 = vmatpush1.msra.mxu0 0.0
        %3951 = vmatprep.subr.mxu0 0.0
        %3952 = vmatpush1.msra.mxu0 0.0
        %3953 = vmatprep.subr.mxu0 0.0
        %3954 = vmatpush1.msra.mxu0 0.0
        %3955 = vmatprep.subr.mxu0 0.0
        %3956 = vmatpush1.msra.mxu0 0.0
        %3957 = vmatprep.subr.mxu0 0.0
        %3958 = vmatpush1.msra.mxu0 0.0
        %3959 = vmatprep.subr.mxu0 0.0
        %3960 = vmatpush1.msra.mxu0 0.0
        %3961 = vmatprep.subr.mxu0 0.0
        %3962 = vmatpush1.msra.mxu0 0.0
        %3963 = vmatprep.subr.mxu0 0.0
        %3964 = vmatpush1.msra.mxu0 0.0
        %3965 = vmatprep.subr.mxu0 0.0
        %3966 = vmatpush1.msra.mxu0 0.0
        %3967 = vmatprep.subr.mxu0 0.0
        %3968 = vmatpush1.msra.mxu0 0.0
        %3969 = vmatprep.subr.mxu0 0.0
        %3970 = vmatpush1.msra.mxu0 0.0
        %3971 = vmatprep.subr.mxu0 0.0
        %3972 = vmatpush1.msra.mxu0 0.0
        %3973 = vmatprep.subr.mxu0 0.0
        %3974 = vmatpush1.msra.mxu0 0.0
        %3975 = vmatprep.subr.mxu0 0.0
        %3976 = vmatpush1.msra.mxu0 0.0
        %3977 = vmatprep.subr.mxu0 0.0
        %3978 = vmatpush1.msra.mxu0 0.0
        %3979 = vmatprep.subr.mxu0 0.0
        %3980 = vmatpush1.msra.mxu0 0.0
        %3981 = vmatprep.subr.mxu0 0.0
        %3982 = vmatpush1.msra.mxu0 0.0
        %3983 = vmatprep.subr.mxu0 0.0
        %3984 = vmatpush1.msra.mxu0 0.0
        %3985 = vmatprep.subr.mxu0 0.0
        %3986 = vmatpush1.msra.mxu0 0.0
        %3987 = vmatprep.subr.mxu0 0.0
        %3988 = vmatpush1.msra.mxu0 0.0
        %3989 = vmatprep.subr.mxu0 0.0
        %3990 = vmatpush1.msra.mxu0 0.0
        %3991 = vmatprep.subr.mxu0 0.0
        %3992 = vmatpush1.msra.mxu0 0.0
        %3993 = vmatprep.subr.mxu0 0.0
        %3994 = vmatpush1.msra.mxu0 0.0
        %3995 = vmatprep.subr.mxu0 0.0
        %3996 = vmatpush1.msra.mxu0 0.0
        %3997 = vmatprep.subr.mxu0 0.0
        %3998 = vmatpush1.msra.mxu0 0.0
        %3999 = vmatprep.subr.mxu0 0.0
        %4000 = vmatpush1.msra.mxu0 0.0
        %4001 = vmatprep.subr.mxu0 0.0
        %4002 = vmatpush1.msra.mxu0 0.0
        %4003 = vmatprep.mubr.f32.mxu0 0.0
        %4004 = vmatmul.mubr.f32.gmra.mrb[0].mxu0 %v3937
        %v4005 = vpop.f32.mrb[0].mxu0
        %v4006 = vadd.f32 0.0, %v4005
        %v4007 = vpop.f32.mrb[0].mxu0
        %4008 = vdwg.mxu0
        %4010 = vrot.lane.b32.xlu0 %v965, 64
        %v4011 = vpop.permute.xlu0 %4010
        %v4014 = vsel %vm1122, %v3931, 0
        %4016 = vmatprep.subr.mxu0 0.0
        %4017 = vmatpush1.msra.mxu0 %v4011
        %4018 = vmatprep.subr.mxu0 0.0
        %4019 = vmatpush1.msra.mxu0 0.0
        %4020 = vmatprep.subr.mxu0 0.0
        %4021 = vmatpush1.msra.mxu0 0.0
        %4022 = vmatprep.subr.mxu0 0.0
        %4023 = vmatpush1.msra.mxu0 0.0
        %4024 = vmatprep.subr.mxu0 0.0
        %4025 = vmatpush1.msra.mxu0 0.0
        %4026 = vmatprep.subr.mxu0 0.0
        %4027 = vmatpush1.msra.mxu0 0.0
        %4028 = vmatprep.subr.mxu0 0.0
        %4029 = vmatpush1.msra.mxu0 0.0
        %4030 = vmatprep.subr.mxu0 0.0
        %4031 = vmatpush1.msra.mxu0 0.0
        %4032 = vmatprep.subr.mxu0 0.0
        %4033 = vmatpush1.msra.mxu0 0.0
        %4034 = vmatprep.subr.mxu0 0.0
        %4035 = vmatpush1.msra.mxu0 0.0
        %4036 = vmatprep.subr.mxu0 0.0
        %4037 = vmatpush1.msra.mxu0 0.0
        %4038 = vmatprep.subr.mxu0 0.0
        %4039 = vmatpush1.msra.mxu0 0.0
        %4040 = vmatprep.subr.mxu0 0.0
        %4041 = vmatpush1.msra.mxu0 0.0
        %4042 = vmatprep.subr.mxu0 0.0
        %4043 = vmatpush1.msra.mxu0 0.0
        %4044 = vmatprep.subr.mxu0 0.0
        %4045 = vmatpush1.msra.mxu0 0.0
        %4046 = vmatprep.subr.mxu0 0.0
        %4047 = vmatpush1.msra.mxu0 0.0
        %4048 = vmatprep.subr.mxu0 0.0
        %4049 = vmatpush1.msra.mxu0 0.0
        %4050 = vmatprep.subr.mxu0 0.0
        %4051 = vmatpush1.msra.mxu0 0.0
        %4052 = vmatprep.subr.mxu0 0.0
        %4053 = vmatpush1.msra.mxu0 0.0
        %4054 = vmatprep.subr.mxu0 0.0
        %4055 = vmatpush1.msra.mxu0 0.0
        %4056 = vmatprep.subr.mxu0 0.0
        %4057 = vmatpush1.msra.mxu0 0.0
        %4058 = vmatprep.subr.mxu0 0.0
        %4059 = vmatpush1.msra.mxu0 0.0
        %4060 = vmatprep.subr.mxu0 0.0
        %4061 = vmatpush1.msra.mxu0 0.0
        %4062 = vmatprep.subr.mxu0 0.0
        %4063 = vmatpush1.msra.mxu0 0.0
        %4064 = vmatprep.subr.mxu0 0.0
        %4065 = vmatpush1.msra.mxu0 0.0
        %4066 = vmatprep.subr.mxu0 0.0
        %4067 = vmatpush1.msra.mxu0 0.0
        %4068 = vmatprep.subr.mxu0 0.0
        %4069 = vmatpush1.msra.mxu0 0.0
        %4070 = vmatprep.subr.mxu0 0.0
        %4071 = vmatpush1.msra.mxu0 0.0
        %4072 = vmatprep.subr.mxu0 0.0
        %4073 = vmatpush1.msra.mxu0 0.0
        %4074 = vmatprep.subr.mxu0 0.0
        %4075 = vmatpush1.msra.mxu0 0.0
        %4076 = vmatprep.subr.mxu0 0.0
        %4077 = vmatpush1.msra.mxu0 0.0
        %4078 = vmatprep.subr.mxu0 0.0
        %4079 = vmatpush1.msra.mxu0 0.0
        %4080 = vmatprep.mubr.f32.mxu0 0.0
        %4081 = vmatmul.mubr.f32.gmra.mrb[0].mxu0 %v4014
        %v4082 = vpop.f32.mrb[0].mxu0
        %v4083 = vadd.f32 0.0, %v4082
        %v4084 = vpop.f32.mrb[0].mxu0
        %4085 = vdwg.mxu0
        %v4086 = vpack.c.bf16 %v4083, %v4006
        %v4095 = vunpack.c.l.b16 %v516
        %v4096 = vunpack.c.l.b16 %v517
        %v4097 = vunpack.c.l.b16 %v518
        %v4098 = vunpack.c.l.b16 %v519
        %v4099 = vunpack.c.l.b16 %v520
        %v4100 = vunpack.c.l.b16 %v521
        %v4101 = vunpack.c.l.b16 %v522
        %v4102 = vunpack.c.l.b16 %v523
        %v4103 = vpack.c.b16 %v4096, %v4095
        %v4104 = vpack.c.b16 %v4098, %v4097
        %v4105 = vpack.c.b16 %v4100, %v4099
        %v4106 = vpack.c.b16 %v4102, %v4101
        %v4112 = vsel %vm967, %v4086, 0
        %4114 = vmatprep.subr.bf16.mxu0 0
        %4115 = vmatpush1.bf16.msra.mxu0 %v4103
        %4116 = vmatprep.subr.bf16.mxu0 0
        %4117 = vmatpush1.bf16.msra.mxu0 %v4104
        %4118 = vmatprep.subr.bf16.mxu0 0
        %4119 = vmatpush1.bf16.msra.mxu0 %v4105
        %4120 = vmatprep.subr.bf16.mxu0 0
        %4121 = vmatpush1.bf16.msra.mxu0 %v4106
        %4122 = vmatprep.subr.bf16.mxu0 0
        %4123 = vmatpush1.bf16.msra.mxu0 0
        %4124 = vmatprep.subr.bf16.mxu0 0
        %4125 = vmatpush1.bf16.msra.mxu0 0
        %4126 = vmatprep.subr.bf16.mxu0 0
        %4127 = vmatpush1.bf16.msra.mxu0 0
        %4128 = vmatprep.subr.bf16.mxu0 0
        %4129 = vmatpush1.bf16.msra.mxu0 0
        %4130 = vmatprep.subr.bf16.mxu0 0
        %4131 = vmatpush1.bf16.msra.mxu0 0
        %4132 = vmatprep.subr.bf16.mxu0 0
        %4133 = vmatpush1.bf16.msra.mxu0 0
        %4134 = vmatprep.subr.bf16.mxu0 0
        %4135 = vmatpush1.bf16.msra.mxu0 0
        %4136 = vmatprep.subr.bf16.mxu0 0
        %4137 = vmatpush1.bf16.msra.mxu0 0
        %4138 = vmatprep.subr.bf16.mxu0 0
        %4139 = vmatpush1.bf16.msra.mxu0 0
        %4140 = vmatprep.subr.bf16.mxu0 0
        %4141 = vmatpush1.bf16.msra.mxu0 0
        %4142 = vmatprep.subr.bf16.mxu0 0
        %4143 = vmatpush1.bf16.msra.mxu0 0
        %4144 = vmatprep.subr.bf16.mxu0 0
        %4145 = vmatpush1.bf16.msra.mxu0 0
        %4146 = vmatprep.mubr.bf16.mxu0 0
        %4147 = vmatmul.mubr.bf16.gmra.mrb[0].mxu0 %v4112
        %v4148 = vpop.f32.mrb[0].mxu0
        %v4149 = vadd.f32 0.0, %v4148
        %v4150 = vpop.f32.mrb[0].mxu0
        %v4151 = vpop.f32.mrb[0].mxu0
        %v4152 = vadd.f32 0.0, %v4151
        %v4153 = vpop.f32.mrb[0].mxu0
        %4154 = vdwg.mxu0
        %v4155 = vadd.f32 %v3750, %v4149
        %v4156 = vadd.f32 %v3751, %v4152
        %v4157 = vadd.f32 %v434, %v4155
        %v4158 = vadd.f32 %v435, %v4156
        %v4159 = vlaneseq
        %v4160 = vshrl.u32 %v4159, 7
        %v4161 = vsub.s32 2, %v4160
        %v4162 = vrot.slane %v433, %v4161
        %v4163 = vadd.f32 %v4157, %v4162
        %v4164 = vadd.f32 %v4158, %v4162
        %v4165 = vsel %vm545, %v4163, 0.0
        %4166 = vadd.xlane.f32.xlu0 %v4165
        %v4167 = vpop.xlane.xlu0 %4166
        %v4168 = vsel %vm545, %v4164, 0.0
        %4169 = vadd.xlane.f32.xlu0 %v4168
        %v4170 = vpop.xlane.xlu0 %4169
        %v4171 = vmul.f32 %v4167, %v552
        %v4172 = vmul.f32 %v4170, %v552
        %v4173 = vsub.f32 %v4163, %v4171
        %v4174 = vsub.f32 %v4164, %v4172
        %v4175 = vmul.f32 %v4173, %v4173
        %v4176 = vmul.f32 %v4174, %v4174
        %v4177 = vsel %vm545, %v4175, 0.0
        %4178 = vadd.xlane.f32.xlu0 %v4177
        %v4179 = vpop.xlane.xlu0 %4178
        %v4180 = vsel %vm545, %v4176, 0.0
        %4181 = vadd.xlane.f32.xlu0 %v4180
        %v4182 = vpop.xlane.xlu0 %4181
        %v4183 = vmul.f32 %v4179, %v552
        %v4184 = vmul.f32 %v4182, %v552
        %v4185 = vadd.f32 %v4183, 1e-05
        %v4186 = vadd.f32 %v4184, 1e-05
        %v4187 = vrsqrt.pop %v4185
        %v4188 = vrsqrt.pop %v4186
        %v4189 = vmul.f32 %v4173, %v4187
        %v4190 = vmul.f32 %v4174, %v4188
        %v4191 = vlaneseq
        %v4192 = vshrl.u32 %v4191, 7
        %v4193 = vsub.s32 3, %v4192
        %v4194 = vrot.slane %v433, %v4193
        %v4195 = vmul.f32 %v4189, %v4194
        %v4196 = vmul.f32 %v4190, %v4194
        %v4197 = vlaneseq
        %v4198 = vshrl.u32 %v4197, 7
        %v4199 = vsub.s32 4, %v4198
        %v4200 = vrot.slane %v433, %v4199
        %v4201 = vadd.f32 %v4195, %v4200
        %v4202 = vadd.f32 %v4196, %v4200
        %v4203 = vpack.c.bf16 %v4202, %v4201
        %v4205 = vlaneseq
        %v4206 = vshrl.u32 %v4205, 7
        %v4207 = vsub.s32 0, %v4206
        %v4208 = vrot.slane %v528, %v4207
        %v4214 = vunpack.c.l.b16 %v524
        %v4215 = vunpack.c.l.b16 %v525
        %v4216 = vunpack.c.l.b16 %v526
        %v4217 = vunpack.c.l.b16 %v527
        %v4218 = vpack.c.b16 %v4215, %v4214
        %v4219 = vpack.c.b16 %v4217, %v4216
        %v4223 = vsel %vm545, %v4203, 0
        %4225 = vmatprep.subr.bf16.mxu0 0
        %4226 = vmatpush1.bf16.msra.mxu0 %v4218
        %4227 = vmatprep.subr.bf16.mxu0 0
        %4228 = vmatpush1.bf16.msra.mxu0 %v4219
        %4229 = vmatprep.subr.bf16.mxu0 0
        %4230 = vmatpush1.bf16.msra.mxu0 0
        %4231 = vmatprep.subr.bf16.mxu0 0
        %4232 = vmatpush1.bf16.msra.mxu0 0
        %4233 = vmatprep.subr.bf16.mxu0 0
        %4234 = vmatpush1.bf16.msra.mxu0 0
        %4235 = vmatprep.subr.bf16.mxu0 0
        %4236 = vmatpush1.bf16.msra.mxu0 0
        %4237 = vmatprep.subr.bf16.mxu0 0
        %4238 = vmatpush1.bf16.msra.mxu0 0
        %4239 = vmatprep.subr.bf16.mxu0 0
        %4240 = vmatpush1.bf16.msra.mxu0 0
        %4241 = vmatprep.subr.bf16.mxu0 0
        %4242 = vmatpush1.bf16.msra.mxu0 0
        %4243 = vmatprep.subr.bf16.mxu0 0
        %4244 = vmatpush1.bf16.msra.mxu0 0
        %4245 = vmatprep.subr.bf16.mxu0 0
        %4246 = vmatpush1.bf16.msra.mxu0 0
        %4247 = vmatprep.subr.bf16.mxu0 0
        %4248 = vmatpush1.bf16.msra.mxu0 0
        %4249 = vmatprep.subr.bf16.mxu0 0
        %4250 = vmatpush1.bf16.msra.mxu0 0
        %4251 = vmatprep.subr.bf16.mxu0 0
        %4252 = vmatpush1.bf16.msra.mxu0 0
        %4253 = vmatprep.subr.bf16.mxu0 0
        %4254 = vmatpush1.bf16.msra.mxu0 0
        %4255 = vmatprep.subr.bf16.mxu0 0
        %4256 = vmatpush1.bf16.msra.mxu0 0
        %4257 = vmatprep.mubr.bf16.mxu0 0
        %4258 = vmatmul.mubr.bf16.gmra.mrb[0].mxu0 %v4223
        %v4259 = vpop.f32.mrb[0].mxu0
        %v4260 = vadd.f32 %v4208, %v4259
        %v4261 = vpop.f32.mrb[0].mxu0
        %v4262 = vpop.f32.mrb[0].mxu0
        %v4263 = vadd.f32 %v4208, %v4262
        %v4264 = vpop.f32.mrb[0].mxu0
        %4265 = vdwg.mxu0
        %v4266 = vmul.f32 %v4260, 0.5
        %v4267 = vmul.f32 %v4263, 0.5
        %v4268 = vmul.f32 %v4260, 0.044715
        %v4269 = vmul.f32 %v4263, 0.044715
        %v4270 = vmul.f32 %v4268, %v4260
        %v4271 = vmul.f32 %v4269, %v4263
        %v4272 = vmul.f32 %v4270, %v4260
        %v4273 = vmul.f32 %v4271, %v4263
        %v4274 = vadd.f32 %v4260, %v4272
        %v4275 = vadd.f32 %v4263, %v4273
        %v4276 = vmul.f32 %v4274, 0.7978846
        %v4277 = vmul.f32 %v4275, 0.7978846
        %v4278 = vtanh.pop %v4276
        %v4279 = vtanh.pop %v4277
        %v4280 = vadd.f32 %v4278, 1.0
        %v4281 = vadd.f32 %v4279, 1.0
        %v4282 = vmul.f32 %v4266, %v4280
        %v4283 = vmul.f32 %v4267, %v4281
        %v4284 = vpack.c.bf16 %v4283, %v4282
        %v4301 = vunpack.c.l.b16 %v529
        %v4302 = vunpack.c.l.b16 %v530
        %v4303 = vunpack.c.l.b16 %v531
        %v4304 = vunpack.c.l.b16 %v532
        %v4305 = vunpack.c.l.b16 %v533
        %v4306 = vunpack.c.l.b16 %v534
        %v4307 = vunpack.c.l.b16 %v535
        %v4308 = vunpack.c.l.b16 %v536
        %v4309 = vunpack.c.l.b16 %v537
        %v4310 = vunpack.c.l.b16 %v538
        %v4311 = vunpack.c.l.b16 %v539
        %v4312 = vunpack.c.l.b16 %v540
        %v4313 = vunpack.c.l.b16 %v541
        %v4314 = vunpack.c.l.b16 %v542
        %v4315 = vunpack.c.l.b16 %v543
        %v4316 = vunpack.c.l.b16 %v544
        %v4317 = vpack.c.b16 %v4302, %v4301
        %v4318 = vpack.c.b16 %v4304, %v4303
        %v4319 = vpack.c.b16 %v4306, %v4305
        %v4320 = vpack.c.b16 %v4308, %v4307
        %v4321 = vpack.c.b16 %v4310, %v4309
        %v4322 = vpack.c.b16 %v4312, %v4311
        %v4323 = vpack.c.b16 %v4314, %v4313
        %v4324 = vpack.c.b16 %v4316, %v4315
        %4333 = vmatprep.subr.bf16.mxu0 0
        %4334 = vmatpush1.bf16.msra.mxu0 %v4317
        %4335 = vmatprep.subr.bf16.mxu0 0
        %4336 = vmatpush1.bf16.msra.mxu0 %v4318
        %4337 = vmatprep.subr.bf16.mxu0 0
        %4338 = vmatpush1.bf16.msra.mxu0 %v4319
        %4339 = vmatprep.subr.bf16.mxu0 0
        %4340 = vmatpush1.bf16.msra.mxu0 %v4320
        %4341 = vmatprep.subr.bf16.mxu0 0
        %4342 = vmatpush1.bf16.msra.mxu0 %v4321
        %4343 = vmatprep.subr.bf16.mxu0 0
        %4344 = vmatpush1.bf16.msra.mxu0 %v4322
        %4345 = vmatprep.subr.bf16.mxu0 0
        %4346 = vmatpush1.bf16.msra.mxu0 %v4323
        %4347 = vmatprep.subr.bf16.mxu0 0
        %4348 = vmatpush1.bf16.msra.mxu0 %v4324
        %4349 = vmatprep.subr.bf16.mxu0 0
        %4350 = vmatpush1.bf16.msra.mxu0 0
        %4351 = vmatprep.subr.bf16.mxu0 0
        %4352 = vmatpush1.bf16.msra.mxu0 0
        %4353 = vmatprep.subr.bf16.mxu0 0
        %4354 = vmatpush1.bf16.msra.mxu0 0
        %4355 = vmatprep.subr.bf16.mxu0 0
        %4356 = vmatpush1.bf16.msra.mxu0 0
        %4357 = vmatprep.subr.bf16.mxu0 0
        %4358 = vmatpush1.bf16.msra.mxu0 0
        %4359 = vmatprep.subr.bf16.mxu0 0
        %4360 = vmatpush1.bf16.msra.mxu0 0
        %4361 = vmatprep.subr.bf16.mxu0 0
        %4362 = vmatpush1.bf16.msra.mxu0 0
        %4363 = vmatprep.subr.bf16.mxu0 0
        %4364 = vmatpush1.bf16.msra.mxu0 0
        %4365 = vmatprep.mubr.bf16.mxu0 0
        %4366 = vmatmul.mubr.bf16.gmra.mrb[0].mxu0 %v4284
        %v4367 = vpop.f32.mrb[0].mxu0
        %v4368 = vadd.f32 0.0, %v4367
        %v4369 = vpop.f32.mrb[0].mxu0
        %v4370 = vpop.f32.mrb[0].mxu0
        %v4371 = vadd.f32 0.0, %v4370
        %v4372 = vpop.f32.mrb[0].mxu0
        %4373 = vdwg.mxu0
        %v4374 = vadd.f32 %v4163, %v4368
        %v4375 = vadd.f32 %v4164, %v4371
        %v4376 = vlaneseq
        %v4377 = vshrl.u32 %v4376, 7
        %v4378 = vsub.s32 5, %v4377
        %v4379 = vrot.slane %v433, %v4378
        %v4380 = vadd.f32 %v4374, %v4379
        %v4381 = vadd.f32 %v4375, %v4379
        %4382 = vst.msk [vmem:[#allocation2] sm:$0xff] %vm545, %v4380
        %4383 = vst.msk [vmem:[#allocation2 + $0x8] sm:$0xff] %vm545, %v4381
        %p4384 = scmp.eq.s32.totalorder %s25, 1
        // Predicated region
        $region57: #{tpu_custom_call.1} parent=51 // pred_check
          %p4385 = pneg %p4384
        $region58: #{tpu_custom_call.1} parent=51 // pred_check_branch
          %4387 = sbr.rel (%p4385) target = $region60
        $region59: #{tpu_custom_call.1} parent=51 // pred_region
          %v4388 = vld [vmem:[%s7] sm:$0x3]
          %v4389 = vsel %vm545, %v4380, 0.0
          %4390 = vadd.xlane.f32.xlu0 %v4389
          %v4391 = vpop.xlane.xlu0 %4390
          %v4392 = vsel %vm545, %v4381, 0.0
          %4393 = vadd.xlane.f32.xlu0 %v4392
          %v4394 = vpop.xlane.xlu0 %4393
          %v4395 = vmul.f32 %v4391, %v552
          %v4396 = vmul.f32 %v4394, %v552
          %v4397 = vsub.f32 %v4380, %v4395
          %v4398 = vsub.f32 %v4381, %v4396
          %v4399 = vmul.f32 %v4397, %v4397
          %v4400 = vmul.f32 %v4398, %v4398
          %v4401 = vsel %vm545, %v4399, 0.0
          %4402 = vadd.xlane.f32.xlu0 %v4401
          %v4403 = vpop.xlane.xlu0 %4402
          %v4404 = vsel %vm545, %v4400, 0.0
          %4405 = vadd.xlane.f32.xlu0 %v4404
          %v4406 = vpop.xlane.xlu0 %4405
          %v4407 = vmul.f32 %v4403, %v552
          %v4408 = vmul.f32 %v4406, %v552
          %v4409 = vadd.f32 %v4407, 1e-05
          %v4410 = vadd.f32 %v4408, 1e-05
          %v4411 = vrsqrt.pop %v4409
          %v4412 = vrsqrt.pop %v4410
          %v4413 = vmul.f32 %v4397, %v4411
          %v4414 = vmul.f32 %v4398, %v4412
          %v4415 = vlaneseq
          %v4416 = vshrl.u32 %v4415, 7
          %v4417 = vsub.s32 0, %v4416
          %v4418 = vrot.slane %v4388, %v4417
          %v4419 = vmul.f32 %v4413, %v4418
          %v4420 = vmul.f32 %v4414, %v4418
          %v4421 = vlaneseq
          %v4422 = vshrl.u32 %v4421, 7
          %v4423 = vsub.s32 1, %v4422
          %v4424 = vrot.slane %v4388, %v4423
          %v4425 = vadd.f32 %v4419, %v4424
          %v4426 = vadd.f32 %v4420, %v4424
          %4427 = vst.msk [vmem:[#allocation3] sm:$0xff] %vm545, %v4425
          %4428 = vst.msk [vmem:[#allocation3 + $0x8] sm:$0xff] %vm545, %v4426
        $region60: #{tpu_custom_call.1} parent=51 // pred_fallthru
          _
        // Predicated region
        $region61: #{tpu_custom_call.1} parent=51 // pred_check
          %p4429 = pneg %p253
        $region62: #{tpu_custom_call.1} parent=51 // pred_check_branch
          %4431 = sbr.rel (%p4429) target = $region64
        $region63: #{tpu_custom_call.1} parent=51 // pred_region
          %s4432 = smul.u32 2, %s24
          %s4434 = ssub.s32 256, 256
          %4435 = vsyncadd [#allocation4], %s4434
          %s4436 = smul.addr %s4432, 128
          %s4437 = scalar_lea.hbm %s8, %s4436
          %s4438 = sshll.u32 [#allocation3], 4
          %s4439 = int_to_ptr.vmem [resolvable:$true] %s4438
          %4444 = dma.vmem_to_hbm [thread:$0]  %s4439, 256, %s4437, [#allocation4], 128, 128, 8
        $region64: #{tpu_custom_call.1} parent=51 // pred_fallthru
          _
        // Predicated region
        $region65: #{tpu_custom_call.1} parent=51 // pred_check
          %p4445 = pneg %p253
        $region66: #{tpu_custom_call.1} parent=51 // pred_check_branch
          %4447 = sbr.rel (%p4445) target = $region68
        $region67: #{tpu_custom_call.1} parent=51 // pred_region
          %4448 = dma.done [#allocation4], 256
        $region68: #{tpu_custom_call.1} parent=51 // pred_fallthru
          _
      $region52: #{tpu_custom_call.1} parent=5 // pred_fallthru
        _
      %p4449 = scmp.le.s32.totalorder 2, %s15
      // Predicated region
      $region69: #{tpu_custom_call.1} parent=5 // pred_check
        %p4450 = pneg %p4449
      $region70: #{tpu_custom_call.1} parent=5 // pred_check_branch
        %4452 = sbr.rel (%p4450) target = $region72
      $region71: #{tpu_custom_call.1} parent=5 // pred_region
        %s4453 = ssub.s32 %s15, 2
      $region72: #{tpu_custom_call.1} parent=5 // pred_fallthru
        _
    $region6: #{tpu_custom_call.1} parent=1 // loop_footer
      %s19 = sadd.s32 1, %s15
    $region7: #{tpu_custom_call.1} parent=1 // loop_footer_branch
      %14 = sbr.rel target = $region3
    $region8: #{tpu_custom_call.1} parent=1 // loop_exit
      _
    %4454 = vsyncpa [#allocation4], 1
    %s4455 = scalar_lea.sflag [#allocation4], 1
    %4456 = vsyncpa %s4455, 1

</llo_original>
